<compile_context>
chip_gen: v7x
topology: tpu7x:2x2x1
jax: 0.10.0
libtpu: 0.0.40
codegen_flags: <defaults>
</compile_context>

<pallas_src>
import numpy as np

import jax
import jax.numpy as jnp
from jax.experimental import pallas as pl
from jax.experimental.pallas import tpu as pltpu


# TODO(synk): exact VGG_19_YUV layer widths / classifier head are unknown
#             (class not provided); a channel-scaled VGG-19 stand-in is used.
VGG_CFG = [4, 4, 'M', 8, 8, 'M', 8, 8, 8, 8, 'M',
           16, 16, 16, 16, 'M', 16, 16, 16, 16, 'M']

LANE_W = 256     # lane width of the packed weight / bias buffers
POOL_OFF = 128   # lane offset of the odd-column half in pool-folded convs
GUARD = 16       # sublane offset of activation rows inside the shift scratch


# ----------------------------------------------------------------------------
# Host-side (init-time) weight preprocessing for the lane-dense layout.
# ----------------------------------------------------------------------------
def _banded_weights(w, width):
    """w: (3, 3, cin, cout) HWIO -> (3, width*cin, width*cout) banded matrices.

    dy taps stay separate (handled by the +-1 row shift in the kernel); the 3
    dx taps and the Cin->Cout contraction are folded into one banded matmul.
    """
    _, _, cin, cout = w.shape
    out = np.zeros((3, width * cin, width * cout), np.float32)
    for d in range(3):                       # dy tap
        for j in range(width):               # output column
            for dx in (-1, 0, 1):            # dx tap folded into the band
                j2 = j + dx
                if 0 <= j2 < width:
                    out[d, j2 * cin:(j2 + 1) * cin,
                        j * cout:(j + 1) * cout] = w[d, dx + 1]
    return out


def _fold_lane_pool(banded, bias_row, cout, width):
    """Fold the W half of the 2x2 max-pool into the last conv of a block.

    Even output columns are placed at lanes [0, half), odd ones at
    [POOL_OFF, POOL_OFF + half), so the in-kernel pool is an aligned slice +
    one VPU max instead of two extra MXU matmuls.
    """
    half = (width // 2) * cout
    assert half <= POOL_OFF
    kk = banded.shape[1]
    n_out = POOL_OFF + half
    w_out = np.zeros((3, kk, n_out), np.float32)
    b_out = np.zeros((n_out,), np.float32)
    for j in range(width // 2):
        even = slice((2 * j) * cout, (2 * j + 1) * cout)
        odd = slice((2 * j + 1) * cout, (2 * j + 2) * cout)
        dst_e = slice(j * cout, (j + 1) * cout)
        dst_o = slice(POOL_OFF + j * cout, POOL_OFF + (j + 1) * cout)
        w_out[:, :, dst_e] = banded[:, :, even]
        w_out[:, :, dst_o] = banded[:, :, odd]
        b_out[dst_e] = bias_row[even]
        b_out[dst_o] = bias_row[odd]
    return w_out, b_out, half, n_out


def init_model(key, *, inc_ch=1, out_size=32, img_size=32, hidden=64):
    """Synthetic deterministic weights + packed Pallas operand buffers."""
    # TODO(synk): generalize to img_size != 32 (needs the spatial permutation
    #             folded into fc1 when the final feature map is larger than 1x1).
    assert img_size == 32, "demo config: 5 pools must reduce spatial to 1x1"

    # -- parse the VGG config into pool-delimited blocks ----------------------
    block_defs, cur = [], []
    cin, h = inc_ch, img_size
    for v in VGG_CFG:
        if v == 'M':
            block_defs.append((h, cur))
            cur = []
            h //= 2
        else:
            cur.append((cin, v))
            cin = v
    assert h == 1 and not cur
    feat_ch = cin

    # -- deterministic synthetic weights --------------------------------------
    k = key
    raw_convs = []
    for _hb, convs in block_defs:
        for ci, co in convs:
            k, k1 = jax.random.split(k)
            w = (jax.random.normal(k1, (3, 3, ci, co), jnp.float32)
                 * (2.0 / (9 * ci)) ** 0.5)
            b = 0.01 * jnp.ones((co,), jnp.float32)
            raw_convs.append((w, b))
    k, k1, k2 = jax.random.split(k, 3)
    w1 = jax.random.normal(k1, (feat_ch, hidden), jnp.float32) * (2.0 / feat_ch) ** 0.5
    b1 = 0.01 * jnp.ones((hidden,), jnp.float32)
    w2 = jax.random.normal(k2, (hidden, out_size), jnp.float32) * (1.0 / hidden) ** 0.5
    b2 = jnp.zeros((out_size,), jnp.float32)
    raw_fcs = [(w1, b1), (w2, b2)]

    # -- pack banded conv weights (W pool folded into the last conv of each
    #    block), biases and FC weights into TWO flat buffers -------------------
    w_slabs, b_rows, blocks_meta = [], [], []
    row_off = conv_i = bias_i = 0
    for hb, convs in block_defs:
        convs_meta = []
        for idx, (ci, co) in enumerate(convs):
            w_np = np.asarray(raw_convs[conv_i][0], np.float32)
            b_np = np.asarray(raw_convs[conv_i][1], np.float32)
            conv_i += 1
            banded = _banded_weights(w_np, hb)          # (3, hb*ci, hb*co)
            bias_row = np.tile(b_np, hb)                # (hb*co,)
            last = idx == len(convs) - 1
            if last:
                banded, bias_row, half, n_out = _fold_lane_pool(banded, bias_row, co, hb)
            else:
                half, n_out = 0, hb * co
            kk = hb * ci
            slab = np.zeros((3 * kk, LANE_W), np.float32)
            for d in range(3):
                slab[d * kk:(d + 1) * kk, :n_out] = banded[d]
            w_slabs.append(slab)
            brow = np.zeros((LANE_W,), np.float32)
            brow[:n_out] = bias_row
            b_rows.append(brow)
            convs_meta.append(dict(off=row_off, k=kk, n=n_out, bias=bias_i,
                                   last=last, half=half))
            row_off += 3 * kk
            bias_i += 1
        blocks_meta.append(dict(h=hb, convs=convs_meta))

    fc_meta = []
    for i_fc, (wf, bf) in enumerate(raw_fcs):
        kf, nf = wf.shape
        slab = np.zeros((kf, LANE_W), np.float32)
        slab[:, :nf] = np.asarray(wf, np.float32)
        w_slabs.append(slab)
        brow = np.zeros((LANE_W,), np.float32)
        brow[:nf] = np.asarray(bf, np.float32)
        b_rows.append(brow)
        fc_meta.append(dict(off=row_off, k=kf, n=nf, bias=bias_i, relu=i_fc == 0))
        row_off += kf
        bias_i += 1

    # bf16 weights for the native MXU rate; biases stay f32 (f32 epilogue).
    wbuf = jnp.asarray(np.concatenate(w_slabs, axis=0), dtype=jnp.bfloat16)
    bbuf = jnp.asarray(np.stack(b_rows, axis=0), dtype=jnp.float32)

    return dict(wbuf=wbuf, bbuf=bbuf, blocks=blocks_meta, fc=fc_meta,
                raw=dict(convs=raw_convs, fcs=raw_fcs),
                inc_ch=inc_ch, img_size=img_size, out_size=out_size,
                feat_ch=feat_ch)


# ----------------------------------------------------------------------------
# The fused whole-network kernel.
# Operands: x2d (R0, W0*C), packed weight buffer (bf16), packed bias buffer
# (f32).  Scratch: shift buffer (dy=+-1 row re-reads), pool buffer (H pool).
# ----------------------------------------------------------------------------
def make_kernel(blocks, fc, batch_tile):
    bf16, f32 = jnp.bfloat16, jnp.float32

    def kernel(x_ref, w_ref, b_ref, o_ref, sbuf, pbuf):
        sbuf[...] = jnp.zeros(sbuf.shape, f32)        # zero guard rows once
        a = x_ref[...]                                # (R0, W0*Cin) f32
        for blk in blocks:
            hh = blk['h']
            rr = batch_tile * hh
            ridx = jax.lax.broadcasted_iota(jnp.int32, (rr, 1), 0)
            top = (ridx & (hh - 1)) == 0              # first row of each image
            bot = (ridx & (hh - 1)) == hh - 1         # last row of each image
            for cv in blk['convs']:
                off, kk, nn = cv['off'], cv['k'], cv['n']
                lin = kk                              # input lanes == H*Cin == K
                # dy=+-1 row shifts: store once, re-read at +-1 sublane offset.
                # Replaces the two 0/1 shift-matrix MXU matmuls per conv.
                sbuf[pl.ds(GUARD, rr), pl.ds(0, lin)] = a
                up = sbuf[pl.ds(GUARD - 1, rr), pl.ds(0, lin)]
                dn = sbuf[pl.ds(GUARD + 1, rr), pl.ds(0, lin)]
                up = jnp.where(top, 0.0, up)          # zero across image edges
                dn = jnp.where(bot, 0.0, dn)
                w0 = w_ref[pl.ds(off, kk), pl.ds(0, nn)]
                w1 = w_ref[pl.ds(off + kk, kk), pl.ds(0, nn)]
                w2 = w_ref[pl.ds(off + 2 * kk, kk), pl.ds(0, nn)]
                # 3 bf16 MXU matmuls, sequential f32 accumulation.
                y = jnp.dot(up.astype(bf16), w0, preferred_element_type=f32)
                y = y + jnp.dot(a.astype(bf16), w1, preferred_element_type=f32)
                y = y + jnp.dot(dn.astype(bf16), w2, preferred_element_type=f32)
                bias = b_ref[pl.ds(cv['bias'], 1), pl.ds(0, nn)]
                a = jnp.maximum(y + bias, 0.0)        # f32 epilogue
                if cv['last']:
                    # 2x2 max-pool.  W half was folded into the conv weights:
                    # even columns at lanes [0, half), odd at [POOL_OFF, ...).
                    half = cv['half']
                    a = jnp.maximum(a[:, :half], a[:, POOL_OFF:POOL_OFF + half])
                    # H half: even/odd row max via strided sublane loads.
                    pbuf[pl.ds(0, rr), pl.ds(0, half)] = a
                    ev = pbuf[pl.ds(0, rr // 2, 2), pl.ds(0, half)]
                    od = pbuf[pl.ds(1, rr // 2, 2), pl.ds(0, half)]
                    a = jnp.maximum(ev, od)
        # Classifier head (spatial is 1x1, so `a` is already the NCHW flatten).
        for m in fc:
            w = w_ref[pl.ds(m['off'], m['k']), pl.ds(0, m['n'])]
            bias = b_ref[pl.ds(m['bias'], 1), pl.ds(0, m['n'])]
            a = jnp.dot(a.astype(bf16), w, preferred_element_type=f32) + bias
            if m['relu']:
                a = jnp.maximum(a, 0.0)
        o_ref[...] = a.astype(o_ref.dtype)

    return kernel


def image_features_forward(model, x_nchw, batch_tile=None):
    """ImageFeatures.forward: (N, C, H, W) -> (N, out_size), one fused pallas_call."""
    n, c, h, w = x_nchw.shape
    assert c == model['inc_ch'] and h == w == model['img_size']
    if batch_tile is None:
        batch_tile = n
    assert n % batch_tile == 0
    assert batch_tile == n or batch_tile % 8 == 0, \
        "sub-batch tiles must keep an (8,128)-friendly output tiling"
    r0 = batch_tile * h
    out_size = model['out_size']

    # NCHW -> lane-dense (N*H, W*C) layout used inside the kernel.
    x2d = jnp.transpose(x_nchw, (0, 2, 3, 1)).reshape(n * h, w * c)
    x2d = x2d.astype(jnp.float32)

    kernel = make_kernel(model['blocks'], model['fc'], batch_tile)
    wbuf, bbuf = model['wbuf'], model['bbuf']
    return pl.pallas_call(
        kernel,
        out_shape=jax.ShapeDtypeStruct((n, out_size), jnp.float32),
        grid=(n // batch_tile,),
        in_specs=[
            pl.BlockSpec((r0, w * c), lambda b: (b, 0)),
            pl.BlockSpec(wbuf.shape, lambda b: (0, 0)),
            pl.BlockSpec(bbuf.shape, lambda b: (0, 0)),
        ],
        out_specs=pl.BlockSpec((batch_tile, out_size), lambda b: (b, 0)),
        scratch_shapes=[
            pltpu.VMEM((GUARD + r0 + GUARD, 128), jnp.float32),   # shift scratch
            pltpu.VMEM((r0, 64), jnp.float32),                    # H-pool scratch
        ],
        compiler_params=pltpu.CompilerParams(
            dimension_semantics=("parallel",)),
    )(x2d, wbuf, bbuf)


# ----------------------------------------------------------------------------
# Plain-XLA reference of the same (synthetic-weight, bf16-matmul) network.
# ----------------------------------------------------------------------------
def reference_forward(model, x_nchw):
    f32, bf16 = jnp.float32, jnp.bfloat16
    x = jnp.transpose(x_nchw, (0, 2, 3, 1)).astype(f32)
    ci = 0
    for v in VGG_CFG:
        if v == 'M':
            n_, h_, w_, c_ = x.shape
            x = x.reshape(n_, h_ // 2, 2, w_ // 2, 2, c_).max(axis=(2, 4))
            continue
        cw, cb = model['raw']['convs'][ci]
        ci += 1
        n_, h_, w_, _ = x.shape
        cin, cout = cw.shape[2], cw.shape[3]
        xp = jnp.pad(x, ((0, 0), (1, 1), (1, 1), (0, 0)))
        y = jnp.zeros((n_, h_, w_, cout), f32) + cb
        for dy in range(3):
            for dx in range(3):
                patch = xp[:, dy:dy + h_, dx:dx + w_, :]
                pv = patch.reshape(-1, cin).astype(bf16)
                wv = cw[dy, dx].astype(bf16)
                y = y + jnp.dot(pv, wv, preferred_element_type=f32
                                ).reshape(n_, h_, w_, cout)
        x = jnp.maximum(y, 0.0)
    n_ = x.shape[0]
    feat = jnp.transpose(x, (0, 3, 1, 2)).reshape(n_, -1)   # PyTorch NCHW flatten
    (w1, b1), (w2, b2) = model['raw']['fcs']
    feat = jnp.maximum(
        jnp.dot(feat.astype(bf16), w1.astype(bf16),
                preferred_element_type=f32) + b1, 0.0)
    feat = jnp.dot(feat.astype(bf16), w2.astype(bf16),
                   preferred_element_type=f32) + b2
    return feat


if __name__ == "__main__":
    key = jax.random.PRNGKey(0)
    k_param, k_x = jax.random.split(key)

    batch, inc_ch, img_size, out_size = 2, 1, 32, 32
    model = init_model(k_param, inc_ch=inc_ch, out_size=out_size,
                       img_size=img_size)

    x = jax.random.normal(k_x, (batch, inc_ch, img_size, img_size), jnp.float32)

    fwd = jax.jit(lambda xx: image_features_forward(model, xx))
    out = jax.block_until_ready(fwd(x))
    assert out.shape == (batch, out_size)
    assert bool(jnp.all(jnp.isfinite(out)))

    # Validate the fused Pallas network against the plain-XLA reference of the
    # same network (both use bf16 matmul operands with f32 accumulation, so
    # the tolerance only needs to absorb accumulation-order differences).
    ref = jax.block_until_ready(reference_forward(model, x))
    rel_err = float(jnp.max(jnp.abs(out - ref)) / (jnp.max(jnp.abs(ref)) + 1e-6))
    assert rel_err < 5e-2, f"fused kernel mismatch vs reference: rel_err={rel_err}"

    print("KERNEL_OK")
</pallas_src>

<mosaic_0001>
module attributes {stable_mosaic.version = 11 : i64} {
  func.func @kernel(%arg0: i32, %arg1: memref<64x32xf32, #tpu.memory_space<vmem>>, %arg2: memref<2960x256xbf16, #tpu.memory_space<vmem>>, %arg3: memref<18x256xf32, #tpu.memory_space<vmem>>, %arg4: memref<2x32xf32, #tpu.memory_space<vmem>>, %arg5: memref<96x128xf32, #tpu.memory_space<vmem>>, %arg6: memref<64x64xf32, #tpu.memory_space<vmem>>) attributes {dimension_semantics = [#tpu.dimension_semantics<parallel>], iteration_bounds = array<i64: 1>, scalar_prefetch = 0 : i64, scratch_operands = 2 : i64, tpu.core_type = #tpu.core_type<tc>, window_params = [{transform_indices = @transform_0, window_bounds = array<i64: 64, 32>}, {pipeline_mode = #tpu.pipeline_mode<synchronous>, transform_indices = @transform_1, window_bounds = array<i64: 2960, 256>}, {pipeline_mode = #tpu.pipeline_mode<synchronous>, transform_indices = @transform_2, window_bounds = array<i64: 18, 256>}, {transform_indices = @transform_3, window_bounds = array<i64: 2, 32>}]} {
    %cst = arith.constant 0.000000e+00 : f32
    %0 = vector.broadcast %cst : f32 to vector<96x128xf32>
    %c0 = arith.constant 0 : index
    %c0_0 = arith.constant 0 : index
    %1 = vector.load %arg5[%c0, %c0_0] : memref<96x128xf32, #tpu.memory_space<vmem>>, vector<96x128xf32>
    tpu.vector_store %arg5[%c0, %c0_0], %0 {strides = array<i32>} : memref<96x128xf32, #tpu.memory_space<vmem>>, vector<96x128xf32>,
    %c0_1 = arith.constant 0 : index
    %c0_2 = arith.constant 0 : index
    %2 = vector.load %arg1[%c0_1, %c0_2] : memref<64x32xf32, #tpu.memory_space<vmem>>, vector<64x32xf32>
    %3 = tpu.iota {dimensions = array<i32: 0>} : vector<64x1xi32>
    %c31_i32 = arith.constant 31 : i32
    %4 = vector.broadcast %c31_i32 : i32 to vector<64x1xi32>
    %5 = arith.andi %3, %4 : vector<64x1xi32>
    %c0_i32 = arith.constant 0 : i32
    %6 = vector.broadcast %c0_i32 : i32 to vector<64x1xi32>
    %7 = arith.cmpi eq, %5, %6 : vector<64x1xi32>
    %c31_i32_3 = arith.constant 31 : i32
    %8 = vector.broadcast %c31_i32_3 : i32 to vector<64x1xi32>
    %9 = arith.andi %3, %8 : vector<64x1xi32>
    %c31_i32_4 = arith.constant 31 : i32
    %10 = vector.broadcast %c31_i32_4 : i32 to vector<64x1xi32>
    %11 = arith.cmpi eq, %9, %10 : vector<64x1xi32>
    %c16 = arith.constant 16 : index
    %c0_5 = arith.constant 0 : index
    %12 = vector.load %arg5[%c16, %c0_5] : memref<96x128xf32, #tpu.memory_space<vmem>>, vector<64x32xf32>
    tpu.vector_store %arg5[%c16, %c0_5], %2 {strides = array<i32>} : memref<96x128xf32, #tpu.memory_space<vmem>>, vector<64x32xf32>,
    %c15 = arith.constant 15 : index
    %c0_6 = arith.constant 0 : index
    %13 = vector.load %arg5[%c15, %c0_6] : memref<96x128xf32, #tpu.memory_space<vmem>>, vector<64x32xf32>
    %c17 = arith.constant 17 : index
    %c0_7 = arith.constant 0 : index
    %14 = vector.load %arg5[%c17, %c0_7] : memref<96x128xf32, #tpu.memory_space<vmem>>, vector<64x32xf32>
    %cst_8 = arith.constant 0.000000e+00 : f32
    %15 = vector.shape_cast %7 : vector<64x1xi1> to vector<64x1xi1>
    %16 = vector.broadcast %15 : vector<64x1xi1> to vector<64x32xi1>
    %17 = vector.broadcast %cst_8 : f32 to vector<64x32xf32>
    %18 = arith.select %16, %17, %13 : vector<64x32xi1>, vector<64x32xf32>
    %cst_9 = arith.constant 0.000000e+00 : f32
    %19 = vector.shape_cast %11 : vector<64x1xi1> to vector<64x1xi1>
    %20 = vector.broadcast %19 : vector<64x1xi1> to vector<64x32xi1>
    %21 = vector.broadcast %cst_9 : f32 to vector<64x32xf32>
    %22 = arith.select %20, %21, %14 : vector<64x32xi1>, vector<64x32xf32>
    %c0_10 = arith.constant 0 : index
    %c0_11 = arith.constant 0 : index
    %23 = vector.load %arg2[%c0_10, %c0_11] : memref<2960x256xbf16, #tpu.memory_space<vmem>>, vector<32x128xbf16>
    %c32 = arith.constant 32 : index
    %c0_12 = arith.constant 0 : index
    %24 = vector.load %arg2[%c32, %c0_12] : memref<2960x256xbf16, #tpu.memory_space<vmem>>, vector<32x128xbf16>
    %c64 = arith.constant 64 : index
    %c0_13 = arith.constant 0 : index
    %25 = vector.load %arg2[%c64, %c0_13] : memref<2960x256xbf16, #tpu.memory_space<vmem>>, vector<32x128xbf16>
    %26 = arith.truncf %18 : vector<64x32xf32> to vector<64x32xbf16>
    %cst_14 = arith.constant dense<0.000000e+00> : vector<64x128xf32>
    %27 = tpu.matmul %26, %23, %cst_14 {dimension_numbers = #tpu.dot_dimension_numbers<[1], [0], [0], [1], [0, 0, 1, 1], [], []>} : vector<64x32xbf16>, vector<32x128xbf16>, vector<64x128xf32> -> vector<64x128xf32>
    %28 = arith.truncf %2 : vector<64x32xf32> to vector<64x32xbf16>
    %cst_15 = arith.constant dense<0.000000e+00> : vector<64x128xf32>
    %29 = tpu.matmul %28, %24, %cst_15 {dimension_numbers = #tpu.dot_dimension_numbers<[1], [0], [0], [1], [0, 0, 1, 1], [], []>} : vector<64x32xbf16>, vector<32x128xbf16>, vector<64x128xf32> -> vector<64x128xf32>
    %30 = arith.addf %27, %29 : vector<64x128xf32>
    %31 = arith.truncf %22 : vector<64x32xf32> to vector<64x32xbf16>
    %cst_16 = arith.constant dense<0.000000e+00> : vector<64x128xf32>
    %32 = tpu.matmul %31, %25, %cst_16 {dimension_numbers = #tpu.dot_dimension_numbers<[1], [0], [0], [1], [0, 0, 1, 1], [], []>} : vector<64x32xbf16>, vector<32x128xbf16>, vector<64x128xf32> -> vector<64x128xf32>
    %33 = arith.addf %30, %32 : vector<64x128xf32>
    %c0_17 = arith.constant 0 : index
    %c0_18 = arith.constant 0 : index
    %34 = vector.load %arg3[%c0_17, %c0_18] : memref<18x256xf32, #tpu.memory_space<vmem>>, vector<1x128xf32>
    %35 = vector.broadcast %34 : vector<1x128xf32> to vector<64x128xf32>
    %36 = arith.addf %33, %35 : vector<64x128xf32>
    %cst_19 = arith.constant 0.000000e+00 : f32
    %37 = vector.broadcast %cst_19 : f32 to vector<64x128xf32>
    %38 = arith.maximumf %36, %37 : vector<64x128xf32>
    %c16_20 = arith.constant 16 : index
    %c0_21 = arith.constant 0 : index
    %39 = vector.load %arg5[%c16_20, %c0_21] : memref<96x128xf32, #tpu.memory_space<vmem>>, vector<64x128xf32>
    tpu.vector_store %arg5[%c16_20, %c0_21], %38 {strides = array<i32>} : memref<96x128xf32, #tpu.memory_space<vmem>>, vector<64x128xf32>,
    %c15_22 = arith.constant 15 : index
    %c0_23 = arith.constant 0 : index
    %40 = vector.load %arg5[%c15_22, %c0_23] : memref<96x128xf32, #tpu.memory_space<vmem>>, vector<64x128xf32>
    %c17_24 = arith.constant 17 : index
    %c0_25 = arith.constant 0 : index
    %41 = vector.load %arg5[%c17_24, %c0_25] : memref<96x128xf32, #tpu.memory_space<vmem>>, vector<64x128xf32>
    %cst_26 = arith.constant 0.000000e+00 : f32
    %42 = vector.shape_cast %7 : vector<64x1xi1> to vector<64x1xi1>
    %43 = vector.broadcast %42 : vector<64x1xi1> to vector<64x128xi1>
    %44 = vector.broadcast %cst_26 : f32 to vector<64x128xf32>
    %45 = arith.select %43, %44, %40 : vector<64x128xi1>, vector<64x128xf32>
    %cst_27 = arith.constant 0.000000e+00 : f32
    %46 = vector.shape_cast %11 : vector<64x1xi1> to vector<64x1xi1>
    %47 = vector.broadcast %46 : vector<64x1xi1> to vector<64x128xi1>
    %48 = vector.broadcast %cst_27 : f32 to vector<64x128xf32>
    %49 = arith.select %47, %48, %41 : vector<64x128xi1>, vector<64x128xf32>
    %c96 = arith.constant 96 : index
    %c0_28 = arith.constant 0 : index
    %50 = vector.load %arg2[%c96, %c0_28] : memref<2960x256xbf16, #tpu.memory_space<vmem>>, vector<128x192xbf16>
    %c224 = arith.constant 224 : index
    %c0_29 = arith.constant 0 : index
    %51 = vector.load %arg2[%c224, %c0_29] : memref<2960x256xbf16, #tpu.memory_space<vmem>>, vector<128x192xbf16>
    %c352 = arith.constant 352 : index
    %c0_30 = arith.constant 0 : index
    %52 = vector.load %arg2[%c352, %c0_30] : memref<2960x256xbf16, #tpu.memory_space<vmem>>, vector<128x192xbf16>
    %53 = arith.truncf %45 : vector<64x128xf32> to vector<64x128xbf16>
    %cst_31 = arith.constant dense<0.000000e+00> : vector<64x192xf32>
    %54 = tpu.matmul %53, %50, %cst_31 {dimension_numbers = #tpu.dot_dimension_numbers<[1], [0], [0], [1], [0, 0, 1, 1], [], []>} : vector<64x128xbf16>, vector<128x192xbf16>, vector<64x192xf32> -> vector<64x192xf32>
    %55 = arith.truncf %38 : vector<64x128xf32> to vector<64x128xbf16>
    %cst_32 = arith.constant dense<0.000000e+00> : vector<64x192xf32>
    %56 = tpu.matmul %55, %51, %cst_32 {dimension_numbers = #tpu.dot_dimension_numbers<[1], [0], [0], [1], [0, 0, 1, 1], [], []>} : vector<64x128xbf16>, vector<128x192xbf16>, vector<64x192xf32> -> vector<64x192xf32>
    %57 = arith.addf %54, %56 : vector<64x192xf32>
    %58 = arith.truncf %49 : vector<64x128xf32> to vector<64x128xbf16>
    %cst_33 = arith.constant dense<0.000000e+00> : vector<64x192xf32>
    %59 = tpu.matmul %58, %52, %cst_33 {dimension_numbers = #tpu.dot_dimension_numbers<[1], [0], [0], [1], [0, 0, 1, 1], [], []>} : vector<64x128xbf16>, vector<128x192xbf16>, vector<64x192xf32> -> vector<64x192xf32>
    %60 = arith.addf %57, %59 : vector<64x192xf32>
    %c1 = arith.constant 1 : index
    %c0_34 = arith.constant 0 : index
    %61 = vector.load %arg3[%c1, %c0_34] : memref<18x256xf32, #tpu.memory_space<vmem>>, vector<1x192xf32>
    %62 = vector.broadcast %61 : vector<1x192xf32> to vector<64x192xf32>
    %63 = arith.addf %60, %62 : vector<64x192xf32>
    %cst_35 = arith.constant 0.000000e+00 : f32
    %64 = vector.broadcast %cst_35 : f32 to vector<64x192xf32>
    %65 = arith.maximumf %63, %64 : vector<64x192xf32>
    %66 = vector.extract_strided_slice %65 {offsets = [0, 0], sizes = [64, 64], strides = [1, 1]} : vector<64x192xf32> to vector<64x64xf32>
    %67 = vector.extract_strided_slice %65 {offsets = [0, 128], sizes = [64, 64], strides = [1, 1]} : vector<64x192xf32> to vector<64x64xf32>
    %68 = arith.maximumf %66, %67 : vector<64x64xf32>
    %c0_36 = arith.constant 0 : index
    %c0_37 = arith.constant 0 : index
    %69 = vector.load %arg6[%c0_36, %c0_37] : memref<64x64xf32, #tpu.memory_space<vmem>>, vector<64x64xf32>
    tpu.vector_store %arg6[%c0_36, %c0_37], %68 {strides = array<i32>} : memref<64x64xf32, #tpu.memory_space<vmem>>, vector<64x64xf32>,
    %c0_38 = arith.constant 0 : index
    %c0_39 = arith.constant 0 : index
    %70 = tpu.strided_load %arg6[%c0_38, %c0_39] {strides = array<i32: 2, 1>} : memref<64x64xf32, #tpu.memory_space<vmem>>, vector<32x64xf32>
    %c1_40 = arith.constant 1 : index
    %c0_41 = arith.constant 0 : index
    %71 = tpu.strided_load %arg6[%c1_40, %c0_41] {strides = array<i32: 2, 1>} : memref<64x64xf32, #tpu.memory_space<vmem>>, vector<32x64xf32>
    %72 = arith.maximumf %70, %71 : vector<32x64xf32>
    %73 = tpu.iota {dimensions = array<i32: 0>} : vector<32x1xi32>
    %c15_i32 = arith.constant 15 : i32
    %74 = vector.broadcast %c15_i32 : i32 to vector<32x1xi32>
    %75 = arith.andi %73, %74 : vector<32x1xi32>
    %c0_i32_42 = arith.constant 0 : i32
    %76 = vector.broadcast %c0_i32_42 : i32 to vector<32x1xi32>
    %77 = arith.cmpi eq, %75, %76 : vector<32x1xi32>
    %c15_i32_43 = arith.constant 15 : i32
    %78 = vector.broadcast %c15_i32_43 : i32 to vector<32x1xi32>
    %79 = arith.andi %73, %78 : vector<32x1xi32>
    %c15_i32_44 = arith.constant 15 : i32
    %80 = vector.broadcast %c15_i32_44 : i32 to vector<32x1xi32>
    %81 = arith.cmpi eq, %79, %80 : vector<32x1xi32>
    %c16_45 = arith.constant 16 : index
    %c0_46 = arith.constant 0 : index
    %82 = vector.load %arg5[%c16_45, %c0_46] : memref<96x128xf32, #tpu.memory_space<vmem>>, vector<32x64xf32>
    tpu.vector_store %arg5[%c16_45, %c0_46], %72 {strides = array<i32>} : memref<96x128xf32, #tpu.memory_space<vmem>>, vector<32x64xf32>,
    %c15_47 = arith.constant 15 : index
    %c0_48 = arith.constant 0 : index
    %83 = vector.load %arg5[%c15_47, %c0_48] : memref<96x128xf32, #tpu.memory_space<vmem>>, vector<32x64xf32>
    %c17_49 = arith.constant 17 : index
    %c0_50 = arith.constant 0 : index
    %84 = vector.load %arg5[%c17_49, %c0_50] : memref<96x128xf32, #tpu.memory_space<vmem>>, vector<32x64xf32>
    %cst_51 = arith.constant 0.000000e+00 : f32
    %85 = vector.shape_cast %77 : vector<32x1xi1> to vector<32x1xi1>
    %86 = vector.broadcast %85 : vector<32x1xi1> to vector<32x64xi1>
    %87 = vector.broadcast %cst_51 : f32 to vector<32x64xf32>
    %88 = arith.select %86, %87, %83 : vector<32x64xi1>, vector<32x64xf32>
    %cst_52 = arith.constant 0.000000e+00 : f32
    %89 = vector.shape_cast %81 : vector<32x1xi1> to vector<32x1xi1>
    %90 = vector.broadcast %89 : vector<32x1xi1> to vector<32x64xi1>
    %91 = vector.broadcast %cst_52 : f32 to vector<32x64xf32>
    %92 = arith.select %90, %91, %84 : vector<32x64xi1>, vector<32x64xf32>
    %c480 = arith.constant 480 : index
    %c0_53 = arith.constant 0 : index
    %93 = vector.load %arg2[%c480, %c0_53] : memref<2960x256xbf16, #tpu.memory_space<vmem>>, vector<64x128xbf16>
    %c544 = arith.constant 544 : index
    %c0_54 = arith.constant 0 : index
    %94 = vector.load %arg2[%c544, %c0_54] : memref<2960x256xbf16, #tpu.memory_space<vmem>>, vector<64x128xbf16>
    %c608 = arith.constant 608 : index
    %c0_55 = arith.constant 0 : index
    %95 = vector.load %arg2[%c608, %c0_55] : memref<2960x256xbf16, #tpu.memory_space<vmem>>, vector<64x128xbf16>
    %96 = arith.truncf %88 : vector<32x64xf32> to vector<32x64xbf16>
    %cst_56 = arith.constant dense<0.000000e+00> : vector<32x128xf32>
    %97 = tpu.matmul %96, %93, %cst_56 {dimension_numbers = #tpu.dot_dimension_numbers<[1], [0], [0], [1], [0, 0, 1, 1], [], []>} : vector<32x64xbf16>, vector<64x128xbf16>, vector<32x128xf32> -> vector<32x128xf32>
    %98 = arith.truncf %72 : vector<32x64xf32> to vector<32x64xbf16>
    %cst_57 = arith.constant dense<0.000000e+00> : vector<32x128xf32>
    %99 = tpu.matmul %98, %94, %cst_57 {dimension_numbers = #tpu.dot_dimension_numbers<[1], [0], [0], [1], [0, 0, 1, 1], [], []>} : vector<32x64xbf16>, vector<64x128xbf16>, vector<32x128xf32> -> vector<32x128xf32>
    %100 = arith.addf %97, %99 : vector<32x128xf32>
    %101 = arith.truncf %92 : vector<32x64xf32> to vector<32x64xbf16>
    %cst_58 = arith.constant dense<0.000000e+00> : vector<32x128xf32>
    %102 = tpu.matmul %101, %95, %cst_58 {dimension_numbers = #tpu.dot_dimension_numbers<[1], [0], [0], [1], [0, 0, 1, 1], [], []>} : vector<32x64xbf16>, vector<64x128xbf16>, vector<32x128xf32> -> vector<32x128xf32>
    %103 = arith.addf %100, %102 : vector<32x128xf32>
    %c2 = arith.constant 2 : index
    %c0_59 = arith.constant 0 : index
    %104 = vector.load %arg3[%c2, %c0_59] : memref<18x256xf32, #tpu.memory_space<vmem>>, vector<1x128xf32>
    %105 = vector.broadcast %104 : vector<1x128xf32> to vector<32x128xf32>
    %106 = arith.addf %103, %105 : vector<32x128xf32>
    %cst_60 = arith.constant 0.000000e+00 : f32
    %107 = vector.broadcast %cst_60 : f32 to vector<32x128xf32>
    %108 = arith.maximumf %106, %107 : vector<32x128xf32>
    %c16_61 = arith.constant 16 : index
    %c0_62 = arith.constant 0 : index
    %109 = vector.load %arg5[%c16_61, %c0_62] : memref<96x128xf32, #tpu.memory_space<vmem>>, vector<32x128xf32>
    tpu.vector_store %arg5[%c16_61, %c0_62], %108 {strides = array<i32>} : memref<96x128xf32, #tpu.memory_space<vmem>>, vector<32x128xf32>,
    %c15_63 = arith.constant 15 : index
    %c0_64 = arith.constant 0 : index
    %110 = vector.load %arg5[%c15_63, %c0_64] : memref<96x128xf32, #tpu.memory_space<vmem>>, vector<32x128xf32>
    %c17_65 = arith.constant 17 : index
    %c0_66 = arith.constant 0 : index
    %111 = vector.load %arg5[%c17_65, %c0_66] : memref<96x128xf32, #tpu.memory_space<vmem>>, vector<32x128xf32>
    %cst_67 = arith.constant 0.000000e+00 : f32
    %112 = vector.shape_cast %77 : vector<32x1xi1> to vector<32x1xi1>
    %113 = vector.broadcast %112 : vector<32x1xi1> to vector<32x128xi1>
    %114 = vector.broadcast %cst_67 : f32 to vector<32x128xf32>
    %115 = arith.select %113, %114, %110 : vector<32x128xi1>, vector<32x128xf32>
    %cst_68 = arith.constant 0.000000e+00 : f32
    %116 = vector.shape_cast %81 : vector<32x1xi1> to vector<32x1xi1>
    %117 = vector.broadcast %116 : vector<32x1xi1> to vector<32x128xi1>
    %118 = vector.broadcast %cst_68 : f32 to vector<32x128xf32>
    %119 = arith.select %117, %118, %111 : vector<32x128xi1>, vector<32x128xf32>
    %c672 = arith.constant 672 : index
    %c0_69 = arith.constant 0 : index
    %120 = vector.load %arg2[%c672, %c0_69] : memref<2960x256xbf16, #tpu.memory_space<vmem>>, vector<128x192xbf16>
    %c800 = arith.constant 800 : index
    %c0_70 = arith.constant 0 : index
    %121 = vector.load %arg2[%c800, %c0_70] : memref<2960x256xbf16, #tpu.memory_space<vmem>>, vector<128x192xbf16>
    %c928 = arith.constant 928 : index
    %c0_71 = arith.constant 0 : index
    %122 = vector.load %arg2[%c928, %c0_71] : memref<2960x256xbf16, #tpu.memory_space<vmem>>, vector<128x192xbf16>
    %123 = arith.truncf %115 : vector<32x128xf32> to vector<32x128xbf16>
    %cst_72 = arith.constant dense<0.000000e+00> : vector<32x192xf32>
    %124 = tpu.matmul %123, %120, %cst_72 {dimension_numbers = #tpu.dot_dimension_numbers<[1], [0], [0], [1], [0, 0, 1, 1], [], []>} : vector<32x128xbf16>, vector<128x192xbf16>, vector<32x192xf32> -> vector<32x192xf32>
    %125 = arith.truncf %108 : vector<32x128xf32> to vector<32x128xbf16>
    %cst_73 = arith.constant dense<0.000000e+00> : vector<32x192xf32>
    %126 = tpu.matmul %125, %121, %cst_73 {dimension_numbers = #tpu.dot_dimension_numbers<[1], [0], [0], [1], [0, 0, 1, 1], [], []>} : vector<32x128xbf16>, vector<128x192xbf16>, vector<32x192xf32> -> vector<32x192xf32>
    %127 = arith.addf %124, %126 : vector<32x192xf32>
    %128 = arith.truncf %119 : vector<32x128xf32> to vector<32x128xbf16>
    %cst_74 = arith.constant dense<0.000000e+00> : vector<32x192xf32>
    %129 = tpu.matmul %128, %122, %cst_74 {dimension_numbers = #tpu.dot_dimension_numbers<[1], [0], [0], [1], [0, 0, 1, 1], [], []>} : vector<32x128xbf16>, vector<128x192xbf16>, vector<32x192xf32> -> vector<32x192xf32>
    %130 = arith.addf %127, %129 : vector<32x192xf32>
    %c3 = arith.constant 3 : index
    %c0_75 = arith.constant 0 : index
    %131 = vector.load %arg3[%c3, %c0_75] : memref<18x256xf32, #tpu.memory_space<vmem>>, vector<1x192xf32>
    %132 = vector.broadcast %131 : vector<1x192xf32> to vector<32x192xf32>
    %133 = arith.addf %130, %132 : vector<32x192xf32>
    %cst_76 = arith.constant 0.000000e+00 : f32
    %134 = vector.broadcast %cst_76 : f32 to vector<32x192xf32>
    %135 = arith.maximumf %133, %134 : vector<32x192xf32>
    %136 = vector.extract_strided_slice %135 {offsets = [0, 0], sizes = [32, 64], strides = [1, 1]} : vector<32x192xf32> to vector<32x64xf32>
    %137 = vector.extract_strided_slice %135 {offsets = [0, 128], sizes = [32, 64], strides = [1, 1]} : vector<32x192xf32> to vector<32x64xf32>
    %138 = arith.maximumf %136, %137 : vector<32x64xf32>
    %c0_77 = arith.constant 0 : index
    %c0_78 = arith.constant 0 : index
    %139 = vector.load %arg6[%c0_77, %c0_78] : memref<64x64xf32, #tpu.memory_space<vmem>>, vector<32x64xf32>
    tpu.vector_store %arg6[%c0_77, %c0_78], %138 {strides = array<i32>} : memref<64x64xf32, #tpu.memory_space<vmem>>, vector<32x64xf32>,
    %c0_79 = arith.constant 0 : index
    %c0_80 = arith.constant 0 : index
    %140 = tpu.strided_load %arg6[%c0_79, %c0_80] {strides = array<i32: 2, 1>} : memref<64x64xf32, #tpu.memory_space<vmem>>, vector<16x64xf32>
    %c1_81 = arith.constant 1 : index
    %c0_82 = arith.constant 0 : index
    %141 = tpu.strided_load %arg6[%c1_81, %c0_82] {strides = array<i32: 2, 1>} : memref<64x64xf32, #tpu.memory_space<vmem>>, vector<16x64xf32>
    %142 = arith.maximumf %140, %141 : vector<16x64xf32>
    %143 = tpu.iota {dimensions = array<i32: 0>} : vector<16x1xi32>
    %c7_i32 = arith.constant 7 : i32
    %144 = vector.broadcast %c7_i32 : i32 to vector<16x1xi32>
    %145 = arith.andi %143, %144 : vector<16x1xi32>
    %c0_i32_83 = arith.constant 0 : i32
    %146 = vector.broadcast %c0_i32_83 : i32 to vector<16x1xi32>
    %147 = arith.cmpi eq, %145, %146 : vector<16x1xi32>
    %c7_i32_84 = arith.constant 7 : i32
    %148 = vector.broadcast %c7_i32_84 : i32 to vector<16x1xi32>
    %149 = arith.andi %143, %148 : vector<16x1xi32>
    %c7_i32_85 = arith.constant 7 : i32
    %150 = vector.broadcast %c7_i32_85 : i32 to vector<16x1xi32>
    %151 = arith.cmpi eq, %149, %150 : vector<16x1xi32>
    %c16_86 = arith.constant 16 : index
    %c0_87 = arith.constant 0 : index
    %152 = vector.load %arg5[%c16_86, %c0_87] : memref<96x128xf32, #tpu.memory_space<vmem>>, vector<16x64xf32>
    tpu.vector_store %arg5[%c16_86, %c0_87], %142 {strides = array<i32>} : memref<96x128xf32, #tpu.memory_space<vmem>>, vector<16x64xf32>,
    %c15_88 = arith.constant 15 : index
    %c0_89 = arith.constant 0 : index
    %153 = vector.load %arg5[%c15_88, %c0_89] : memref<96x128xf32, #tpu.memory_space<vmem>>, vector<16x64xf32>
    %c17_90 = arith.constant 17 : index
    %c0_91 = arith.constant 0 : index
    %154 = vector.load %arg5[%c17_90, %c0_91] : memref<96x128xf32, #tpu.memory_space<vmem>>, vector<16x64xf32>
    %cst_92 = arith.constant 0.000000e+00 : f32
    %155 = vector.shape_cast %147 : vector<16x1xi1> to vector<16x1xi1>
    %156 = vector.broadcast %155 : vector<16x1xi1> to vector<16x64xi1>
    %157 = vector.broadcast %cst_92 : f32 to vector<16x64xf32>
    %158 = arith.select %156, %157, %153 : vector<16x64xi1>, vector<16x64xf32>
    %cst_93 = arith.constant 0.000000e+00 : f32
    %159 = vector.shape_cast %151 : vector<16x1xi1> to vector<16x1xi1>
    %160 = vector.broadcast %159 : vector<16x1xi1> to vector<16x64xi1>
    %161 = vector.broadcast %cst_93 : f32 to vector<16x64xf32>
    %162 = arith.select %160, %161, %154 : vector<16x64xi1>, vector<16x64xf32>
    %c1056 = arith.constant 1056 : index
    %c0_94 = arith.constant 0 : index
    %163 = vector.load %arg2[%c1056, %c0_94] : memref<2960x256xbf16, #tpu.memory_space<vmem>>, vector<64x64xbf16>
    %c1120 = arith.constant 1120 : index
    %c0_95 = arith.constant 0 : index
    %164 = vector.load %arg2[%c1120, %c0_95] : memref<2960x256xbf16, #tpu.memory_space<vmem>>, vector<64x64xbf16>
    %c1184 = arith.constant 1184 : index
    %c0_96 = arith.constant 0 : index
    %165 = vector.load %arg2[%c1184, %c0_96] : memref<2960x256xbf16, #tpu.memory_space<vmem>>, vector<64x64xbf16>
    %166 = arith.truncf %158 : vector<16x64xf32> to vector<16x64xbf16>
    %cst_97 = arith.constant dense<0.000000e+00> : vector<16x64xf32>
    %167 = tpu.matmul %166, %163, %cst_97 {dimension_numbers = #tpu.dot_dimension_numbers<[1], [0], [0], [1], [0, 0, 1, 1], [], []>} : vector<16x64xbf16>, vector<64x64xbf16>, vector<16x64xf32> -> vector<16x64xf32>
    %168 = arith.truncf %142 : vector<16x64xf32> to vector<16x64xbf16>
    %cst_98 = arith.constant dense<0.000000e+00> : vector<16x64xf32>
    %169 = tpu.matmul %168, %164, %cst_98 {dimension_numbers = #tpu.dot_dimension_numbers<[1], [0], [0], [1], [0, 0, 1, 1], [], []>} : vector<16x64xbf16>, vector<64x64xbf16>, vector<16x64xf32> -> vector<16x64xf32>
    %170 = arith.addf %167, %169 : vector<16x64xf32>
    %171 = arith.truncf %162 : vector<16x64xf32> to vector<16x64xbf16>
    %cst_99 = arith.constant dense<0.000000e+00> : vector<16x64xf32>
    %172 = tpu.matmul %171, %165, %cst_99 {dimension_numbers = #tpu.dot_dimension_numbers<[1], [0], [0], [1], [0, 0, 1, 1], [], []>} : vector<16x64xbf16>, vector<64x64xbf16>, vector<16x64xf32> -> vector<16x64xf32>
    %173 = arith.addf %170, %172 : vector<16x64xf32>
    %c4 = arith.constant 4 : index
    %c0_100 = arith.constant 0 : index
    %174 = vector.load %arg3[%c4, %c0_100] : memref<18x256xf32, #tpu.memory_space<vmem>>, vector<1x64xf32>
    %175 = vector.broadcast %174 : vector<1x64xf32> to vector<16x64xf32>
    %176 = arith.addf %173, %175 : vector<16x64xf32>
    %cst_101 = arith.constant 0.000000e+00 : f32
    %177 = vector.broadcast %cst_101 : f32 to vector<16x64xf32>
    %178 = arith.maximumf %176, %177 : vector<16x64xf32>
    %c16_102 = arith.constant 16 : index
    %c0_103 = arith.constant 0 : index
    %179 = vector.load %arg5[%c16_102, %c0_103] : memref<96x128xf32, #tpu.memory_space<vmem>>, vector<16x64xf32>
    tpu.vector_store %arg5[%c16_102, %c0_103], %178 {strides = array<i32>} : memref<96x128xf32, #tpu.memory_space<vmem>>, vector<16x64xf32>,
    %c15_104 = arith.constant 15 : index
    %c0_105 = arith.constant 0 : index
    %180 = vector.load %arg5[%c15_104, %c0_105] : memref<96x128xf32, #tpu.memory_space<vmem>>, vector<16x64xf32>
    %c17_106 = arith.constant 17 : index
    %c0_107 = arith.constant 0 : index
    %181 = vector.load %arg5[%c17_106, %c0_107] : memref<96x128xf32, #tpu.memory_space<vmem>>, vector<16x64xf32>
    %cst_108 = arith.constant 0.000000e+00 : f32
    %182 = vector.shape_cast %147 : vector<16x1xi1> to vector<16x1xi1>
    %183 = vector.broadcast %182 : vector<16x1xi1> to vector<16x64xi1>
    %184 = vector.broadcast %cst_108 : f32 to vector<16x64xf32>
    %185 = arith.select %183, %184, %180 : vector<16x64xi1>, vector<16x64xf32>
    %cst_109 = arith.constant 0.000000e+00 : f32
    %186 = vector.shape_cast %151 : vector<16x1xi1> to vector<16x1xi1>
    %187 = vector.broadcast %186 : vector<16x1xi1> to vector<16x64xi1>
    %188 = vector.broadcast %cst_109 : f32 to vector<16x64xf32>
    %189 = arith.select %187, %188, %181 : vector<16x64xi1>, vector<16x64xf32>
    %c1248 = arith.constant 1248 : index
    %c0_110 = arith.constant 0 : index
    %190 = vector.load %arg2[%c1248, %c0_110] : memref<2960x256xbf16, #tpu.memory_space<vmem>>, vector<64x64xbf16>
    %c1312 = arith.constant 1312 : index
    %c0_111 = arith.constant 0 : index
    %191 = vector.load %arg2[%c1312, %c0_111] : memref<2960x256xbf16, #tpu.memory_space<vmem>>, vector<64x64xbf16>
    %c1376 = arith.constant 1376 : index
    %c0_112 = arith.constant 0 : index
    %192 = vector.load %arg2[%c1376, %c0_112] : memref<2960x256xbf16, #tpu.memory_space<vmem>>, vector<64x64xbf16>
    %193 = arith.truncf %185 : vector<16x64xf32> to vector<16x64xbf16>
    %cst_113 = arith.constant dense<0.000000e+00> : vector<16x64xf32>
    %194 = tpu.matmul %193, %190, %cst_113 {dimension_numbers = #tpu.dot_dimension_numbers<[1], [0], [0], [1], [0, 0, 1, 1], [], []>} : vector<16x64xbf16>, vector<64x64xbf16>, vector<16x64xf32> -> vector<16x64xf32>
    %195 = arith.truncf %178 : vector<16x64xf32> to vector<16x64xbf16>
    %cst_114 = arith.constant dense<0.000000e+00> : vector<16x64xf32>
    %196 = tpu.matmul %195, %191, %cst_114 {dimension_numbers = #tpu.dot_dimension_numbers<[1], [0], [0], [1], [0, 0, 1, 1], [], []>} : vector<16x64xbf16>, vector<64x64xbf16>, vector<16x64xf32> -> vector<16x64xf32>
    %197 = arith.addf %194, %196 : vector<16x64xf32>
    %198 = arith.truncf %189 : vector<16x64xf32> to vector<16x64xbf16>
    %cst_115 = arith.constant dense<0.000000e+00> : vector<16x64xf32>
    %199 = tpu.matmul %198, %192, %cst_115 {dimension_numbers = #tpu.dot_dimension_numbers<[1], [0], [0], [1], [0, 0, 1, 1], [], []>} : vector<16x64xbf16>, vector<64x64xbf16>, vector<16x64xf32> -> vector<16x64xf32>
    %200 = arith.addf %197, %199 : vector<16x64xf32>
    %c5 = arith.constant 5 : index
    %c0_116 = arith.constant 0 : index
    %201 = vector.load %arg3[%c5, %c0_116] : memref<18x256xf32, #tpu.memory_space<vmem>>, vector<1x64xf32>
    %202 = vector.broadcast %201 : vector<1x64xf32> to vector<16x64xf32>
    %203 = arith.addf %200, %202 : vector<16x64xf32>
    %cst_117 = arith.constant 0.000000e+00 : f32
    %204 = vector.broadcast %cst_117 : f32 to vector<16x64xf32>
    %205 = arith.maximumf %203, %204 : vector<16x64xf32>
    %c16_118 = arith.constant 16 : index
    %c0_119 = arith.constant 0 : index
    %206 = vector.load %arg5[%c16_118, %c0_119] : memref<96x128xf32, #tpu.memory_space<vmem>>, vector<16x64xf32>
    tpu.vector_store %arg5[%c16_118, %c0_119], %205 {strides = array<i32>} : memref<96x128xf32, #tpu.memory_space<vmem>>, vector<16x64xf32>,
    %c15_120 = arith.constant 15 : index
    %c0_121 = arith.constant 0 : index
    %207 = vector.load %arg5[%c15_120, %c0_121] : memref<96x128xf32, #tpu.memory_space<vmem>>, vector<16x64xf32>
    %c17_122 = arith.constant 17 : index
    %c0_123 = arith.constant 0 : index
    %208 = vector.load %arg5[%c17_122, %c0_123] : memref<96x128xf32, #tpu.memory_space<vmem>>, vector<16x64xf32>
    %cst_124 = arith.constant 0.000000e+00 : f32
    %209 = vector.shape_cast %147 : vector<16x1xi1> to vector<16x1xi1>
    %210 = vector.broadcast %209 : vector<16x1xi1> to vector<16x64xi1>
    %211 = vector.broadcast %cst_124 : f32 to vector<16x64xf32>
    %212 = arith.select %210, %211, %207 : vector<16x64xi1>, vector<16x64xf32>
    %cst_125 = arith.constant 0.000000e+00 : f32
    %213 = vector.shape_cast %151 : vector<16x1xi1> to vector<16x1xi1>
    %214 = vector.broadcast %213 : vector<16x1xi1> to vector<16x64xi1>
    %215 = vector.broadcast %cst_125 : f32 to vector<16x64xf32>
    %216 = arith.select %214, %215, %208 : vector<16x64xi1>, vector<16x64xf32>
    %c1440 = arith.constant 1440 : index
    %c0_126 = arith.constant 0 : index
    %217 = vector.load %arg2[%c1440, %c0_126] : memref<2960x256xbf16, #tpu.memory_space<vmem>>, vector<64x64xbf16>
    %c1504 = arith.constant 1504 : index
    %c0_127 = arith.constant 0 : index
    %218 = vector.load %arg2[%c1504, %c0_127] : memref<2960x256xbf16, #tpu.memory_space<vmem>>, vector<64x64xbf16>
    %c1568 = arith.constant 1568 : index
    %c0_128 = arith.constant 0 : index
    %219 = vector.load %arg2[%c1568, %c0_128] : memref<2960x256xbf16, #tpu.memory_space<vmem>>, vector<64x64xbf16>
    %220 = arith.truncf %212 : vector<16x64xf32> to vector<16x64xbf16>
    %cst_129 = arith.constant dense<0.000000e+00> : vector<16x64xf32>
    %221 = tpu.matmul %220, %217, %cst_129 {dimension_numbers = #tpu.dot_dimension_numbers<[1], [0], [0], [1], [0, 0, 1, 1], [], []>} : vector<16x64xbf16>, vector<64x64xbf16>, vector<16x64xf32> -> vector<16x64xf32>
    %222 = arith.truncf %205 : vector<16x64xf32> to vector<16x64xbf16>
    %cst_130 = arith.constant dense<0.000000e+00> : vector<16x64xf32>
    %223 = tpu.matmul %222, %218, %cst_130 {dimension_numbers = #tpu.dot_dimension_numbers<[1], [0], [0], [1], [0, 0, 1, 1], [], []>} : vector<16x64xbf16>, vector<64x64xbf16>, vector<16x64xf32> -> vector<16x64xf32>
    %224 = arith.addf %221, %223 : vector<16x64xf32>
    %225 = arith.truncf %216 : vector<16x64xf32> to vector<16x64xbf16>
    %cst_131 = arith.constant dense<0.000000e+00> : vector<16x64xf32>
    %226 = tpu.matmul %225, %219, %cst_131 {dimension_numbers = #tpu.dot_dimension_numbers<[1], [0], [0], [1], [0, 0, 1, 1], [], []>} : vector<16x64xbf16>, vector<64x64xbf16>, vector<16x64xf32> -> vector<16x64xf32>
    %227 = arith.addf %224, %226 : vector<16x64xf32>
    %c6 = arith.constant 6 : index
    %c0_132 = arith.constant 0 : index
    %228 = vector.load %arg3[%c6, %c0_132] : memref<18x256xf32, #tpu.memory_space<vmem>>, vector<1x64xf32>
    %229 = vector.broadcast %228 : vector<1x64xf32> to vector<16x64xf32>
    %230 = arith.addf %227, %229 : vector<16x64xf32>
    %cst_133 = arith.constant 0.000000e+00 : f32
    %231 = vector.broadcast %cst_133 : f32 to vector<16x64xf32>
    %232 = arith.maximumf %230, %231 : vector<16x64xf32>
    %c16_134 = arith.constant 16 : index
    %c0_135 = arith.constant 0 : index
    %233 = vector.load %arg5[%c16_134, %c0_135] : memref<96x128xf32, #tpu.memory_space<vmem>>, vector<16x64xf32>
    tpu.vector_store %arg5[%c16_134, %c0_135], %232 {strides = array<i32>} : memref<96x128xf32, #tpu.memory_space<vmem>>, vector<16x64xf32>,
    %c15_136 = arith.constant 15 : index
    %c0_137 = arith.constant 0 : index
    %234 = vector.load %arg5[%c15_136, %c0_137] : memref<96x128xf32, #tpu.memory_space<vmem>>, vector<16x64xf32>
    %c17_138 = arith.constant 17 : index
    %c0_139 = arith.constant 0 : index
    %235 = vector.load %arg5[%c17_138, %c0_139] : memref<96x128xf32, #tpu.memory_space<vmem>>, vector<16x64xf32>
    %cst_140 = arith.constant 0.000000e+00 : f32
    %236 = vector.shape_cast %147 : vector<16x1xi1> to vector<16x1xi1>
    %237 = vector.broadcast %236 : vector<16x1xi1> to vector<16x64xi1>
    %238 = vector.broadcast %cst_140 : f32 to vector<16x64xf32>
    %239 = arith.select %237, %238, %234 : vector<16x64xi1>, vector<16x64xf32>
    %cst_141 = arith.constant 0.000000e+00 : f32
    %240 = vector.shape_cast %151 : vector<16x1xi1> to vector<16x1xi1>
    %241 = vector.broadcast %240 : vector<16x1xi1> to vector<16x64xi1>
    %242 = vector.broadcast %cst_141 : f32 to vector<16x64xf32>
    %243 = arith.select %241, %242, %235 : vector<16x64xi1>, vector<16x64xf32>
    %c1632 = arith.constant 1632 : index
    %c0_142 = arith.constant 0 : index
    %244 = vector.load %arg2[%c1632, %c0_142] : memref<2960x256xbf16, #tpu.memory_space<vmem>>, vector<64x160xbf16>
    %c1696 = arith.constant 1696 : index
    %c0_143 = arith.constant 0 : index
    %245 = vector.load %arg2[%c1696, %c0_143] : memref<2960x256xbf16, #tpu.memory_space<vmem>>, vector<64x160xbf16>
    %c1760 = arith.constant 1760 : index
    %c0_144 = arith.constant 0 : index
    %246 = vector.load %arg2[%c1760, %c0_144] : memref<2960x256xbf16, #tpu.memory_space<vmem>>, vector<64x160xbf16>
    %247 = arith.truncf %239 : vector<16x64xf32> to vector<16x64xbf16>
    %cst_145 = arith.constant dense<0.000000e+00> : vector<16x160xf32>
    %248 = tpu.matmul %247, %244, %cst_145 {dimension_numbers = #tpu.dot_dimension_numbers<[1], [0], [0], [1], [0, 0, 1, 1], [], []>} : vector<16x64xbf16>, vector<64x160xbf16>, vector<16x160xf32> -> vector<16x160xf32>
    %249 = arith.truncf %232 : vector<16x64xf32> to vector<16x64xbf16>
    %cst_146 = arith.constant dense<0.000000e+00> : vector<16x160xf32>
    %250 = tpu.matmul %249, %245, %cst_146 {dimension_numbers = #tpu.dot_dimension_numbers<[1], [0], [0], [1], [0, 0, 1, 1], [], []>} : vector<16x64xbf16>, vector<64x160xbf16>, vector<16x160xf32> -> vector<16x160xf32>
    %251 = arith.addf %248, %250 : vector<16x160xf32>
    %252 = arith.truncf %243 : vector<16x64xf32> to vector<16x64xbf16>
    %cst_147 = arith.constant dense<0.000000e+00> : vector<16x160xf32>
    %253 = tpu.matmul %252, %246, %cst_147 {dimension_numbers = #tpu.dot_dimension_numbers<[1], [0], [0], [1], [0, 0, 1, 1], [], []>} : vector<16x64xbf16>, vector<64x160xbf16>, vector<16x160xf32> -> vector<16x160xf32>
    %254 = arith.addf %251, %253 : vector<16x160xf32>
    %c7 = arith.constant 7 : index
    %c0_148 = arith.constant 0 : index
    %255 = vector.load %arg3[%c7, %c0_148] : memref<18x256xf32, #tpu.memory_space<vmem>>, vector<1x160xf32>
    %256 = vector.broadcast %255 : vector<1x160xf32> to vector<16x160xf32>
    %257 = arith.addf %254, %256 : vector<16x160xf32>
    %cst_149 = arith.constant 0.000000e+00 : f32
    %258 = vector.broadcast %cst_149 : f32 to vector<16x160xf32>
    %259 = arith.maximumf %257, %258 : vector<16x160xf32>
    %260 = vector.extract_strided_slice %259 {offsets = [0, 0], sizes = [16, 32], strides = [1, 1]} : vector<16x160xf32> to vector<16x32xf32>
    %261 = vector.extract_strided_slice %259 {offsets = [0, 128], sizes = [16, 32], strides = [1, 1]} : vector<16x160xf32> to vector<16x32xf32>
    %262 = arith.maximumf %260, %261 : vector<16x32xf32>
    %c0_150 = arith.constant 0 : index
    %c0_151 = arith.constant 0 : index
    %263 = vector.load %arg6[%c0_150, %c0_151] : memref<64x64xf32, #tpu.memory_space<vmem>>, vector<16x32xf32>
    tpu.vector_store %arg6[%c0_150, %c0_151], %262 {strides = array<i32>} : memref<64x64xf32, #tpu.memory_space<vmem>>, vector<16x32xf32>,
    %c0_152 = arith.constant 0 : index
    %c0_153 = arith.constant 0 : index
    %264 = tpu.strided_load %arg6[%c0_152, %c0_153] {strides = array<i32: 2, 1>} : memref<64x64xf32, #tpu.memory_space<vmem>>, vector<8x32xf32>
    %c1_154 = arith.constant 1 : index
    %c0_155 = arith.constant 0 : index
    %265 = tpu.strided_load %arg6[%c1_154, %c0_155] {strides = array<i32: 2, 1>} : memref<64x64xf32, #tpu.memory_space<vmem>>, vector<8x32xf32>
    %266 = arith.maximumf %264, %265 : vector<8x32xf32>
    %267 = tpu.iota {dimensions = array<i32: 0>} : vector<8x1xi32>
    %c3_i32 = arith.constant 3 : i32
    %268 = vector.broadcast %c3_i32 : i32 to vector<8x1xi32>
    %269 = arith.andi %267, %268 : vector<8x1xi32>
    %c0_i32_156 = arith.constant 0 : i32
    %270 = vector.broadcast %c0_i32_156 : i32 to vector<8x1xi32>
    %271 = arith.cmpi eq, %269, %270 : vector<8x1xi32>
    %c3_i32_157 = arith.constant 3 : i32
    %272 = vector.broadcast %c3_i32_157 : i32 to vector<8x1xi32>
    %273 = arith.andi %267, %272 : vector<8x1xi32>
    %c3_i32_158 = arith.constant 3 : i32
    %274 = vector.broadcast %c3_i32_158 : i32 to vector<8x1xi32>
    %275 = arith.cmpi eq, %273, %274 : vector<8x1xi32>
    %c16_159 = arith.constant 16 : index
    %c0_160 = arith.constant 0 : index
    %276 = vector.load %arg5[%c16_159, %c0_160] : memref<96x128xf32, #tpu.memory_space<vmem>>, vector<8x32xf32>
    tpu.vector_store %arg5[%c16_159, %c0_160], %266 {strides = array<i32>} : memref<96x128xf32, #tpu.memory_space<vmem>>, vector<8x32xf32>,
    %c15_161 = arith.constant 15 : index
    %c0_162 = arith.constant 0 : index
    %277 = vector.load %arg5[%c15_161, %c0_162] : memref<96x128xf32, #tpu.memory_space<vmem>>, vector<8x32xf32>
    %c17_163 = arith.constant 17 : index
    %c0_164 = arith.constant 0 : index
    %278 = vector.load %arg5[%c17_163, %c0_164] : memref<96x128xf32, #tpu.memory_space<vmem>>, vector<8x32xf32>
    %cst_165 = arith.constant 0.000000e+00 : f32
    %279 = vector.shape_cast %271 : vector<8x1xi1> to vector<8x1xi1>
    %280 = vector.broadcast %279 : vector<8x1xi1> to vector<8x32xi1>
    %281 = vector.broadcast %cst_165 : f32 to vector<8x32xf32>
    %282 = arith.select %280, %281, %277 : vector<8x32xi1>, vector<8x32xf32>
    %cst_166 = arith.constant 0.000000e+00 : f32
    %283 = vector.shape_cast %275 : vector<8x1xi1> to vector<8x1xi1>
    %284 = vector.broadcast %283 : vector<8x1xi1> to vector<8x32xi1>
    %285 = vector.broadcast %cst_166 : f32 to vector<8x32xf32>
    %286 = arith.select %284, %285, %278 : vector<8x32xi1>, vector<8x32xf32>
    %c1824 = arith.constant 1824 : index
    %c0_167 = arith.constant 0 : index
    %287 = vector.load %arg2[%c1824, %c0_167] : memref<2960x256xbf16, #tpu.memory_space<vmem>>, vector<32x64xbf16>
    %c1856 = arith.constant 1856 : index
    %c0_168 = arith.constant 0 : index
    %288 = vector.load %arg2[%c1856, %c0_168] : memref<2960x256xbf16, #tpu.memory_space<vmem>>, vector<32x64xbf16>
    %c1888 = arith.constant 1888 : index
    %c0_169 = arith.constant 0 : index
    %289 = vector.load %arg2[%c1888, %c0_169] : memref<2960x256xbf16, #tpu.memory_space<vmem>>, vector<32x64xbf16>
    %290 = arith.truncf %282 : vector<8x32xf32> to vector<8x32xbf16>
    %cst_170 = arith.constant dense<0.000000e+00> : vector<8x64xf32>
    %291 = tpu.matmul %290, %287, %cst_170 {dimension_numbers = #tpu.dot_dimension_numbers<[1], [0], [0], [1], [0, 0, 1, 1], [], []>} : vector<8x32xbf16>, vector<32x64xbf16>, vector<8x64xf32> -> vector<8x64xf32>
    %292 = arith.truncf %266 : vector<8x32xf32> to vector<8x32xbf16>
    %cst_171 = arith.constant dense<0.000000e+00> : vector<8x64xf32>
    %293 = tpu.matmul %292, %288, %cst_171 {dimension_numbers = #tpu.dot_dimension_numbers<[1], [0], [0], [1], [0, 0, 1, 1], [], []>} : vector<8x32xbf16>, vector<32x64xbf16>, vector<8x64xf32> -> vector<8x64xf32>
    %294 = arith.addf %291, %293 : vector<8x64xf32>
    %295 = arith.truncf %286 : vector<8x32xf32> to vector<8x32xbf16>
    %cst_172 = arith.constant dense<0.000000e+00> : vector<8x64xf32>
    %296 = tpu.matmul %295, %289, %cst_172 {dimension_numbers = #tpu.dot_dimension_numbers<[1], [0], [0], [1], [0, 0, 1, 1], [], []>} : vector<8x32xbf16>, vector<32x64xbf16>, vector<8x64xf32> -> vector<8x64xf32>
    %297 = arith.addf %294, %296 : vector<8x64xf32>
    %c8 = arith.constant 8 : index
    %c0_173 = arith.constant 0 : index
    %298 = vector.load %arg3[%c8, %c0_173] : memref<18x256xf32, #tpu.memory_space<vmem>>, vector<1x64xf32>
    %299 = vector.broadcast %298 : vector<1x64xf32> to vector<8x64xf32>
    %300 = arith.addf %297, %299 : vector<8x64xf32>
    %cst_174 = arith.constant 0.000000e+00 : f32
    %301 = vector.broadcast %cst_174 : f32 to vector<8x64xf32>
    %302 = arith.maximumf %300, %301 : vector<8x64xf32>
    %c16_175 = arith.constant 16 : index
    %c0_176 = arith.constant 0 : index
    %303 = vector.load %arg5[%c16_175, %c0_176] : memref<96x128xf32, #tpu.memory_space<vmem>>, vector<8x64xf32>
    tpu.vector_store %arg5[%c16_175, %c0_176], %302 {strides = array<i32>} : memref<96x128xf32, #tpu.memory_space<vmem>>, vector<8x64xf32>,
    %c15_177 = arith.constant 15 : index
    %c0_178 = arith.constant 0 : index
    %304 = vector.load %arg5[%c15_177, %c0_178] : memref<96x128xf32, #tpu.memory_space<vmem>>, vector<8x64xf32>
    %c17_179 = arith.constant 17 : index
    %c0_180 = arith.constant 0 : index
    %305 = vector.load %arg5[%c17_179, %c0_180] : memref<96x128xf32, #tpu.memory_space<vmem>>, vector<8x64xf32>
    %cst_181 = arith.constant 0.000000e+00 : f32
    %306 = vector.shape_cast %271 : vector<8x1xi1> to vector<8x1xi1>
    %307 = vector.broadcast %306 : vector<8x1xi1> to vector<8x64xi1>
    %308 = vector.broadcast %cst_181 : f32 to vector<8x64xf32>
    %309 = arith.select %307, %308, %304 : vector<8x64xi1>, vector<8x64xf32>
    %cst_182 = arith.constant 0.000000e+00 : f32
    %310 = vector.shape_cast %275 : vector<8x1xi1> to vector<8x1xi1>
    %311 = vector.broadcast %310 : vector<8x1xi1> to vector<8x64xi1>
    %312 = vector.broadcast %cst_182 : f32 to vector<8x64xf32>
    %313 = arith.select %311, %312, %305 : vector<8x64xi1>, vector<8x64xf32>
    %c1920 = arith.constant 1920 : index
    %c0_183 = arith.constant 0 : index
    %314 = vector.load %arg2[%c1920, %c0_183] : memref<2960x256xbf16, #tpu.memory_space<vmem>>, vector<64x64xbf16>
    %c1984 = arith.constant 1984 : index
    %c0_184 = arith.constant 0 : index
    %315 = vector.load %arg2[%c1984, %c0_184] : memref<2960x256xbf16, #tpu.memory_space<vmem>>, vector<64x64xbf16>
    %c2048 = arith.constant 2048 : index
    %c0_185 = arith.constant 0 : index
    %316 = vector.load %arg2[%c2048, %c0_185] : memref<2960x256xbf16, #tpu.memory_space<vmem>>, vector<64x64xbf16>
    %317 = arith.truncf %309 : vector<8x64xf32> to vector<8x64xbf16>
    %cst_186 = arith.constant dense<0.000000e+00> : vector<8x64xf32>
    %318 = tpu.matmul %317, %314, %cst_186 {dimension_numbers = #tpu.dot_dimension_numbers<[1], [0], [0], [1], [0, 0, 1, 1], [], []>} : vector<8x64xbf16>, vector<64x64xbf16>, vector<8x64xf32> -> vector<8x64xf32>
    %319 = arith.truncf %302 : vector<8x64xf32> to vector<8x64xbf16>
    %cst_187 = arith.constant dense<0.000000e+00> : vector<8x64xf32>
    %320 = tpu.matmul %319, %315, %cst_187 {dimension_numbers = #tpu.dot_dimension_numbers<[1], [0], [0], [1], [0, 0, 1, 1], [], []>} : vector<8x64xbf16>, vector<64x64xbf16>, vector<8x64xf32> -> vector<8x64xf32>
    %321 = arith.addf %318, %320 : vector<8x64xf32>
    %322 = arith.truncf %313 : vector<8x64xf32> to vector<8x64xbf16>
    %cst_188 = arith.constant dense<0.000000e+00> : vector<8x64xf32>
    %323 = tpu.matmul %322, %316, %cst_188 {dimension_numbers = #tpu.dot_dimension_numbers<[1], [0], [0], [1], [0, 0, 1, 1], [], []>} : vector<8x64xbf16>, vector<64x64xbf16>, vector<8x64xf32> -> vector<8x64xf32>
    %324 = arith.addf %321, %323 : vector<8x64xf32>
    %c9 = arith.constant 9 : index
    %c0_189 = arith.constant 0 : index
    %325 = vector.load %arg3[%c9, %c0_189] : memref<18x256xf32, #tpu.memory_space<vmem>>, vector<1x64xf32>
    %326 = vector.broadcast %325 : vector<1x64xf32> to vector<8x64xf32>
    %327 = arith.addf %324, %326 : vector<8x64xf32>
    %cst_190 = arith.constant 0.000000e+00 : f32
    %328 = vector.broadcast %cst_190 : f32 to vector<8x64xf32>
    %329 = arith.maximumf %327, %328 : vector<8x64xf32>
    %c16_191 = arith.constant 16 : index
    %c0_192 = arith.constant 0 : index
    %330 = vector.load %arg5[%c16_191, %c0_192] : memref<96x128xf32, #tpu.memory_space<vmem>>, vector<8x64xf32>
    tpu.vector_store %arg5[%c16_191, %c0_192], %329 {strides = array<i32>} : memref<96x128xf32, #tpu.memory_space<vmem>>, vector<8x64xf32>,
    %c15_193 = arith.constant 15 : index
    %c0_194 = arith.constant 0 : index
    %331 = vector.load %arg5[%c15_193, %c0_194] : memref<96x128xf32, #tpu.memory_space<vmem>>, vector<8x64xf32>
    %c17_195 = arith.constant 17 : index
    %c0_196 = arith.constant 0 : index
    %332 = vector.load %arg5[%c17_195, %c0_196] : memref<96x128xf32, #tpu.memory_space<vmem>>, vector<8x64xf32>
    %cst_197 = arith.constant 0.000000e+00 : f32
    %333 = vector.shape_cast %271 : vector<8x1xi1> to vector<8x1xi1>
    %334 = vector.broadcast %333 : vector<8x1xi1> to vector<8x64xi1>
    %335 = vector.broadcast %cst_197 : f32 to vector<8x64xf32>
    %336 = arith.select %334, %335, %331 : vector<8x64xi1>, vector<8x64xf32>
    %cst_198 = arith.constant 0.000000e+00 : f32
    %337 = vector.shape_cast %275 : vector<8x1xi1> to vector<8x1xi1>
    %338 = vector.broadcast %337 : vector<8x1xi1> to vector<8x64xi1>
    %339 = vector.broadcast %cst_198 : f32 to vector<8x64xf32>
    %340 = arith.select %338, %339, %332 : vector<8x64xi1>, vector<8x64xf32>
    %c2112 = arith.constant 2112 : index
    %c0_199 = arith.constant 0 : index
    %341 = vector.load %arg2[%c2112, %c0_199] : memref<2960x256xbf16, #tpu.memory_space<vmem>>, vector<64x64xbf16>
    %c2176 = arith.constant 2176 : index
    %c0_200 = arith.constant 0 : index
    %342 = vector.load %arg2[%c2176, %c0_200] : memref<2960x256xbf16, #tpu.memory_space<vmem>>, vector<64x64xbf16>
    %c2240 = arith.constant 2240 : index
    %c0_201 = arith.constant 0 : index
    %343 = vector.load %arg2[%c2240, %c0_201] : memref<2960x256xbf16, #tpu.memory_space<vmem>>, vector<64x64xbf16>
    %344 = arith.truncf %336 : vector<8x64xf32> to vector<8x64xbf16>
    %cst_202 = arith.constant dense<0.000000e+00> : vector<8x64xf32>
    %345 = tpu.matmul %344, %341, %cst_202 {dimension_numbers = #tpu.dot_dimension_numbers<[1], [0], [0], [1], [0, 0, 1, 1], [], []>} : vector<8x64xbf16>, vector<64x64xbf16>, vector<8x64xf32> -> vector<8x64xf32>
    %346 = arith.truncf %329 : vector<8x64xf32> to vector<8x64xbf16>
    %cst_203 = arith.constant dense<0.000000e+00> : vector<8x64xf32>
    %347 = tpu.matmul %346, %342, %cst_203 {dimension_numbers = #tpu.dot_dimension_numbers<[1], [0], [0], [1], [0, 0, 1, 1], [], []>} : vector<8x64xbf16>, vector<64x64xbf16>, vector<8x64xf32> -> vector<8x64xf32>
    %348 = arith.addf %345, %347 : vector<8x64xf32>
    %349 = arith.truncf %340 : vector<8x64xf32> to vector<8x64xbf16>
    %cst_204 = arith.constant dense<0.000000e+00> : vector<8x64xf32>
    %350 = tpu.matmul %349, %343, %cst_204 {dimension_numbers = #tpu.dot_dimension_numbers<[1], [0], [0], [1], [0, 0, 1, 1], [], []>} : vector<8x64xbf16>, vector<64x64xbf16>, vector<8x64xf32> -> vector<8x64xf32>
    %351 = arith.addf %348, %350 : vector<8x64xf32>
    %c10 = arith.constant 10 : index
    %c0_205 = arith.constant 0 : index
    %352 = vector.load %arg3[%c10, %c0_205] : memref<18x256xf32, #tpu.memory_space<vmem>>, vector<1x64xf32>
    %353 = vector.broadcast %352 : vector<1x64xf32> to vector<8x64xf32>
    %354 = arith.addf %351, %353 : vector<8x64xf32>
    %cst_206 = arith.constant 0.000000e+00 : f32
    %355 = vector.broadcast %cst_206 : f32 to vector<8x64xf32>
    %356 = arith.maximumf %354, %355 : vector<8x64xf32>
    %c16_207 = arith.constant 16 : index
    %c0_208 = arith.constant 0 : index
    %357 = vector.load %arg5[%c16_207, %c0_208] : memref<96x128xf32, #tpu.memory_space<vmem>>, vector<8x64xf32>
    tpu.vector_store %arg5[%c16_207, %c0_208], %356 {strides = array<i32>} : memref<96x128xf32, #tpu.memory_space<vmem>>, vector<8x64xf32>,
    %c15_209 = arith.constant 15 : index
    %c0_210 = arith.constant 0 : index
    %358 = vector.load %arg5[%c15_209, %c0_210] : memref<96x128xf32, #tpu.memory_space<vmem>>, vector<8x64xf32>
    %c17_211 = arith.constant 17 : index
    %c0_212 = arith.constant 0 : index
    %359 = vector.load %arg5[%c17_211, %c0_212] : memref<96x128xf32, #tpu.memory_space<vmem>>, vector<8x64xf32>
    %cst_213 = arith.constant 0.000000e+00 : f32
    %360 = vector.shape_cast %271 : vector<8x1xi1> to vector<8x1xi1>
    %361 = vector.broadcast %360 : vector<8x1xi1> to vector<8x64xi1>
    %362 = vector.broadcast %cst_213 : f32 to vector<8x64xf32>
    %363 = arith.select %361, %362, %358 : vector<8x64xi1>, vector<8x64xf32>
    %cst_214 = arith.constant 0.000000e+00 : f32
    %364 = vector.shape_cast %275 : vector<8x1xi1> to vector<8x1xi1>
    %365 = vector.broadcast %364 : vector<8x1xi1> to vector<8x64xi1>
    %366 = vector.broadcast %cst_214 : f32 to vector<8x64xf32>
    %367 = arith.select %365, %366, %359 : vector<8x64xi1>, vector<8x64xf32>
    %c2304 = arith.constant 2304 : index
    %c0_215 = arith.constant 0 : index
    %368 = vector.load %arg2[%c2304, %c0_215] : memref<2960x256xbf16, #tpu.memory_space<vmem>>, vector<64x160xbf16>
    %c2368 = arith.constant 2368 : index
    %c0_216 = arith.constant 0 : index
    %369 = vector.load %arg2[%c2368, %c0_216] : memref<2960x256xbf16, #tpu.memory_space<vmem>>, vector<64x160xbf16>
    %c2432 = arith.constant 2432 : index
    %c0_217 = arith.constant 0 : index
    %370 = vector.load %arg2[%c2432, %c0_217] : memref<2960x256xbf16, #tpu.memory_space<vmem>>, vector<64x160xbf16>
    %371 = arith.truncf %363 : vector<8x64xf32> to vector<8x64xbf16>
    %cst_218 = arith.constant dense<0.000000e+00> : vector<8x160xf32>
    %372 = tpu.matmul %371, %368, %cst_218 {dimension_numbers = #tpu.dot_dimension_numbers<[1], [0], [0], [1], [0, 0, 1, 1], [], []>} : vector<8x64xbf16>, vector<64x160xbf16>, vector<8x160xf32> -> vector<8x160xf32>
    %373 = arith.truncf %356 : vector<8x64xf32> to vector<8x64xbf16>
    %cst_219 = arith.constant dense<0.000000e+00> : vector<8x160xf32>
    %374 = tpu.matmul %373, %369, %cst_219 {dimension_numbers = #tpu.dot_dimension_numbers<[1], [0], [0], [1], [0, 0, 1, 1], [], []>} : vector<8x64xbf16>, vector<64x160xbf16>, vector<8x160xf32> -> vector<8x160xf32>
    %375 = arith.addf %372, %374 : vector<8x160xf32>
    %376 = arith.truncf %367 : vector<8x64xf32> to vector<8x64xbf16>
    %cst_220 = arith.constant dense<0.000000e+00> : vector<8x160xf32>
    %377 = tpu.matmul %376, %370, %cst_220 {dimension_numbers = #tpu.dot_dimension_numbers<[1], [0], [0], [1], [0, 0, 1, 1], [], []>} : vector<8x64xbf16>, vector<64x160xbf16>, vector<8x160xf32> -> vector<8x160xf32>
    %378 = arith.addf %375, %377 : vector<8x160xf32>
    %c11 = arith.constant 11 : index
    %c0_221 = arith.constant 0 : index
    %379 = vector.load %arg3[%c11, %c0_221] : memref<18x256xf32, #tpu.memory_space<vmem>>, vector<1x160xf32>
    %380 = vector.broadcast %379 : vector<1x160xf32> to vector<8x160xf32>
    %381 = arith.addf %378, %380 : vector<8x160xf32>
    %cst_222 = arith.constant 0.000000e+00 : f32
    %382 = vector.broadcast %cst_222 : f32 to vector<8x160xf32>
    %383 = arith.maximumf %381, %382 : vector<8x160xf32>
    %384 = vector.extract_strided_slice %383 {offsets = [0, 0], sizes = [8, 32], strides = [1, 1]} : vector<8x160xf32> to vector<8x32xf32>
    %385 = vector.extract_strided_slice %383 {offsets = [0, 128], sizes = [8, 32], strides = [1, 1]} : vector<8x160xf32> to vector<8x32xf32>
    %386 = arith.maximumf %384, %385 : vector<8x32xf32>
    %c0_223 = arith.constant 0 : index
    %c0_224 = arith.constant 0 : index
    %387 = vector.load %arg6[%c0_223, %c0_224] : memref<64x64xf32, #tpu.memory_space<vmem>>, vector<8x32xf32>
    tpu.vector_store %arg6[%c0_223, %c0_224], %386 {strides = array<i32>} : memref<64x64xf32, #tpu.memory_space<vmem>>, vector<8x32xf32>,
    %c0_225 = arith.constant 0 : index
    %c0_226 = arith.constant 0 : index
    %388 = tpu.strided_load %arg6[%c0_225, %c0_226] {strides = array<i32: 2, 1>} : memref<64x64xf32, #tpu.memory_space<vmem>>, vector<4x32xf32>
    %c1_227 = arith.constant 1 : index
    %c0_228 = arith.constant 0 : index
    %389 = tpu.strided_load %arg6[%c1_227, %c0_228] {strides = array<i32: 2, 1>} : memref<64x64xf32, #tpu.memory_space<vmem>>, vector<4x32xf32>
    %390 = arith.maximumf %388, %389 : vector<4x32xf32>
    %391 = tpu.iota {dimensions = array<i32: 0>} : vector<4x1xi32>
    %c1_i32 = arith.constant 1 : i32
    %392 = vector.broadcast %c1_i32 : i32 to vector<4x1xi32>
    %393 = arith.andi %391, %392 : vector<4x1xi32>
    %c0_i32_229 = arith.constant 0 : i32
    %394 = vector.broadcast %c0_i32_229 : i32 to vector<4x1xi32>
    %395 = arith.cmpi eq, %393, %394 : vector<4x1xi32>
    %c1_i32_230 = arith.constant 1 : i32
    %396 = vector.broadcast %c1_i32_230 : i32 to vector<4x1xi32>
    %397 = arith.andi %391, %396 : vector<4x1xi32>
    %c1_i32_231 = arith.constant 1 : i32
    %398 = vector.broadcast %c1_i32_231 : i32 to vector<4x1xi32>
    %399 = arith.cmpi eq, %397, %398 : vector<4x1xi32>
    %c16_232 = arith.constant 16 : index
    %c0_233 = arith.constant 0 : index
    %400 = vector.load %arg5[%c16_232, %c0_233] : memref<96x128xf32, #tpu.memory_space<vmem>>, vector<4x32xf32>
    tpu.vector_store %arg5[%c16_232, %c0_233], %390 {strides = array<i32>} : memref<96x128xf32, #tpu.memory_space<vmem>>, vector<4x32xf32>,
    %c15_234 = arith.constant 15 : index
    %c0_235 = arith.constant 0 : index
    %401 = vector.load %arg5[%c15_234, %c0_235] : memref<96x128xf32, #tpu.memory_space<vmem>>, vector<4x32xf32>
    %c17_236 = arith.constant 17 : index
    %c0_237 = arith.constant 0 : index
    %402 = vector.load %arg5[%c17_236, %c0_237] : memref<96x128xf32, #tpu.memory_space<vmem>>, vector<4x32xf32>
    %cst_238 = arith.constant 0.000000e+00 : f32
    %403 = vector.shape_cast %395 : vector<4x1xi1> to vector<4x1xi1>
    %404 = vector.broadcast %403 : vector<4x1xi1> to vector<4x32xi1>
    %405 = vector.broadcast %cst_238 : f32 to vector<4x32xf32>
    %406 = arith.select %404, %405, %401 : vector<4x32xi1>, vector<4x32xf32>
    %cst_239 = arith.constant 0.000000e+00 : f32
    %407 = vector.shape_cast %399 : vector<4x1xi1> to vector<4x1xi1>
    %408 = vector.broadcast %407 : vector<4x1xi1> to vector<4x32xi1>
    %409 = vector.broadcast %cst_239 : f32 to vector<4x32xf32>
    %410 = arith.select %408, %409, %402 : vector<4x32xi1>, vector<4x32xf32>
    %c2496 = arith.constant 2496 : index
    %c0_240 = arith.constant 0 : index
    %411 = vector.load %arg2[%c2496, %c0_240] : memref<2960x256xbf16, #tpu.memory_space<vmem>>, vector<32x32xbf16>
    %c2528 = arith.constant 2528 : index
    %c0_241 = arith.constant 0 : index
    %412 = vector.load %arg2[%c2528, %c0_241] : memref<2960x256xbf16, #tpu.memory_space<vmem>>, vector<32x32xbf16>
    %c2560 = arith.constant 2560 : index
    %c0_242 = arith.constant 0 : index
    %413 = vector.load %arg2[%c2560, %c0_242] : memref<2960x256xbf16, #tpu.memory_space<vmem>>, vector<32x32xbf16>
    %414 = arith.truncf %406 : vector<4x32xf32> to vector<4x32xbf16>
    %cst_243 = arith.constant dense<0.000000e+00> : vector<4x32xf32>
    %415 = tpu.matmul %414, %411, %cst_243 {dimension_numbers = #tpu.dot_dimension_numbers<[1], [0], [0], [1], [0, 0, 1, 1], [], []>} : vector<4x32xbf16>, vector<32x32xbf16>, vector<4x32xf32> -> vector<4x32xf32>
    %416 = arith.truncf %390 : vector<4x32xf32> to vector<4x32xbf16>
    %cst_244 = arith.constant dense<0.000000e+00> : vector<4x32xf32>
    %417 = tpu.matmul %416, %412, %cst_244 {dimension_numbers = #tpu.dot_dimension_numbers<[1], [0], [0], [1], [0, 0, 1, 1], [], []>} : vector<4x32xbf16>, vector<32x32xbf16>, vector<4x32xf32> -> vector<4x32xf32>
    %418 = arith.addf %415, %417 : vector<4x32xf32>
    %419 = arith.truncf %410 : vector<4x32xf32> to vector<4x32xbf16>
    %cst_245 = arith.constant dense<0.000000e+00> : vector<4x32xf32>
    %420 = tpu.matmul %419, %413, %cst_245 {dimension_numbers = #tpu.dot_dimension_numbers<[1], [0], [0], [1], [0, 0, 1, 1], [], []>} : vector<4x32xbf16>, vector<32x32xbf16>, vector<4x32xf32> -> vector<4x32xf32>
    %421 = arith.addf %418, %420 : vector<4x32xf32>
    %c12 = arith.constant 12 : index
    %c0_246 = arith.constant 0 : index
    %422 = vector.load %arg3[%c12, %c0_246] : memref<18x256xf32, #tpu.memory_space<vmem>>, vector<1x32xf32>
    %423 = vector.broadcast %422 : vector<1x32xf32> to vector<4x32xf32>
    %424 = arith.addf %421, %423 : vector<4x32xf32>
    %cst_247 = arith.constant 0.000000e+00 : f32
    %425 = vector.broadcast %cst_247 : f32 to vector<4x32xf32>
    %426 = arith.maximumf %424, %425 : vector<4x32xf32>
    %c16_248 = arith.constant 16 : index
    %c0_249 = arith.constant 0 : index
    %427 = vector.load %arg5[%c16_248, %c0_249] : memref<96x128xf32, #tpu.memory_space<vmem>>, vector<4x32xf32>
    tpu.vector_store %arg5[%c16_248, %c0_249], %426 {strides = array<i32>} : memref<96x128xf32, #tpu.memory_space<vmem>>, vector<4x32xf32>,
    %c15_250 = arith.constant 15 : index
    %c0_251 = arith.constant 0 : index
    %428 = vector.load %arg5[%c15_250, %c0_251] : memref<96x128xf32, #tpu.memory_space<vmem>>, vector<4x32xf32>
    %c17_252 = arith.constant 17 : index
    %c0_253 = arith.constant 0 : index
    %429 = vector.load %arg5[%c17_252, %c0_253] : memref<96x128xf32, #tpu.memory_space<vmem>>, vector<4x32xf32>
    %cst_254 = arith.constant 0.000000e+00 : f32
    %430 = vector.shape_cast %395 : vector<4x1xi1> to vector<4x1xi1>
    %431 = vector.broadcast %430 : vector<4x1xi1> to vector<4x32xi1>
    %432 = vector.broadcast %cst_254 : f32 to vector<4x32xf32>
    %433 = arith.select %431, %432, %428 : vector<4x32xi1>, vector<4x32xf32>
    %cst_255 = arith.constant 0.000000e+00 : f32
    %434 = vector.shape_cast %399 : vector<4x1xi1> to vector<4x1xi1>
    %435 = vector.broadcast %434 : vector<4x1xi1> to vector<4x32xi1>
    %436 = vector.broadcast %cst_255 : f32 to vector<4x32xf32>
    %437 = arith.select %435, %436, %429 : vector<4x32xi1>, vector<4x32xf32>
    %c2592 = arith.constant 2592 : index
    %c0_256 = arith.constant 0 : index
    %438 = vector.load %arg2[%c2592, %c0_256] : memref<2960x256xbf16, #tpu.memory_space<vmem>>, vector<32x32xbf16>
    %c2624 = arith.constant 2624 : index
    %c0_257 = arith.constant 0 : index
    %439 = vector.load %arg2[%c2624, %c0_257] : memref<2960x256xbf16, #tpu.memory_space<vmem>>, vector<32x32xbf16>
    %c2656 = arith.constant 2656 : index
    %c0_258 = arith.constant 0 : index
    %440 = vector.load %arg2[%c2656, %c0_258] : memref<2960x256xbf16, #tpu.memory_space<vmem>>, vector<32x32xbf16>
    %441 = arith.truncf %433 : vector<4x32xf32> to vector<4x32xbf16>
    %cst_259 = arith.constant dense<0.000000e+00> : vector<4x32xf32>
    %442 = tpu.matmul %441, %438, %cst_259 {dimension_numbers = #tpu.dot_dimension_numbers<[1], [0], [0], [1], [0, 0, 1, 1], [], []>} : vector<4x32xbf16>, vector<32x32xbf16>, vector<4x32xf32> -> vector<4x32xf32>
    %443 = arith.truncf %426 : vector<4x32xf32> to vector<4x32xbf16>
    %cst_260 = arith.constant dense<0.000000e+00> : vector<4x32xf32>
    %444 = tpu.matmul %443, %439, %cst_260 {dimension_numbers = #tpu.dot_dimension_numbers<[1], [0], [0], [1], [0, 0, 1, 1], [], []>} : vector<4x32xbf16>, vector<32x32xbf16>, vector<4x32xf32> -> vector<4x32xf32>
    %445 = arith.addf %442, %444 : vector<4x32xf32>
    %446 = arith.truncf %437 : vector<4x32xf32> to vector<4x32xbf16>
    %cst_261 = arith.constant dense<0.000000e+00> : vector<4x32xf32>
    %447 = tpu.matmul %446, %440, %cst_261 {dimension_numbers = #tpu.dot_dimension_numbers<[1], [0], [0], [1], [0, 0, 1, 1], [], []>} : vector<4x32xbf16>, vector<32x32xbf16>, vector<4x32xf32> -> vector<4x32xf32>
    %448 = arith.addf %445, %447 : vector<4x32xf32>
    %c13 = arith.constant 13 : index
    %c0_262 = arith.constant 0 : index
    %449 = vector.load %arg3[%c13, %c0_262] : memref<18x256xf32, #tpu.memory_space<vmem>>, vector<1x32xf32>
    %450 = vector.broadcast %449 : vector<1x32xf32> to vector<4x32xf32>
    %451 = arith.addf %448, %450 : vector<4x32xf32>
    %cst_263 = arith.constant 0.000000e+00 : f32
    %452 = vector.broadcast %cst_263 : f32 to vector<4x32xf32>
    %453 = arith.maximumf %451, %452 : vector<4x32xf32>
    %c16_264 = arith.constant 16 : index
    %c0_265 = arith.constant 0 : index
    %454 = vector.load %arg5[%c16_264, %c0_265] : memref<96x128xf32, #tpu.memory_space<vmem>>, vector<4x32xf32>
    tpu.vector_store %arg5[%c16_264, %c0_265], %453 {strides = array<i32>} : memref<96x128xf32, #tpu.memory_space<vmem>>, vector<4x32xf32>,
    %c15_266 = arith.constant 15 : index
    %c0_267 = arith.constant 0 : index
    %455 = vector.load %arg5[%c15_266, %c0_267] : memref<96x128xf32, #tpu.memory_space<vmem>>, vector<4x32xf32>
    %c17_268 = arith.constant 17 : index
    %c0_269 = arith.constant 0 : index
    %456 = vector.load %arg5[%c17_268, %c0_269] : memref<96x128xf32, #tpu.memory_space<vmem>>, vector<4x32xf32>
    %cst_270 = arith.constant 0.000000e+00 : f32
    %457 = vector.shape_cast %395 : vector<4x1xi1> to vector<4x1xi1>
    %458 = vector.broadcast %457 : vector<4x1xi1> to vector<4x32xi1>
    %459 = vector.broadcast %cst_270 : f32 to vector<4x32xf32>
    %460 = arith.select %458, %459, %455 : vector<4x32xi1>, vector<4x32xf32>
    %cst_271 = arith.constant 0.000000e+00 : f32
    %461 = vector.shape_cast %399 : vector<4x1xi1> to vector<4x1xi1>
    %462 = vector.broadcast %461 : vector<4x1xi1> to vector<4x32xi1>
    %463 = vector.broadcast %cst_271 : f32 to vector<4x32xf32>
    %464 = arith.select %462, %463, %456 : vector<4x32xi1>, vector<4x32xf32>
    %c2688 = arith.constant 2688 : index
    %c0_272 = arith.constant 0 : index
    %465 = vector.load %arg2[%c2688, %c0_272] : memref<2960x256xbf16, #tpu.memory_space<vmem>>, vector<32x32xbf16>
    %c2720 = arith.constant 2720 : index
    %c0_273 = arith.constant 0 : index
    %466 = vector.load %arg2[%c2720, %c0_273] : memref<2960x256xbf16, #tpu.memory_space<vmem>>, vector<32x32xbf16>
    %c2752 = arith.constant 2752 : index
    %c0_274 = arith.constant 0 : index
    %467 = vector.load %arg2[%c2752, %c0_274] : memref<2960x256xbf16, #tpu.memory_space<vmem>>, vector<32x32xbf16>
    %468 = arith.truncf %460 : vector<4x32xf32> to vector<4x32xbf16>
    %cst_275 = arith.constant dense<0.000000e+00> : vector<4x32xf32>
    %469 = tpu.matmul %468, %465, %cst_275 {dimension_numbers = #tpu.dot_dimension_numbers<[1], [0], [0], [1], [0, 0, 1, 1], [], []>} : vector<4x32xbf16>, vector<32x32xbf16>, vector<4x32xf32> -> vector<4x32xf32>
    %470 = arith.truncf %453 : vector<4x32xf32> to vector<4x32xbf16>
    %cst_276 = arith.constant dense<0.000000e+00> : vector<4x32xf32>
    %471 = tpu.matmul %470, %466, %cst_276 {dimension_numbers = #tpu.dot_dimension_numbers<[1], [0], [0], [1], [0, 0, 1, 1], [], []>} : vector<4x32xbf16>, vector<32x32xbf16>, vector<4x32xf32> -> vector<4x32xf32>
    %472 = arith.addf %469, %471 : vector<4x32xf32>
    %473 = arith.truncf %464 : vector<4x32xf32> to vector<4x32xbf16>
    %cst_277 = arith.constant dense<0.000000e+00> : vector<4x32xf32>
    %474 = tpu.matmul %473, %467, %cst_277 {dimension_numbers = #tpu.dot_dimension_numbers<[1], [0], [0], [1], [0, 0, 1, 1], [], []>} : vector<4x32xbf16>, vector<32x32xbf16>, vector<4x32xf32> -> vector<4x32xf32>
    %475 = arith.addf %472, %474 : vector<4x32xf32>
    %c14 = arith.constant 14 : index
    %c0_278 = arith.constant 0 : index
    %476 = vector.load %arg3[%c14, %c0_278] : memref<18x256xf32, #tpu.memory_space<vmem>>, vector<1x32xf32>
    %477 = vector.broadcast %476 : vector<1x32xf32> to vector<4x32xf32>
    %478 = arith.addf %475, %477 : vector<4x32xf32>
    %cst_279 = arith.constant 0.000000e+00 : f32
    %479 = vector.broadcast %cst_279 : f32 to vector<4x32xf32>
    %480 = arith.maximumf %478, %479 : vector<4x32xf32>
    %c16_280 = arith.constant 16 : index
    %c0_281 = arith.constant 0 : index
    %481 = vector.load %arg5[%c16_280, %c0_281] : memref<96x128xf32, #tpu.memory_space<vmem>>, vector<4x32xf32>
    tpu.vector_store %arg5[%c16_280, %c0_281], %480 {strides = array<i32>} : memref<96x128xf32, #tpu.memory_space<vmem>>, vector<4x32xf32>,
    %c15_282 = arith.constant 15 : index
    %c0_283 = arith.constant 0 : index
    %482 = vector.load %arg5[%c15_282, %c0_283] : memref<96x128xf32, #tpu.memory_space<vmem>>, vector<4x32xf32>
    %c17_284 = arith.constant 17 : index
    %c0_285 = arith.constant 0 : index
    %483 = vector.load %arg5[%c17_284, %c0_285] : memref<96x128xf32, #tpu.memory_space<vmem>>, vector<4x32xf32>
    %cst_286 = arith.constant 0.000000e+00 : f32
    %484 = vector.shape_cast %395 : vector<4x1xi1> to vector<4x1xi1>
    %485 = vector.broadcast %484 : vector<4x1xi1> to vector<4x32xi1>
    %486 = vector.broadcast %cst_286 : f32 to vector<4x32xf32>
    %487 = arith.select %485, %486, %482 : vector<4x32xi1>, vector<4x32xf32>
    %cst_287 = arith.constant 0.000000e+00 : f32
    %488 = vector.shape_cast %399 : vector<4x1xi1> to vector<4x1xi1>
    %489 = vector.broadcast %488 : vector<4x1xi1> to vector<4x32xi1>
    %490 = vector.broadcast %cst_287 : f32 to vector<4x32xf32>
    %491 = arith.select %489, %490, %483 : vector<4x32xi1>, vector<4x32xf32>
    %c2784 = arith.constant 2784 : index
    %c0_288 = arith.constant 0 : index
    %492 = vector.load %arg2[%c2784, %c0_288] : memref<2960x256xbf16, #tpu.memory_space<vmem>>, vector<32x144xbf16>
    %c2816 = arith.constant 2816 : index
    %c0_289 = arith.constant 0 : index
    %493 = vector.load %arg2[%c2816, %c0_289] : memref<2960x256xbf16, #tpu.memory_space<vmem>>, vector<32x144xbf16>
    %c2848 = arith.constant 2848 : index
    %c0_290 = arith.constant 0 : index
    %494 = vector.load %arg2[%c2848, %c0_290] : memref<2960x256xbf16, #tpu.memory_space<vmem>>, vector<32x144xbf16>
    %495 = arith.truncf %487 : vector<4x32xf32> to vector<4x32xbf16>
    %cst_291 = arith.constant dense<0.000000e+00> : vector<4x144xf32>
    %496 = tpu.matmul %495, %492, %cst_291 {dimension_numbers = #tpu.dot_dimension_numbers<[1], [0], [0], [1], [0, 0, 1, 1], [], []>} : vector<4x32xbf16>, vector<32x144xbf16>, vector<4x144xf32> -> vector<4x144xf32>
    %497 = arith.truncf %480 : vector<4x32xf32> to vector<4x32xbf16>
    %cst_292 = arith.constant dense<0.000000e+00> : vector<4x144xf32>
    %498 = tpu.matmul %497, %493, %cst_292 {dimension_numbers = #tpu.dot_dimension_numbers<[1], [0], [0], [1], [0, 0, 1, 1], [], []>} : vector<4x32xbf16>, vector<32x144xbf16>, vector<4x144xf32> -> vector<4x144xf32>
    %499 = arith.addf %496, %498 : vector<4x144xf32>
    %500 = arith.truncf %491 : vector<4x32xf32> to vector<4x32xbf16>
    %cst_293 = arith.constant dense<0.000000e+00> : vector<4x144xf32>
    %501 = tpu.matmul %500, %494, %cst_293 {dimension_numbers = #tpu.dot_dimension_numbers<[1], [0], [0], [1], [0, 0, 1, 1], [], []>} : vector<4x32xbf16>, vector<32x144xbf16>, vector<4x144xf32> -> vector<4x144xf32>
    %502 = arith.addf %499, %501 : vector<4x144xf32>
    %c15_294 = arith.constant 15 : index
    %c0_295 = arith.constant 0 : index
    %503 = vector.load %arg3[%c15_294, %c0_295] : memref<18x256xf32, #tpu.memory_space<vmem>>, vector<1x144xf32>
    %504 = vector.broadcast %503 : vector<1x144xf32> to vector<4x144xf32>
    %505 = arith.addf %502, %504 : vector<4x144xf32>
    %cst_296 = arith.constant 0.000000e+00 : f32
    %506 = vector.broadcast %cst_296 : f32 to vector<4x144xf32>
    %507 = arith.maximumf %505, %506 : vector<4x144xf32>
    %508 = vector.extract_strided_slice %507 {offsets = [0, 0], sizes = [4, 16], strides = [1, 1]} : vector<4x144xf32> to vector<4x16xf32>
    %509 = vector.extract_strided_slice %507 {offsets = [0, 128], sizes = [4, 16], strides = [1, 1]} : vector<4x144xf32> to vector<4x16xf32>
    %510 = arith.maximumf %508, %509 : vector<4x16xf32>
    %c0_297 = arith.constant 0 : index
    %c0_298 = arith.constant 0 : index
    %511 = vector.load %arg6[%c0_297, %c0_298] : memref<64x64xf32, #tpu.memory_space<vmem>>, vector<4x16xf32>
    tpu.vector_store %arg6[%c0_297, %c0_298], %510 {strides = array<i32>} : memref<64x64xf32, #tpu.memory_space<vmem>>, vector<4x16xf32>,
    %c0_299 = arith.constant 0 : index
    %c0_300 = arith.constant 0 : index
    %512 = tpu.strided_load %arg6[%c0_299, %c0_300] {strides = array<i32: 2, 1>} : memref<64x64xf32, #tpu.memory_space<vmem>>, vector<2x16xf32>
    %c1_301 = arith.constant 1 : index
    %c0_302 = arith.constant 0 : index
    %513 = tpu.strided_load %arg6[%c1_301, %c0_302] {strides = array<i32: 2, 1>} : memref<64x64xf32, #tpu.memory_space<vmem>>, vector<2x16xf32>
    %514 = arith.maximumf %512, %513 : vector<2x16xf32>
    %c2880 = arith.constant 2880 : index
    %c0_303 = arith.constant 0 : index
    %515 = vector.load %arg2[%c2880, %c0_303] : memref<2960x256xbf16, #tpu.memory_space<vmem>>, vector<16x64xbf16>
    %c16_304 = arith.constant 16 : index
    %c0_305 = arith.constant 0 : index
    %516 = vector.load %arg3[%c16_304, %c0_305] : memref<18x256xf32, #tpu.memory_space<vmem>>, vector<1x64xf32>
    %517 = arith.truncf %514 : vector<2x16xf32> to vector<2x16xbf16>
    %cst_306 = arith.constant dense<0.000000e+00> : vector<2x64xf32>
    %518 = tpu.matmul %517, %515, %cst_306 {dimension_numbers = #tpu.dot_dimension_numbers<[1], [0], [0], [1], [0, 0, 1, 1], [], []>} : vector<2x16xbf16>, vector<16x64xbf16>, vector<2x64xf32> -> vector<2x64xf32>
    %519 = vector.broadcast %516 : vector<1x64xf32> to vector<2x64xf32>
    %520 = arith.addf %518, %519 : vector<2x64xf32>
    %cst_307 = arith.constant 0.000000e+00 : f32
    %521 = vector.broadcast %cst_307 : f32 to vector<2x64xf32>
    %522 = arith.maximumf %520, %521 : vector<2x64xf32>
    %c2896 = arith.constant 2896 : index
    %c0_308 = arith.constant 0 : index
    %523 = vector.load %arg2[%c2896, %c0_308] : memref<2960x256xbf16, #tpu.memory_space<vmem>>, vector<64x32xbf16>
    %c17_309 = arith.constant 17 : index
    %c0_310 = arith.constant 0 : index
    %524 = vector.load %arg3[%c17_309, %c0_310] : memref<18x256xf32, #tpu.memory_space<vmem>>, vector<1x32xf32>
    %525 = arith.truncf %522 : vector<2x64xf32> to vector<2x64xbf16>
    %cst_311 = arith.constant dense<0.000000e+00> : vector<2x32xf32>
    %526 = tpu.matmul %525, %523, %cst_311 {dimension_numbers = #tpu.dot_dimension_numbers<[1], [0], [0], [1], [0, 0, 1, 1], [], []>} : vector<2x64xbf16>, vector<64x32xbf16>, vector<2x32xf32> -> vector<2x32xf32>
    %527 = vector.broadcast %524 : vector<1x32xf32> to vector<2x32xf32>
    %528 = arith.addf %526, %527 : vector<2x32xf32>
    %c0_312 = arith.constant 0 : index
    %c0_313 = arith.constant 0 : index
    %529 = vector.load %arg4[%c0_312, %c0_313] : memref<2x32xf32, #tpu.memory_space<vmem>>, vector<2x32xf32>
    tpu.vector_store %arg4[%c0_312, %c0_313], %528 {strides = array<i32>} : memref<2x32xf32, #tpu.memory_space<vmem>>, vector<2x32xf32>,
    return
  }
  func.func @transform_0(%arg0: i32) -> (i32, i32) {
    %c0_i32 = arith.constant 0 : i32
    %c0_i32_0 = arith.constant 0 : i32
    return %arg0, %c0_i32 : i32, i32
  }
  func.func @transform_1(%arg0: i32) -> (i32, i32) {
    %c0_i32 = arith.constant 0 : i32
    %c0_i32_0 = arith.constant 0 : i32
    %c0_i32_1 = arith.constant 0 : i32
    return %c0_i32, %c0_i32_0 : i32, i32
  }
  func.func @transform_2(%arg0: i32) -> (i32, i32) {
    %c0_i32 = arith.constant 0 : i32
    %c0_i32_0 = arith.constant 0 : i32
    %c0_i32_1 = arith.constant 0 : i32
    return %c0_i32, %c0_i32_0 : i32, i32
  }
  func.func @transform_3(%arg0: i32) -> (i32, i32) {
    %c0_i32 = arith.constant 0 : i32
    %c0_i32_0 = arith.constant 0 : i32
    return %arg0, %c0_i32 : i32, i32
  }
}

</mosaic_0001>

<llo_original>
// kernel: _lambda_.1
$region0: #{_lambda_.1}
  #allocation0 [shape = 'u32[]', space=smem, size = 0x4, offset = 0x4, fixed_abs, tag = 'smem constant byte address 0x4 - core index']
  #allocation1 [shape = 'u32[144,128]{1,0:T(1,128)}', space=vmem, size = 0x12000, scoped, tag = 'internal scratch']
  #allocation2 [shape = 'f32[96,128]{1,0:T(8,128)}', space=vmem, size = 0xc000, scoped, tag = 'scratch operand']
  #allocation3 [shape = 'f32[64,64]{1,0:T(8,128)}', space=vmem, size = 0x8000, scoped, tag = 'scratch operand']
  %s0 = inlined_call_operand.vmem [shape: f32[64,32], index: 0, kind: input, shape index: {}]
  %s1 = inlined_call_operand.vmem [shape: bf16[2960,256], index: 1, kind: input, shape index: {}]
  %s2 = inlined_call_operand.vmem [shape: f32[18,256], index: 2, kind: input, shape index: {}]
  %s3 = inlined_call_operand.hbm [shape: f32[2,32], index: 3, kind: output, shape index: {}]
  %s4 = sld [smem:[#allocation0]]
  $region22: #{_lambda_.1} parent=0
    _
  %s6 = ssub.s32 1, %s4
  %s7 = scalar_select 0, %s6, %s4
  $region1: #{_lambda_.1} parent=0
    #allocation4 [shape = 'u8[1024]{0}', space=vmem, size = 0x400, scoped, tag = 'output window, operand 0, single buffered']
    #allocation5 [shape = 's32[1]{0}', space=sflag, size = 0x4, scoped, tag = 'scoped memory for _lambda_.1']
    %8 = vsyncpa [#allocation5], 0
    // Predicated region
    $region2: #{_lambda_.1} parent=1 // pred_check
      _
    $region3: #{_lambda_.1} parent=1 // pred_check_branch
      %10 = sbr.rel (0) target = $region5
    $region4: #{_lambda_.1} parent=1 // pred_region
      _
    $region5: #{_lambda_.1} parent=1 // pred_fallthru
      _
    // Predicated region
    $region6: #{_lambda_.1} parent=1 // pred_check
      _
    $region7: #{_lambda_.1} parent=1 // pred_check_branch
      %12 = sbr.rel (0) target = $region9
    $region8: #{_lambda_.1} parent=1 // pred_region
      _
    $region9: #{_lambda_.1} parent=1 // pred_fallthru
      _
    // Predicated region
    $region10: #{_lambda_.1} parent=1 // pred_check
      _
    $region11: #{_lambda_.1} parent=1 // pred_check_branch
      %14 = sbr.rel (0) target = $region13
    $region12: #{_lambda_.1} parent=1 // pred_region
      _
    $region13: #{_lambda_.1} parent=1 // pred_fallthru
      _
    %16 = vst [vmem:[#allocation2] sm:$0xff] 0.0
    %17 = vst [vmem:[#allocation2 + $0x8] sm:$0xff] 0.0
    %18 = vst [vmem:[#allocation2 + $0x10] sm:$0xff] 0.0
    %19 = vst [vmem:[#allocation2 + $0x18] sm:$0xff] 0.0
    %20 = vst [vmem:[#allocation2 + $0x20] sm:$0xff] 0.0
    %21 = vst [vmem:[#allocation2 + $0x28] sm:$0xff] 0.0
    %22 = vst [vmem:[#allocation2 + $0x30] sm:$0xff] 0.0
    %23 = vst [vmem:[#allocation2 + $0x38] sm:$0xff] 0.0
    %24 = vst [vmem:[#allocation2 + $0x40] sm:$0xff] 0.0
    %25 = vst [vmem:[#allocation2 + $0x48] sm:$0xff] 0.0
    %26 = vst [vmem:[#allocation2 + $0x50] sm:$0xff] 0.0
    %27 = vst [vmem:[#allocation2 + $0x58] sm:$0xff] 0.0
    %v28 = vld [vmem:[%s0] sm:$0xff]
    %v29 = vld [vmem:[%s0 + $0x8] sm:$0xff]
    %v30 = vld [vmem:[%s0 + $0x10] sm:$0xff]
    %v31 = vld [vmem:[%s0 + $0x18] sm:$0xff]
    %v32 = vld [vmem:[%s0 + $0x20] sm:$0xff]
    %v33 = vld [vmem:[%s0 + $0x28] sm:$0xff]
    %v34 = vld [vmem:[%s0 + $0x30] sm:$0xff]
    %v35 = vld [vmem:[%s0 + $0x38] sm:$0xff]
    %v36 = vlaneseq
    %v37 = vshrl.u32 %v36, 7
    %v38 = vadd.s32 %v37, 8
    %v39 = vadd.s32 %v37, 16
    %v40 = vadd.s32 %v37, 24
    %v41 = vadd.s32 %v37, 32
    %v42 = vadd.s32 %v37, 40
    %v43 = vadd.s32 %v37, 48
    %v44 = vadd.s32 %v37, 56
    %v45 = vand.u32 %v37, 31
    %v46 = vand.u32 %v38, 31
    %v47 = vand.u32 %v39, 31
    %v48 = vand.u32 %v40, 31
    %v49 = vand.u32 %v41, 31
    %v50 = vand.u32 %v42, 31
    %v51 = vand.u32 %v43, 31
    %v52 = vand.u32 %v44, 31
    %vm53 = vcmp.eq.s32.totalorder %v45, 0
    %vm54 = vcmp.eq.s32.totalorder %v46, 0
    %vm55 = vcmp.eq.s32.totalorder %v47, 0
    %vm56 = vcmp.eq.s32.totalorder %v48, 0
    %vm57 = vcmp.eq.s32.totalorder %v49, 0
    %vm58 = vcmp.eq.s32.totalorder %v50, 0
    %vm59 = vcmp.eq.s32.totalorder %v51, 0
    %vm60 = vcmp.eq.s32.totalorder %v52, 0
    %vm61 = vcmp.eq.s32.totalorder %v45, 31
    %vm62 = vcmp.eq.s32.totalorder %v46, 31
    %vm63 = vcmp.eq.s32.totalorder %v47, 31
    %vm64 = vcmp.eq.s32.totalorder %v48, 31
    %vm65 = vcmp.eq.s32.totalorder %v49, 31
    %vm66 = vcmp.eq.s32.totalorder %v50, 31
    %vm67 = vcmp.eq.s32.totalorder %v51, 31
    %vm68 = vcmp.eq.s32.totalorder %v52, 31
    %vm69 = vcmask 261120
    %70 = vst.msk [vmem:[#allocation2 + $0x10] sm:$0xff] %vm69, %v28
    %71 = vst.msk [vmem:[#allocation2 + $0x18] sm:$0xff] %vm69, %v29
    %72 = vst.msk [vmem:[#allocation2 + $0x20] sm:$0xff] %vm69, %v30
    %73 = vst.msk [vmem:[#allocation2 + $0x28] sm:$0xff] %vm69, %v31
    %74 = vst.msk [vmem:[#allocation2 + $0x30] sm:$0xff] %vm69, %v32
    %75 = vst.msk [vmem:[#allocation2 + $0x38] sm:$0xff] %vm69, %v33
    %76 = vst.msk [vmem:[#allocation2 + $0x40] sm:$0xff] %vm69, %v34
    %77 = vst.msk [vmem:[#allocation2 + $0x48] sm:$0xff] %vm69, %v35
    %v78 = vld [vmem:[#allocation2 + $0xf] sm:$0xff]
    %v79 = vld [vmem:[#allocation2 + $0x17] sm:$0xff]
    %v80 = vld [vmem:[#allocation2 + $0x1f] sm:$0xff]
    %v81 = vld [vmem:[#allocation2 + $0x27] sm:$0xff]
    %v82 = vld [vmem:[#allocation2 + $0x2f] sm:$0xff]
    %v83 = vld [vmem:[#allocation2 + $0x37] sm:$0xff]
    %v84 = vld [vmem:[#allocation2 + $0x3f] sm:$0xff]
    %v85 = vld [vmem:[#allocation2 + $0x47] sm:$0xff]
    %v86 = vld [vmem:[#allocation2 + $0x11] sm:$0xff]
    %v87 = vld [vmem:[#allocation2 + $0x19] sm:$0xff]
    %v88 = vld [vmem:[#allocation2 + $0x21] sm:$0xff]
    %v89 = vld [vmem:[#allocation2 + $0x29] sm:$0xff]
    %v90 = vld [vmem:[#allocation2 + $0x31] sm:$0xff]
    %v91 = vld [vmem:[#allocation2 + $0x39] sm:$0xff]
    %v92 = vld [vmem:[#allocation2 + $0x41] sm:$0xff]
    %v93 = vld [vmem:[#allocation2 + $0x49] sm:$0xff]
    %v94 = vsel %vm53, 1, 0
    %v95 = vsel %vm54, 1, 0
    %v96 = vsel %vm55, 1, 0
    %v97 = vsel %vm56, 1, 0
    %v98 = vsel %vm57, 1, 0
    %v99 = vsel %vm58, 1, 0
    %v100 = vsel %vm59, 1, 0
    %v101 = vsel %vm60, 1, 0
    %vm102 = vcmp.eq.s32.totalorder %v94, 1
    %vm103 = vcmp.eq.s32.totalorder %v95, 1
    %vm104 = vcmp.eq.s32.totalorder %v96, 1
    %vm105 = vcmp.eq.s32.totalorder %v97, 1
    %vm106 = vcmp.eq.s32.totalorder %v98, 1
    %vm107 = vcmp.eq.s32.totalorder %v99, 1
    %vm108 = vcmp.eq.s32.totalorder %v100, 1
    %vm109 = vcmp.eq.s32.totalorder %v101, 1
    %v110 = vsel %vm102, 0.0, %v78
    %v111 = vsel %vm103, 0.0, %v79
    %v112 = vsel %vm104, 0.0, %v80
    %v113 = vsel %vm105, 0.0, %v81
    %v114 = vsel %vm106, 0.0, %v82
    %v115 = vsel %vm107, 0.0, %v83
    %v116 = vsel %vm108, 0.0, %v84
    %v117 = vsel %vm109, 0.0, %v85
    %v118 = vsel %vm61, 1, 0
    %v119 = vsel %vm62, 1, 0
    %v120 = vsel %vm63, 1, 0
    %v121 = vsel %vm64, 1, 0
    %v122 = vsel %vm65, 1, 0
    %v123 = vsel %vm66, 1, 0
    %v124 = vsel %vm67, 1, 0
    %v125 = vsel %vm68, 1, 0
    %vm126 = vcmp.eq.s32.totalorder %v118, 1
    %vm127 = vcmp.eq.s32.totalorder %v119, 1
    %vm128 = vcmp.eq.s32.totalorder %v120, 1
    %vm129 = vcmp.eq.s32.totalorder %v121, 1
    %vm130 = vcmp.eq.s32.totalorder %v122, 1
    %vm131 = vcmp.eq.s32.totalorder %v123, 1
    %vm132 = vcmp.eq.s32.totalorder %v124, 1
    %vm133 = vcmp.eq.s32.totalorder %v125, 1
    %v134 = vsel %vm126, 0.0, %v86
    %v135 = vsel %vm127, 0.0, %v87
    %v136 = vsel %vm128, 0.0, %v88
    %v137 = vsel %vm129, 0.0, %v89
    %v138 = vsel %vm130, 0.0, %v90
    %v139 = vsel %vm131, 0.0, %v91
    %v140 = vsel %vm132, 0.0, %v92
    %v141 = vsel %vm133, 0.0, %v93
    %v142 = vld [vmem:[%s1] sm:$0xf]
    %v143 = vld [vmem:[%s1 + $0x8] sm:$0xf]
    %v144 = vld [vmem:[%s1 + $0x10] sm:$0xf]
    %v145 = vld [vmem:[%s1 + $0x18] sm:$0xf]
    %v146 = vld [vmem:[%s1 + $0x20] sm:$0xf]
    %v147 = vld [vmem:[%s1 + $0x28] sm:$0xf]
    %v148 = vld [vmem:[%s1 + $0x30] sm:$0xf]
    %v149 = vld [vmem:[%s1 + $0x38] sm:$0xf]
    %v150 = vld [vmem:[%s1 + $0x40] sm:$0xf]
    %v151 = vld [vmem:[%s1 + $0x48] sm:$0xf]
    %v152 = vld [vmem:[%s1 + $0x50] sm:$0xf]
    %v153 = vld [vmem:[%s1 + $0x58] sm:$0xf]
    %v154 = vpack.c.bf16 %v111, %v110
    %v155 = vpack.c.bf16 %v113, %v112
    %v156 = vpack.c.bf16 %v115, %v114
    %v157 = vpack.c.bf16 %v117, %v116
    %v158 = vpack.c.bf16 %v29, %v28
    %v159 = vpack.c.bf16 %v31, %v30
    %v160 = vpack.c.bf16 %v33, %v32
    %v161 = vpack.c.bf16 %v35, %v34
    %v166 = vunpack.c.l.b16 %v146
    %v167 = vunpack.c.l.b16 %v147
    %v168 = vunpack.c.l.b16 %v148
    %v169 = vunpack.c.l.b16 %v149
    %v170 = vpack.c.b16 %v167, %v166
    %v171 = vpack.c.b16 %v169, %v168
    %v175 = vsel %vm69, %v158, 0
    %v178 = vsel %vm69, %v159, 0
    %v181 = vsel %vm69, %v160, 0
    %v184 = vsel %vm69, %v161, 0
    %186 = vmatprep.subr.bf16.mxu0 0
    %187 = vmatpush1.bf16.msra.mxu0 %v170
    %188 = vmatprep.subr.bf16.mxu0 0
    %189 = vmatpush1.bf16.msra.mxu0 %v171
    %190 = vmatprep.subr.bf16.mxu0 0
    %191 = vmatpush1.bf16.msra.mxu0 0
    %192 = vmatprep.subr.bf16.mxu0 0
    %193 = vmatpush1.bf16.msra.mxu0 0
    %194 = vmatprep.subr.bf16.mxu0 0
    %195 = vmatpush1.bf16.msra.mxu0 0
    %196 = vmatprep.subr.bf16.mxu0 0
    %197 = vmatpush1.bf16.msra.mxu0 0
    %198 = vmatprep.subr.bf16.mxu0 0
    %199 = vmatpush1.bf16.msra.mxu0 0
    %200 = vmatprep.subr.bf16.mxu0 0
    %201 = vmatpush1.bf16.msra.mxu0 0
    %202 = vmatprep.subr.bf16.mxu0 0
    %203 = vmatpush1.bf16.msra.mxu0 0
    %204 = vmatprep.subr.bf16.mxu0 0
    %205 = vmatpush1.bf16.msra.mxu0 0
    %206 = vmatprep.subr.bf16.mxu0 0
    %207 = vmatpush1.bf16.msra.mxu0 0
    %208 = vmatprep.subr.bf16.mxu0 0
    %209 = vmatpush1.bf16.msra.mxu0 0
    %210 = vmatprep.subr.bf16.mxu0 0
    %211 = vmatpush1.bf16.msra.mxu0 0
    %212 = vmatprep.subr.bf16.mxu0 0
    %213 = vmatpush1.bf16.msra.mxu0 0
    %214 = vmatprep.subr.bf16.mxu0 0
    %215 = vmatpush1.bf16.msra.mxu0 0
    %216 = vmatprep.subr.bf16.mxu0 0
    %217 = vmatpush1.bf16.msra.mxu0 0
    %218 = vmatprep.mubr.bf16.mxu0 0
    %219 = vmatmul.mubr.bf16.gmra.mrb[0].mxu0 %v175
    %v220 = vpop.f32.mrb[0].mxu0
    %v221 = vadd.f32 0.0, %v220
    %v222 = vpop.f32.mrb[0].mxu0
    %v223 = vpop.f32.mrb[0].mxu0
    %v224 = vadd.f32 0.0, %v223
    %v225 = vpop.f32.mrb[0].mxu0
    %226 = vmatprep.mubr.bf16.mxu0 0
    %227 = vmatmul.mubr.bf16.gmra.mrb[0].mxu0 %v178
    %v228 = vpop.f32.mrb[0].mxu0
    %v229 = vadd.f32 0.0, %v228
    %v230 = vpop.f32.mrb[0].mxu0
    %v231 = vpop.f32.mrb[0].mxu0
    %v232 = vadd.f32 0.0, %v231
    %v233 = vpop.f32.mrb[0].mxu0
    %234 = vmatprep.mubr.bf16.mxu0 0
    %235 = vmatmul.mubr.bf16.gmra.mrb[0].mxu0 %v181
    %v236 = vpop.f32.mrb[0].mxu0
    %v237 = vadd.f32 0.0, %v236
    %v238 = vpop.f32.mrb[0].mxu0
    %v239 = vpop.f32.mrb[0].mxu0
    %v240 = vadd.f32 0.0, %v239
    %v241 = vpop.f32.mrb[0].mxu0
    %242 = vmatprep.mubr.bf16.mxu0 0
    %243 = vmatmul.mubr.bf16.gmra.mrb[0].mxu0 %v184
    %v244 = vpop.f32.mrb[0].mxu0
    %v245 = vadd.f32 0.0, %v244
    %v246 = vpop.f32.mrb[0].mxu0
    %v247 = vpop.f32.mrb[0].mxu0
    %v248 = vadd.f32 0.0, %v247
    %v249 = vpop.f32.mrb[0].mxu0
    %250 = vdwg.mxu0
    %v255 = vunpack.c.l.b16 %v142
    %v256 = vunpack.c.l.b16 %v143
    %v257 = vunpack.c.l.b16 %v144
    %v258 = vunpack.c.l.b16 %v145
    %v259 = vpack.c.b16 %v256, %v255
    %v260 = vpack.c.b16 %v258, %v257
    %v264 = vsel %vm69, %v154, 0
    %v267 = vsel %vm69, %v155, 0
    %v270 = vsel %vm69, %v156, 0
    %v273 = vsel %vm69, %v157, 0
    %275 = vmatprep.subr.bf16.mxu0 0
    %276 = vmatpush1.bf16.msra.mxu0 %v259
    %277 = vmatprep.subr.bf16.mxu0 0
    %278 = vmatpush1.bf16.msra.mxu0 %v260
    %279 = vmatprep.subr.bf16.mxu0 0
    %280 = vmatpush1.bf16.msra.mxu0 0
    %281 = vmatprep.subr.bf16.mxu0 0
    %282 = vmatpush1.bf16.msra.mxu0 0
    %283 = vmatprep.subr.bf16.mxu0 0
    %284 = vmatpush1.bf16.msra.mxu0 0
    %285 = vmatprep.subr.bf16.mxu0 0
    %286 = vmatpush1.bf16.msra.mxu0 0
    %287 = vmatprep.subr.bf16.mxu0 0
    %288 = vmatpush1.bf16.msra.mxu0 0
    %289 = vmatprep.subr.bf16.mxu0 0
    %290 = vmatpush1.bf16.msra.mxu0 0
    %291 = vmatprep.subr.bf16.mxu0 0
    %292 = vmatpush1.bf16.msra.mxu0 0
    %293 = vmatprep.subr.bf16.mxu0 0
    %294 = vmatpush1.bf16.msra.mxu0 0
    %295 = vmatprep.subr.bf16.mxu0 0
    %296 = vmatpush1.bf16.msra.mxu0 0
    %297 = vmatprep.subr.bf16.mxu0 0
    %298 = vmatpush1.bf16.msra.mxu0 0
    %299 = vmatprep.subr.bf16.mxu0 0
    %300 = vmatpush1.bf16.msra.mxu0 0
    %301 = vmatprep.subr.bf16.mxu0 0
    %302 = vmatpush1.bf16.msra.mxu0 0
    %303 = vmatprep.subr.bf16.mxu0 0
    %304 = vmatpush1.bf16.msra.mxu0 0
    %305 = vmatprep.subr.bf16.mxu0 0
    %306 = vmatpush1.bf16.msra.mxu0 0
    %307 = vmatprep.mubr.bf16.mxu0 0
    %308 = vmatmul.mubr.bf16.gmra.mrb[0].mxu0 %v264
    %v309 = vpop.f32.mrb[0].mxu0
    %v310 = vadd.f32 %v221, %v309
    %v311 = vpop.f32.mrb[0].mxu0
    %v312 = vpop.f32.mrb[0].mxu0
    %v313 = vadd.f32 %v224, %v312
    %v314 = vpop.f32.mrb[0].mxu0
    %315 = vmatprep.mubr.bf16.mxu0 0
    %316 = vmatmul.mubr.bf16.gmra.mrb[0].mxu0 %v267
    %v317 = vpop.f32.mrb[0].mxu0
    %v318 = vadd.f32 %v229, %v317
    %v319 = vpop.f32.mrb[0].mxu0
    %v320 = vpop.f32.mrb[0].mxu0
    %v321 = vadd.f32 %v232, %v320
    %v322 = vpop.f32.mrb[0].mxu0
    %323 = vmatprep.mubr.bf16.mxu0 0
    %324 = vmatmul.mubr.bf16.gmra.mrb[0].mxu0 %v270
    %v325 = vpop.f32.mrb[0].mxu0
    %v326 = vadd.f32 %v237, %v325
    %v327 = vpop.f32.mrb[0].mxu0
    %v328 = vpop.f32.mrb[0].mxu0
    %v329 = vadd.f32 %v240, %v328
    %v330 = vpop.f32.mrb[0].mxu0
    %331 = vmatprep.mubr.bf16.mxu0 0
    %332 = vmatmul.mubr.bf16.gmra.mrb[0].mxu0 %v273
    %v333 = vpop.f32.mrb[0].mxu0
    %v334 = vadd.f32 %v245, %v333
    %v335 = vpop.f32.mrb[0].mxu0
    %v336 = vpop.f32.mrb[0].mxu0
    %v337 = vadd.f32 %v248, %v336
    %v338 = vpop.f32.mrb[0].mxu0
    %339 = vdwg.mxu0
    %v340 = vpack.c.bf16 %v135, %v134
    %v341 = vpack.c.bf16 %v137, %v136
    %v342 = vpack.c.bf16 %v139, %v138
    %v343 = vpack.c.bf16 %v141, %v140
    %v348 = vunpack.c.l.b16 %v150
    %v349 = vunpack.c.l.b16 %v151
    %v350 = vunpack.c.l.b16 %v152
    %v351 = vunpack.c.l.b16 %v153
    %v352 = vpack.c.b16 %v349, %v348
    %v353 = vpack.c.b16 %v351, %v350
    %v357 = vsel %vm69, %v340, 0
    %v360 = vsel %vm69, %v341, 0
    %v363 = vsel %vm69, %v342, 0
    %v366 = vsel %vm69, %v343, 0
    %368 = vmatprep.subr.bf16.mxu0 0
    %369 = vmatpush1.bf16.msra.mxu0 %v352
    %370 = vmatprep.subr.bf16.mxu0 0
    %371 = vmatpush1.bf16.msra.mxu0 %v353
    %372 = vmatprep.subr.bf16.mxu0 0
    %373 = vmatpush1.bf16.msra.mxu0 0
    %374 = vmatprep.subr.bf16.mxu0 0
    %375 = vmatpush1.bf16.msra.mxu0 0
    %376 = vmatprep.subr.bf16.mxu0 0
    %377 = vmatpush1.bf16.msra.mxu0 0
    %378 = vmatprep.subr.bf16.mxu0 0
    %379 = vmatpush1.bf16.msra.mxu0 0
    %380 = vmatprep.subr.bf16.mxu0 0
    %381 = vmatpush1.bf16.msra.mxu0 0
    %382 = vmatprep.subr.bf16.mxu0 0
    %383 = vmatpush1.bf16.msra.mxu0 0
    %384 = vmatprep.subr.bf16.mxu0 0
    %385 = vmatpush1.bf16.msra.mxu0 0
    %386 = vmatprep.subr.bf16.mxu0 0
    %387 = vmatpush1.bf16.msra.mxu0 0
    %388 = vmatprep.subr.bf16.mxu0 0
    %389 = vmatpush1.bf16.msra.mxu0 0
    %390 = vmatprep.subr.bf16.mxu0 0
    %391 = vmatpush1.bf16.msra.mxu0 0
    %392 = vmatprep.subr.bf16.mxu0 0
    %393 = vmatpush1.bf16.msra.mxu0 0
    %394 = vmatprep.subr.bf16.mxu0 0
    %395 = vmatpush1.bf16.msra.mxu0 0
    %396 = vmatprep.subr.bf16.mxu0 0
    %397 = vmatpush1.bf16.msra.mxu0 0
    %398 = vmatprep.subr.bf16.mxu0 0
    %399 = vmatpush1.bf16.msra.mxu0 0
    %400 = vmatprep.mubr.bf16.mxu0 0
    %401 = vmatmul.mubr.bf16.gmra.mrb[0].mxu0 %v357
    %v402 = vpop.f32.mrb[0].mxu0
    %v403 = vadd.f32 0.0, %v402
    %v404 = vpop.f32.mrb[0].mxu0
    %v405 = vpop.f32.mrb[0].mxu0
    %v406 = vadd.f32 0.0, %v405
    %v407 = vpop.f32.mrb[0].mxu0
    %408 = vmatprep.mubr.bf16.mxu0 0
    %409 = vmatmul.mubr.bf16.gmra.mrb[0].mxu0 %v360
    %v410 = vpop.f32.mrb[0].mxu0
    %v411 = vadd.f32 0.0, %v410
    %v412 = vpop.f32.mrb[0].mxu0
    %v413 = vpop.f32.mrb[0].mxu0
    %v414 = vadd.f32 0.0, %v413
    %v415 = vpop.f32.mrb[0].mxu0
    %416 = vmatprep.mubr.bf16.mxu0 0
    %417 = vmatmul.mubr.bf16.gmra.mrb[0].mxu0 %v363
    %v418 = vpop.f32.mrb[0].mxu0
    %v419 = vadd.f32 0.0, %v418
    %v420 = vpop.f32.mrb[0].mxu0
    %v421 = vpop.f32.mrb[0].mxu0
    %v422 = vadd.f32 0.0, %v421
    %v423 = vpop.f32.mrb[0].mxu0
    %424 = vmatprep.mubr.bf16.mxu0 0
    %425 = vmatmul.mubr.bf16.gmra.mrb[0].mxu0 %v366
    %v426 = vpop.f32.mrb[0].mxu0
    %v427 = vadd.f32 0.0, %v426
    %v428 = vpop.f32.mrb[0].mxu0
    %v429 = vpop.f32.mrb[0].mxu0
    %v430 = vadd.f32 0.0, %v429
    %v431 = vpop.f32.mrb[0].mxu0
    %432 = vdwg.mxu0
    %v433 = vadd.f32 %v310, %v403
    %v434 = vadd.f32 %v313, %v406
    %v435 = vadd.f32 %v318, %v411
    %v436 = vadd.f32 %v321, %v414
    %v437 = vadd.f32 %v326, %v419
    %v438 = vadd.f32 %v329, %v422
    %v439 = vadd.f32 %v334, %v427
    %v440 = vadd.f32 %v337, %v430
    %v441 = vld [vmem:[%s2] ss:$0 sm:$0xff]
    %v442 = vadd.f32 %v433, %v441
    %v443 = vadd.f32 %v434, %v441
    %v444 = vadd.f32 %v435, %v441
    %v445 = vadd.f32 %v436, %v441
    %v446 = vadd.f32 %v437, %v441
    %v447 = vadd.f32 %v438, %v441
    %v448 = vadd.f32 %v439, %v441
    %v449 = vadd.f32 %v440, %v441
    %v450 = vmax.f32 %v442, 0.0
    %v451 = vmax.f32 %v443, 0.0
    %v452 = vmax.f32 %v444, 0.0
    %v453 = vmax.f32 %v445, 0.0
    %v454 = vmax.f32 %v446, 0.0
    %v455 = vmax.f32 %v447, 0.0
    %v456 = vmax.f32 %v448, 0.0
    %v457 = vmax.f32 %v449, 0.0
    %458 = vst [vmem:[#allocation2 + $0x10] sm:$0xff] %v450
    %459 = vst [vmem:[#allocation2 + $0x18] sm:$0xff] %v451
    %460 = vst [vmem:[#allocation2 + $0x20] sm:$0xff] %v452
    %461 = vst [vmem:[#allocation2 + $0x28] sm:$0xff] %v453
    %462 = vst [vmem:[#allocation2 + $0x30] sm:$0xff] %v454
    %463 = vst [vmem:[#allocation2 + $0x38] sm:$0xff] %v455
    %464 = vst [vmem:[#allocation2 + $0x40] sm:$0xff] %v456
    %465 = vst [vmem:[#allocation2 + $0x48] sm:$0xff] %v457
    %v466 = vld [vmem:[#allocation2 + $0xf] sm:$0xff]
    %v467 = vld [vmem:[#allocation2 + $0x17] sm:$0xff]
    %v468 = vld [vmem:[#allocation2 + $0x1f] sm:$0xff]
    %v469 = vld [vmem:[#allocation2 + $0x27] sm:$0xff]
    %v470 = vld [vmem:[#allocation2 + $0x2f] sm:$0xff]
    %v471 = vld [vmem:[#allocation2 + $0x37] sm:$0xff]
    %v472 = vld [vmem:[#allocation2 + $0x3f] sm:$0xff]
    %v473 = vld [vmem:[#allocation2 + $0x47] sm:$0xff]
    %v474 = vld [vmem:[#allocation2 + $0x11] sm:$0xff]
    %v475 = vld [vmem:[#allocation2 + $0x19] sm:$0xff]
    %v476 = vld [vmem:[#allocation2 + $0x21] sm:$0xff]
    %v477 = vld [vmem:[#allocation2 + $0x29] sm:$0xff]
    %v478 = vld [vmem:[#allocation2 + $0x31] sm:$0xff]
    %v479 = vld [vmem:[#allocation2 + $0x39] sm:$0xff]
    %v480 = vld [vmem:[#allocation2 + $0x41] sm:$0xff]
    %v481 = vld [vmem:[#allocation2 + $0x49] sm:$0xff]
    %v482 = vsel %vm102, 0.0, %v466
    %v483 = vsel %vm103, 0.0, %v467
    %v484 = vsel %vm104, 0.0, %v468
    %v485 = vsel %vm105, 0.0, %v469
    %v486 = vsel %vm106, 0.0, %v470
    %v487 = vsel %vm107, 0.0, %v471
    %v488 = vsel %vm108, 0.0, %v472
    %v489 = vsel %vm109, 0.0, %v473
    %v490 = vsel %vm126, 0.0, %v474
    %v491 = vsel %vm127, 0.0, %v475
    %v492 = vsel %vm128, 0.0, %v476
    %v493 = vsel %vm129, 0.0, %v477
    %v494 = vsel %vm130, 0.0, %v478
    %v495 = vsel %vm131, 0.0, %v479
    %v496 = vsel %vm132, 0.0, %v480
    %v497 = vsel %vm133, 0.0, %v481
    %v498 = vld [vmem:[%s1 + $0x60] sm:$0xff]
    %v499 = vld [vmem:[%s1 + $0x68] sm:$0xff]
    %v500 = vld [vmem:[%s1 + $0x70] sm:$0xff]
    %v501 = vld [vmem:[%s1 + $0x78] sm:$0xff]
    %v502 = vld [vmem:[%s1 + $0x80] sm:$0xff]
    %v503 = vld [vmem:[%s1 + $0x88] sm:$0xff]
    %v504 = vld [vmem:[%s1 + $0x90] sm:$0xff]
    %v505 = vld [vmem:[%s1 + $0x98] sm:$0xff]
    %v506 = vld [vmem:[%s1 + $0xa0] sm:$0xff]
    %v507 = vld [vmem:[%s1 + $0xa8] sm:$0xff]
    %v508 = vld [vmem:[%s1 + $0xb0] sm:$0xff]
    %v509 = vld [vmem:[%s1 + $0xb8] sm:$0xff]
    %v510 = vld [vmem:[%s1 + $0xc0] sm:$0xff]
    %v511 = vld [vmem:[%s1 + $0xc8] sm:$0xff]
    %v512 = vld [vmem:[%s1 + $0xd0] sm:$0xff]
    %v513 = vld [vmem:[%s1 + $0xd8] sm:$0xff]
    %v514 = vld [vmem:[%s1 + $0xe0] sm:$0xff]
    %v515 = vld [vmem:[%s1 + $0xe8] sm:$0xff]
    %v516 = vld [vmem:[%s1 + $0xf0] sm:$0xff]
    %v517 = vld [vmem:[%s1 + $0xf8] sm:$0xff]
    %v518 = vld [vmem:[%s1 + $0x100] sm:$0xff]
    %v519 = vld [vmem:[%s1 + $0x108] sm:$0xff]
    %v520 = vld [vmem:[%s1 + $0x110] sm:$0xff]
    %v521 = vld [vmem:[%s1 + $0x118] sm:$0xff]
    %v522 = vld [vmem:[%s1 + $0x120] sm:$0xff]
    %v523 = vld [vmem:[%s1 + $0x128] sm:$0xff]
    %v524 = vld [vmem:[%s1 + $0x130] sm:$0xff]
    %v525 = vld [vmem:[%s1 + $0x138] sm:$0xff]
    %v526 = vld [vmem:[%s1 + $0x140] sm:$0xff]
    %v527 = vld [vmem:[%s1 + $0x148] sm:$0xff]
    %v528 = vld [vmem:[%s1 + $0x150] sm:$0xff]
    %v529 = vld [vmem:[%s1 + $0x158] sm:$0xff]
    %v530 = vld [vmem:[%s1 + $0x160] sm:$0xff]
    %v531 = vld [vmem:[%s1 + $0x168] sm:$0xff]
    %v532 = vld [vmem:[%s1 + $0x170] sm:$0xff]
    %v533 = vld [vmem:[%s1 + $0x178] sm:$0xff]
    %v534 = vld [vmem:[%s1 + $0x180] sm:$0xff]
    %v535 = vld [vmem:[%s1 + $0x188] sm:$0xff]
    %v536 = vld [vmem:[%s1 + $0x190] sm:$0xff]
    %v537 = vld [vmem:[%s1 + $0x198] sm:$0xff]
    %v538 = vld [vmem:[%s1 + $0x1a0] sm:$0xff]
    %v539 = vld [vmem:[%s1 + $0x1a8] sm:$0xff]
    %v540 = vld [vmem:[%s1 + $0x1b0] sm:$0xff]
    %v541 = vld [vmem:[%s1 + $0x1b8] sm:$0xff]
    %v542 = vld [vmem:[%s1 + $0x1c0] sm:$0xff]
    %v543 = vld [vmem:[%s1 + $0x1c8] sm:$0xff]
    %v544 = vld [vmem:[%s1 + $0x1d0] sm:$0xff]
    %v545 = vld [vmem:[%s1 + $0x1d8] sm:$0xff]
    %v546 = vpack.c.bf16 %v483, %v482
    %v547 = vpack.c.bf16 %v485, %v484
    %v548 = vpack.c.bf16 %v487, %v486
    %v549 = vpack.c.bf16 %v489, %v488
    %v550 = vpack.c.bf16 %v451, %v450
    %v551 = vpack.c.bf16 %v453, %v452
    %v552 = vpack.c.bf16 %v455, %v454
    %v553 = vpack.c.bf16 %v457, %v456
    %v570 = vunpack.c.l.b16 %v514
    %v571 = vunpack.c.h.b16 %v514
    %v572 = vunpack.c.l.b16 %v515
    %v573 = vunpack.c.h.b16 %v515
    %v574 = vunpack.c.l.b16 %v516
    %v575 = vunpack.c.h.b16 %v516
    %v576 = vunpack.c.l.b16 %v517
    %v577 = vunpack.c.h.b16 %v517
    %v578 = vunpack.c.l.b16 %v518
    %v579 = vunpack.c.h.b16 %v518
    %v580 = vunpack.c.l.b16 %v519
    %v581 = vunpack.c.h.b16 %v519
    %v582 = vunpack.c.l.b16 %v520
    %v583 = vunpack.c.h.b16 %v520
    %v584 = vunpack.c.l.b16 %v521
    %v585 = vunpack.c.h.b16 %v521
    %v586 = vunpack.c.l.b16 %v522
    %v587 = vunpack.c.h.b16 %v522
    %v588 = vunpack.c.l.b16 %v523
    %v589 = vunpack.c.h.b16 %v523
    %v590 = vunpack.c.l.b16 %v524
    %v591 = vunpack.c.h.b16 %v524
    %v592 = vunpack.c.l.b16 %v525
    %v593 = vunpack.c.h.b16 %v525
    %v594 = vunpack.c.l.b16 %v526
    %v595 = vunpack.c.h.b16 %v526
    %v596 = vunpack.c.l.b16 %v527
    %v597 = vunpack.c.h.b16 %v527
    %v598 = vunpack.c.l.b16 %v528
    %v599 = vunpack.c.h.b16 %v528
    %v600 = vunpack.c.l.b16 %v529
    %v601 = vunpack.c.h.b16 %v529
    %v602 = vpack.c.b16 %v572, %v570
    %v603 = vpack.c.b16 %v573, %v571
    %v604 = vpack.c.b16 %v576, %v574
    %v605 = vpack.c.b16 %v577, %v575
    %v606 = vpack.c.b16 %v580, %v578
    %v607 = vpack.c.b16 %v581, %v579
    %v608 = vpack.c.b16 %v584, %v582
    %v609 = vpack.c.b16 %v585, %v583
    %v610 = vpack.c.b16 %v588, %v586
    %v611 = vpack.c.b16 %v589, %v587
    %v612 = vpack.c.b16 %v592, %v590
    %v613 = vpack.c.b16 %v593, %v591
    %v614 = vpack.c.b16 %v596, %v594
    %v615 = vpack.c.b16 %v597, %v595
    %v616 = vpack.c.b16 %v600, %v598
    %v617 = vpack.c.b16 %v601, %v599
    %634 = vmatprep.subr.bf16.mxu0 %v603
    %635 = vmatpush1.bf16.msra.mxu0 %v602
    %636 = vmatprep.subr.bf16.mxu0 %v605
    %637 = vmatpush1.bf16.msra.mxu0 %v604
    %638 = vmatprep.subr.bf16.mxu0 %v607
    %639 = vmatpush1.bf16.msra.mxu0 %v606
    %640 = vmatprep.subr.bf16.mxu0 %v609
    %641 = vmatpush1.bf16.msra.mxu0 %v608
    %642 = vmatprep.subr.bf16.mxu0 %v611
    %643 = vmatpush1.bf16.msra.mxu0 %v610
    %644 = vmatprep.subr.bf16.mxu0 %v613
    %645 = vmatpush1.bf16.msra.mxu0 %v612
    %646 = vmatprep.subr.bf16.mxu0 %v615
    %647 = vmatpush1.bf16.msra.mxu0 %v614
    %648 = vmatprep.subr.bf16.mxu0 %v617
    %649 = vmatpush1.bf16.msra.mxu0 %v616
    %650 = vmatprep.subr.bf16.mxu0 0
    %651 = vmatpush1.bf16.msra.mxu0 0
    %652 = vmatprep.subr.bf16.mxu0 0
    %653 = vmatpush1.bf16.msra.mxu0 0
    %654 = vmatprep.subr.bf16.mxu0 0
    %655 = vmatpush1.bf16.msra.mxu0 0
    %656 = vmatprep.subr.bf16.mxu0 0
    %657 = vmatpush1.bf16.msra.mxu0 0
    %658 = vmatprep.subr.bf16.mxu0 0
    %659 = vmatpush1.bf16.msra.mxu0 0
    %660 = vmatprep.subr.bf16.mxu0 0
    %661 = vmatpush1.bf16.msra.mxu0 0
    %662 = vmatprep.subr.bf16.mxu0 0
    %663 = vmatpush1.bf16.msra.mxu0 0
    %664 = vmatprep.subr.bf16.mxu0 0
    %665 = vmatpush1.bf16.msra.mxu0 0
    %666 = vmatprep.mubr.bf16.mxu0 0
    %667 = vmatmul.mubr.bf16.gmra.mrb[0].mxu0 %v550
    %v668 = vpop.f32.mrb[0].mxu0
    %v669 = vadd.f32 0.0, %v668
    %v670 = vpop.f32.mrb[0].mxu0
    %v671 = vadd.f32 0.0, %v670
    %v672 = vpop.f32.mrb[0].mxu0
    %v673 = vadd.f32 0.0, %v672
    %v674 = vpop.f32.mrb[0].mxu0
    %v675 = vadd.f32 0.0, %v674
    %676 = vmatprep.mubr.bf16.mxu0 0
    %677 = vmatmul.mubr.bf16.gmra.mrb[0].mxu0 %v551
    %v678 = vpop.f32.mrb[0].mxu0
    %v679 = vadd.f32 0.0, %v678
    %v680 = vpop.f32.mrb[0].mxu0
    %v681 = vadd.f32 0.0, %v680
    %v682 = vpop.f32.mrb[0].mxu0
    %v683 = vadd.f32 0.0, %v682
    %v684 = vpop.f32.mrb[0].mxu0
    %v685 = vadd.f32 0.0, %v684
    %686 = vmatprep.mubr.bf16.mxu0 0
    %687 = vmatmul.mubr.bf16.gmra.mrb[0].mxu0 %v552
    %v688 = vpop.f32.mrb[0].mxu0
    %v689 = vadd.f32 0.0, %v688
    %v690 = vpop.f32.mrb[0].mxu0
    %v691 = vadd.f32 0.0, %v690
    %v692 = vpop.f32.mrb[0].mxu0
    %v693 = vadd.f32 0.0, %v692
    %v694 = vpop.f32.mrb[0].mxu0
    %v695 = vadd.f32 0.0, %v694
    %696 = vmatprep.mubr.bf16.mxu0 0
    %697 = vmatmul.mubr.bf16.gmra.mrb[0].mxu0 %v553
    %v698 = vpop.f32.mrb[0].mxu0
    %v699 = vadd.f32 0.0, %v698
    %v700 = vpop.f32.mrb[0].mxu0
    %v701 = vadd.f32 0.0, %v700
    %v702 = vpop.f32.mrb[0].mxu0
    %v703 = vadd.f32 0.0, %v702
    %v704 = vpop.f32.mrb[0].mxu0
    %v705 = vadd.f32 0.0, %v704
    %706 = vdwg.mxu0
    %v723 = vunpack.c.l.b16 %v498
    %v724 = vunpack.c.h.b16 %v498
    %v725 = vunpack.c.l.b16 %v499
    %v726 = vunpack.c.h.b16 %v499
    %v727 = vunpack.c.l.b16 %v500
    %v728 = vunpack.c.h.b16 %v500
    %v729 = vunpack.c.l.b16 %v501
    %v730 = vunpack.c.h.b16 %v501
    %v731 = vunpack.c.l.b16 %v502
    %v732 = vunpack.c.h.b16 %v502
    %v733 = vunpack.c.l.b16 %v503
    %v734 = vunpack.c.h.b16 %v503
    %v735 = vunpack.c.l.b16 %v504
    %v736 = vunpack.c.h.b16 %v504
    %v737 = vunpack.c.l.b16 %v505
    %v738 = vunpack.c.h.b16 %v505
    %v739 = vunpack.c.l.b16 %v506
    %v740 = vunpack.c.h.b16 %v506
    %v741 = vunpack.c.l.b16 %v507
    %v742 = vunpack.c.h.b16 %v507
    %v743 = vunpack.c.l.b16 %v508
    %v744 = vunpack.c.h.b16 %v508
    %v745 = vunpack.c.l.b16 %v509
    %v746 = vunpack.c.h.b16 %v509
    %v747 = vunpack.c.l.b16 %v510
    %v748 = vunpack.c.h.b16 %v510
    %v749 = vunpack.c.l.b16 %v511
    %v750 = vunpack.c.h.b16 %v511
    %v751 = vunpack.c.l.b16 %v512
    %v752 = vunpack.c.h.b16 %v512
    %v753 = vunpack.c.l.b16 %v513
    %v754 = vunpack.c.h.b16 %v513
    %v755 = vpack.c.b16 %v725, %v723
    %v756 = vpack.c.b16 %v726, %v724
    %v757 = vpack.c.b16 %v729, %v727
    %v758 = vpack.c.b16 %v730, %v728
    %v759 = vpack.c.b16 %v733, %v731
    %v760 = vpack.c.b16 %v734, %v732
    %v761 = vpack.c.b16 %v737, %v735
    %v762 = vpack.c.b16 %v738, %v736
    %v763 = vpack.c.b16 %v741, %v739
    %v764 = vpack.c.b16 %v742, %v740
    %v765 = vpack.c.b16 %v745, %v743
    %v766 = vpack.c.b16 %v746, %v744
    %v767 = vpack.c.b16 %v749, %v747
    %v768 = vpack.c.b16 %v750, %v748
    %v769 = vpack.c.b16 %v753, %v751
    %v770 = vpack.c.b16 %v754, %v752
    %787 = vmatprep.subr.bf16.mxu0 %v756
    %788 = vmatpush1.bf16.msra.mxu0 %v755
    %789 = vmatprep.subr.bf16.mxu0 %v758
    %790 = vmatpush1.bf16.msra.mxu0 %v757
    %791 = vmatprep.subr.bf16.mxu0 %v760
    %792 = vmatpush1.bf16.msra.mxu0 %v759
    %793 = vmatprep.subr.bf16.mxu0 %v762
    %794 = vmatpush1.bf16.msra.mxu0 %v761
    %795 = vmatprep.subr.bf16.mxu0 %v764
    %796 = vmatpush1.bf16.msra.mxu0 %v763
    %797 = vmatprep.subr.bf16.mxu0 %v766
    %798 = vmatpush1.bf16.msra.mxu0 %v765
    %799 = vmatprep.subr.bf16.mxu0 %v768
    %800 = vmatpush1.bf16.msra.mxu0 %v767
    %801 = vmatprep.subr.bf16.mxu0 %v770
    %802 = vmatpush1.bf16.msra.mxu0 %v769
    %803 = vmatprep.subr.bf16.mxu0 0
    %804 = vmatpush1.bf16.msra.mxu0 0
    %805 = vmatprep.subr.bf16.mxu0 0
    %806 = vmatpush1.bf16.msra.mxu0 0
    %807 = vmatprep.subr.bf16.mxu0 0
    %808 = vmatpush1.bf16.msra.mxu0 0
    %809 = vmatprep.subr.bf16.mxu0 0
    %810 = vmatpush1.bf16.msra.mxu0 0
    %811 = vmatprep.subr.bf16.mxu0 0
    %812 = vmatpush1.bf16.msra.mxu0 0
    %813 = vmatprep.subr.bf16.mxu0 0
    %814 = vmatpush1.bf16.msra.mxu0 0
    %815 = vmatprep.subr.bf16.mxu0 0
    %816 = vmatpush1.bf16.msra.mxu0 0
    %817 = vmatprep.subr.bf16.mxu0 0
    %818 = vmatpush1.bf16.msra.mxu0 0
    %819 = vmatprep.mubr.bf16.mxu0 0
    %820 = vmatmul.mubr.bf16.gmra.mrb[0].mxu0 %v546
    %v821 = vpop.f32.mrb[0].mxu0
    %v822 = vadd.f32 %v669, %v821
    %v823 = vpop.f32.mrb[0].mxu0
    %v824 = vadd.f32 %v671, %v823
    %v825 = vpop.f32.mrb[0].mxu0
    %v826 = vadd.f32 %v673, %v825
    %v827 = vpop.f32.mrb[0].mxu0
    %v828 = vadd.f32 %v675, %v827
    %829 = vmatprep.mubr.bf16.mxu0 0
    %830 = vmatmul.mubr.bf16.gmra.mrb[0].mxu0 %v547
    %v831 = vpop.f32.mrb[0].mxu0
    %v832 = vadd.f32 %v679, %v831
    %v833 = vpop.f32.mrb[0].mxu0
    %v834 = vadd.f32 %v681, %v833
    %v835 = vpop.f32.mrb[0].mxu0
    %v836 = vadd.f32 %v683, %v835
    %v837 = vpop.f32.mrb[0].mxu0
    %v838 = vadd.f32 %v685, %v837
    %839 = vmatprep.mubr.bf16.mxu0 0
    %840 = vmatmul.mubr.bf16.gmra.mrb[0].mxu0 %v548
    %v841 = vpop.f32.mrb[0].mxu0
    %v842 = vadd.f32 %v689, %v841
    %v843 = vpop.f32.mrb[0].mxu0
    %v844 = vadd.f32 %v691, %v843
    %v845 = vpop.f32.mrb[0].mxu0
    %v846 = vadd.f32 %v693, %v845
    %v847 = vpop.f32.mrb[0].mxu0
    %v848 = vadd.f32 %v695, %v847
    %849 = vmatprep.mubr.bf16.mxu0 0
    %850 = vmatmul.mubr.bf16.gmra.mrb[0].mxu0 %v549
    %v851 = vpop.f32.mrb[0].mxu0
    %v852 = vadd.f32 %v699, %v851
    %v853 = vpop.f32.mrb[0].mxu0
    %v854 = vadd.f32 %v701, %v853
    %v855 = vpop.f32.mrb[0].mxu0
    %v856 = vadd.f32 %v703, %v855
    %v857 = vpop.f32.mrb[0].mxu0
    %v858 = vadd.f32 %v705, %v857
    %859 = vdwg.mxu0
    %v860 = vpack.c.bf16 %v491, %v490
    %v861 = vpack.c.bf16 %v493, %v492
    %v862 = vpack.c.bf16 %v495, %v494
    %v863 = vpack.c.bf16 %v497, %v496
    %v880 = vunpack.c.l.b16 %v530
    %v881 = vunpack.c.h.b16 %v530
    %v882 = vunpack.c.l.b16 %v531
    %v883 = vunpack.c.h.b16 %v531
    %v884 = vunpack.c.l.b16 %v532
    %v885 = vunpack.c.h.b16 %v532
    %v886 = vunpack.c.l.b16 %v533
    %v887 = vunpack.c.h.b16 %v533
    %v888 = vunpack.c.l.b16 %v534
    %v889 = vunpack.c.h.b16 %v534
    %v890 = vunpack.c.l.b16 %v535
    %v891 = vunpack.c.h.b16 %v535
    %v892 = vunpack.c.l.b16 %v536
    %v893 = vunpack.c.h.b16 %v536
    %v894 = vunpack.c.l.b16 %v537
    %v895 = vunpack.c.h.b16 %v537
    %v896 = vunpack.c.l.b16 %v538
    %v897 = vunpack.c.h.b16 %v538
    %v898 = vunpack.c.l.b16 %v539
    %v899 = vunpack.c.h.b16 %v539
    %v900 = vunpack.c.l.b16 %v540
    %v901 = vunpack.c.h.b16 %v540
    %v902 = vunpack.c.l.b16 %v541
    %v903 = vunpack.c.h.b16 %v541
    %v904 = vunpack.c.l.b16 %v542
    %v905 = vunpack.c.h.b16 %v542
    %v906 = vunpack.c.l.b16 %v543
    %v907 = vunpack.c.h.b16 %v543
    %v908 = vunpack.c.l.b16 %v544
    %v909 = vunpack.c.h.b16 %v544
    %v910 = vunpack.c.l.b16 %v545
    %v911 = vunpack.c.h.b16 %v545
    %v912 = vpack.c.b16 %v882, %v880
    %v913 = vpack.c.b16 %v883, %v881
    %v914 = vpack.c.b16 %v886, %v884
    %v915 = vpack.c.b16 %v887, %v885
    %v916 = vpack.c.b16 %v890, %v888
    %v917 = vpack.c.b16 %v891, %v889
    %v918 = vpack.c.b16 %v894, %v892
    %v919 = vpack.c.b16 %v895, %v893
    %v920 = vpack.c.b16 %v898, %v896
    %v921 = vpack.c.b16 %v899, %v897
    %v922 = vpack.c.b16 %v902, %v900
    %v923 = vpack.c.b16 %v903, %v901
    %v924 = vpack.c.b16 %v906, %v904
    %v925 = vpack.c.b16 %v907, %v905
    %v926 = vpack.c.b16 %v910, %v908
    %v927 = vpack.c.b16 %v911, %v909
    %944 = vmatprep.subr.bf16.mxu0 %v913
    %945 = vmatpush1.bf16.msra.mxu0 %v912
    %946 = vmatprep.subr.bf16.mxu0 %v915
    %947 = vmatpush1.bf16.msra.mxu0 %v914
    %948 = vmatprep.subr.bf16.mxu0 %v917
    %949 = vmatpush1.bf16.msra.mxu0 %v916
    %950 = vmatprep.subr.bf16.mxu0 %v919
    %951 = vmatpush1.bf16.msra.mxu0 %v918
    %952 = vmatprep.subr.bf16.mxu0 %v921
    %953 = vmatpush1.bf16.msra.mxu0 %v920
    %954 = vmatprep.subr.bf16.mxu0 %v923
    %955 = vmatpush1.bf16.msra.mxu0 %v922
    %956 = vmatprep.subr.bf16.mxu0 %v925
    %957 = vmatpush1.bf16.msra.mxu0 %v924
    %958 = vmatprep.subr.bf16.mxu0 %v927
    %959 = vmatpush1.bf16.msra.mxu0 %v926
    %960 = vmatprep.subr.bf16.mxu0 0
    %961 = vmatpush1.bf16.msra.mxu0 0
    %962 = vmatprep.subr.bf16.mxu0 0
    %963 = vmatpush1.bf16.msra.mxu0 0
    %964 = vmatprep.subr.bf16.mxu0 0
    %965 = vmatpush1.bf16.msra.mxu0 0
    %966 = vmatprep.subr.bf16.mxu0 0
    %967 = vmatpush1.bf16.msra.mxu0 0
    %968 = vmatprep.subr.bf16.mxu0 0
    %969 = vmatpush1.bf16.msra.mxu0 0
    %970 = vmatprep.subr.bf16.mxu0 0
    %971 = vmatpush1.bf16.msra.mxu0 0
    %972 = vmatprep.subr.bf16.mxu0 0
    %973 = vmatpush1.bf16.msra.mxu0 0
    %974 = vmatprep.subr.bf16.mxu0 0
    %975 = vmatpush1.bf16.msra.mxu0 0
    %976 = vmatprep.mubr.bf16.mxu0 0
    %977 = vmatmul.mubr.bf16.gmra.mrb[0].mxu0 %v860
    %v978 = vpop.f32.mrb[0].mxu0
    %v979 = vadd.f32 0.0, %v978
    %v980 = vpop.f32.mrb[0].mxu0
    %v981 = vadd.f32 0.0, %v980
    %v982 = vpop.f32.mrb[0].mxu0
    %v983 = vadd.f32 0.0, %v982
    %v984 = vpop.f32.mrb[0].mxu0
    %v985 = vadd.f32 0.0, %v984
    %986 = vmatprep.mubr.bf16.mxu0 0
    %987 = vmatmul.mubr.bf16.gmra.mrb[0].mxu0 %v861
    %v988 = vpop.f32.mrb[0].mxu0
    %v989 = vadd.f32 0.0, %v988
    %v990 = vpop.f32.mrb[0].mxu0
    %v991 = vadd.f32 0.0, %v990
    %v992 = vpop.f32.mrb[0].mxu0
    %v993 = vadd.f32 0.0, %v992
    %v994 = vpop.f32.mrb[0].mxu0
    %v995 = vadd.f32 0.0, %v994
    %996 = vmatprep.mubr.bf16.mxu0 0
    %997 = vmatmul.mubr.bf16.gmra.mrb[0].mxu0 %v862
    %v998 = vpop.f32.mrb[0].mxu0
    %v999 = vadd.f32 0.0, %v998
    %v1000 = vpop.f32.mrb[0].mxu0
    %v1001 = vadd.f32 0.0, %v1000
    %v1002 = vpop.f32.mrb[0].mxu0
    %v1003 = vadd.f32 0.0, %v1002
    %v1004 = vpop.f32.mrb[0].mxu0
    %v1005 = vadd.f32 0.0, %v1004
    %1006 = vmatprep.mubr.bf16.mxu0 0
    %1007 = vmatmul.mubr.bf16.gmra.mrb[0].mxu0 %v863
    %v1008 = vpop.f32.mrb[0].mxu0
    %v1009 = vadd.f32 0.0, %v1008
    %v1010 = vpop.f32.mrb[0].mxu0
    %v1011 = vadd.f32 0.0, %v1010
    %v1012 = vpop.f32.mrb[0].mxu0
    %v1013 = vadd.f32 0.0, %v1012
    %v1014 = vpop.f32.mrb[0].mxu0
    %v1015 = vadd.f32 0.0, %v1014
    %1016 = vdwg.mxu0
    %v1017 = vadd.f32 %v822, %v979
    %v1018 = vadd.f32 %v824, %v981
    %v1019 = vadd.f32 %v826, %v983
    %v1020 = vadd.f32 %v828, %v985
    %v1021 = vadd.f32 %v832, %v989
    %v1022 = vadd.f32 %v834, %v991
    %v1023 = vadd.f32 %v836, %v993
    %v1024 = vadd.f32 %v838, %v995
    %v1025 = vadd.f32 %v842, %v999
    %v1026 = vadd.f32 %v844, %v1001
    %v1027 = vadd.f32 %v846, %v1003
    %v1028 = vadd.f32 %v848, %v1005
    %v1029 = vadd.f32 %v852, %v1009
    %v1030 = vadd.f32 %v854, %v1011
    %v1031 = vadd.f32 %v856, %v1013
    %v1032 = vadd.f32 %v858, %v1015
    %s1033 = scalar_lea.vmem %s2, 1
    %v1034 = vld [vmem:[%s1033] ss:$8 sm:$0x3]
    %v1036 = vlaneseq
    %v1037 = vshrl.u32 %v1036, 7
    %v1038 = vsub.s32 0, %v1037
    %v1039 = vrot.slane %v1034, %v1038
    %v1040 = vlaneseq
    %v1041 = vshrl.u32 %v1040, 7
    %v1042 = vsub.s32 1, %v1041
    %v1043 = vrot.slane %v1034, %v1042
    %v1046 = vadd.f32 %v1017, %v1039
    %v1047 = vadd.f32 %v1018, %v1043
    %v1048 = vadd.f32 %v1019, %v1039
    %v1049 = vadd.f32 %v1020, %v1043
    %v1050 = vadd.f32 %v1021, %v1039
    %v1051 = vadd.f32 %v1022, %v1043
    %v1052 = vadd.f32 %v1023, %v1039
    %v1053 = vadd.f32 %v1024, %v1043
    %v1054 = vadd.f32 %v1025, %v1039
    %v1055 = vadd.f32 %v1026, %v1043
    %v1056 = vadd.f32 %v1027, %v1039
    %v1057 = vadd.f32 %v1028, %v1043
    %v1058 = vadd.f32 %v1029, %v1039
    %v1059 = vadd.f32 %v1030, %v1043
    %v1060 = vadd.f32 %v1031, %v1039
    %v1061 = vadd.f32 %v1032, %v1043
    %v1062 = vmax.f32 %v1046, 0.0
    %v1063 = vmax.f32 %v1047, 0.0
    %v1064 = vmax.f32 %v1048, 0.0
    %v1065 = vmax.f32 %v1049, 0.0
    %v1066 = vmax.f32 %v1050, 0.0
    %v1067 = vmax.f32 %v1051, 0.0
    %v1068 = vmax.f32 %v1052, 0.0
    %v1069 = vmax.f32 %v1053, 0.0
    %v1070 = vmax.f32 %v1054, 0.0
    %v1071 = vmax.f32 %v1055, 0.0
    %v1072 = vmax.f32 %v1056, 0.0
    %v1073 = vmax.f32 %v1057, 0.0
    %v1074 = vmax.f32 %v1058, 0.0
    %v1075 = vmax.f32 %v1059, 0.0
    %v1076 = vmax.f32 %v1060, 0.0
    %v1077 = vmax.f32 %v1061, 0.0
    %v1078 = vmax.f32 %v1062, %v1063
    %v1079 = vmax.f32 %v1064, %v1065
    %v1080 = vmax.f32 %v1066, %v1067
    %v1081 = vmax.f32 %v1068, %v1069
    %v1082 = vmax.f32 %v1070, %v1071
    %v1083 = vmax.f32 %v1072, %v1073
    %v1084 = vmax.f32 %v1074, %v1075
    %v1085 = vmax.f32 %v1076, %v1077
    %vm1086 = vcmask 523264
    %1087 = vst.msk [vmem:[#allocation3] sm:$0xff] %vm1086, %v1078
    %1088 = vst.msk [vmem:[#allocation3 + $0x8] sm:$0xff] %vm1086, %v1079
    %1089 = vst.msk [vmem:[#allocation3 + $0x10] sm:$0xff] %vm1086, %v1080
    %1090 = vst.msk [vmem:[#allocation3 + $0x18] sm:$0xff] %vm1086, %v1081
    %1091 = vst.msk [vmem:[#allocation3 + $0x20] sm:$0xff] %vm1086, %v1082
    %1092 = vst.msk [vmem:[#allocation3 + $0x28] sm:$0xff] %vm1086, %v1083
    %1093 = vst.msk [vmem:[#allocation3 + $0x30] sm:$0xff] %vm1086, %v1084
    %1094 = vst.msk [vmem:[#allocation3 + $0x38] sm:$0xff] %vm1086, %v1085
    %v1095 = vld [vmem:[#allocation3] ss:$2 sm:$0xff]
    %s1096 = scalar_lea.vmem [#allocation3], 16
    %v1097 = vld [vmem:[%s1096] ss:$2 sm:$0xff]
    %s1098 = scalar_lea.vmem [#allocation3], 32
    %v1099 = vld [vmem:[%s1098] ss:$2 sm:$0xff]
    %s1100 = scalar_lea.vmem [#allocation3], 48
    %v1101 = vld [vmem:[%s1100] ss:$2 sm:$0xff]
    %s1102 = scalar_lea.vmem [#allocation3], 1
    %v1103 = vld [vmem:[%s1102] ss:$2 sm:$0xff]
    %s1104 = scalar_lea.vmem [#allocation3], 17
    %v1105 = vld [vmem:[%s1104] ss:$2 sm:$0xff]
    %s1106 = scalar_lea.vmem [#allocation3], 33
    %v1107 = vld [vmem:[%s1106] ss:$2 sm:$0xff]
    %s1108 = scalar_lea.vmem [#allocation3], 49
    %v1109 = vld [vmem:[%s1108] ss:$2 sm:$0xff]
    %v1110 = vmax.f32 %v1095, %v1103
    %v1111 = vmax.f32 %v1097, %v1105
    %v1112 = vmax.f32 %v1099, %v1107
    %v1113 = vmax.f32 %v1101, %v1109
    %v1114 = vand.u32 %v37, 15
    %v1115 = vand.u32 %v38, 15
    %v1116 = vand.u32 %v39, 15
    %v1117 = vand.u32 %v40, 15
    %vm1118 = vcmp.eq.s32.totalorder %v1114, 0
    %vm1119 = vcmp.eq.s32.totalorder %v1115, 0
    %vm1120 = vcmp.eq.s32.totalorder %v1116, 0
    %vm1121 = vcmp.eq.s32.totalorder %v1117, 0
    %vm1122 = vcmp.eq.s32.totalorder %v1114, 15
    %vm1123 = vcmp.eq.s32.totalorder %v1115, 15
    %vm1124 = vcmp.eq.s32.totalorder %v1116, 15
    %vm1125 = vcmp.eq.s32.totalorder %v1117, 15
    %1126 = vst.msk [vmem:[#allocation2 + $0x10] sm:$0xff] %vm1086, %v1110
    %1127 = vst.msk [vmem:[#allocation2 + $0x18] sm:$0xff] %vm1086, %v1111
    %1128 = vst.msk [vmem:[#allocation2 + $0x20] sm:$0xff] %vm1086, %v1112
    %1129 = vst.msk [vmem:[#allocation2 + $0x28] sm:$0xff] %vm1086, %v1113
    %v1130 = vld [vmem:[#allocation2 + $0xf] sm:$0xff]
    %v1131 = vld [vmem:[#allocation2 + $0x17] sm:$0xff]
    %v1132 = vld [vmem:[#allocation2 + $0x1f] sm:$0xff]
    %v1133 = vld [vmem:[#allocation2 + $0x27] sm:$0xff]
    %v1134 = vld [vmem:[#allocation2 + $0x11] sm:$0xff]
    %v1135 = vld [vmem:[#allocation2 + $0x19] sm:$0xff]
    %v1136 = vld [vmem:[#allocation2 + $0x21] sm:$0xff]
    %v1137 = vld [vmem:[#allocation2 + $0x29] sm:$0xff]
    %v1138 = vsel %vm1118, 1, 0
    %v1139 = vsel %vm1119, 1, 0
    %v1140 = vsel %vm1120, 1, 0
    %v1141 = vsel %vm1121, 1, 0
    %vm1142 = vcmp.eq.s32.totalorder %v1138, 1
    %vm1143 = vcmp.eq.s32.totalorder %v1139, 1
    %vm1144 = vcmp.eq.s32.totalorder %v1140, 1
    %vm1145 = vcmp.eq.s32.totalorder %v1141, 1
    %v1146 = vsel %vm1142, 0.0, %v1130
    %v1147 = vsel %vm1143, 0.0, %v1131
    %v1148 = vsel %vm1144, 0.0, %v1132
    %v1149 = vsel %vm1145, 0.0, %v1133
    %v1150 = vsel %vm1122, 1, 0
    %v1151 = vsel %vm1123, 1, 0
    %v1152 = vsel %vm1124, 1, 0
    %v1153 = vsel %vm1125, 1, 0
    %vm1154 = vcmp.eq.s32.totalorder %v1150, 1
    %vm1155 = vcmp.eq.s32.totalorder %v1151, 1
    %vm1156 = vcmp.eq.s32.totalorder %v1152, 1
    %vm1157 = vcmp.eq.s32.totalorder %v1153, 1
    %v1158 = vsel %vm1154, 0.0, %v1134
    %v1159 = vsel %vm1155, 0.0, %v1135
    %v1160 = vsel %vm1156, 0.0, %v1136
    %v1161 = vsel %vm1157, 0.0, %v1137
    %v1162 = vld [vmem:[%s1 + $0x1e0] sm:$0xf]
    %v1163 = vld [vmem:[%s1 + $0x1e8] sm:$0xf]
    %v1164 = vld [vmem:[%s1 + $0x1f0] sm:$0xf]
    %v1165 = vld [vmem:[%s1 + $0x1f8] sm:$0xf]
    %v1166 = vld [vmem:[%s1 + $0x200] sm:$0xf]
    %v1167 = vld [vmem:[%s1 + $0x208] sm:$0xf]
    %v1168 = vld [vmem:[%s1 + $0x210] sm:$0xf]
    %v1169 = vld [vmem:[%s1 + $0x218] sm:$0xf]
    %v1170 = vld [vmem:[%s1 + $0x220] sm:$0xf]
    %v1171 = vld [vmem:[%s1 + $0x228] sm:$0xf]
    %v1172 = vld [vmem:[%s1 + $0x230] sm:$0xf]
    %v1173 = vld [vmem:[%s1 + $0x238] sm:$0xf]
    %v1174 = vld [vmem:[%s1 + $0x240] sm:$0xf]
    %v1175 = vld [vmem:[%s1 + $0x248] sm:$0xf]
    %v1176 = vld [vmem:[%s1 + $0x250] sm:$0xf]
    %v1177 = vld [vmem:[%s1 + $0x258] sm:$0xf]
    %v1178 = vld [vmem:[%s1 + $0x260] sm:$0xf]
    %v1179 = vld [vmem:[%s1 + $0x268] sm:$0xf]
    %v1180 = vld [vmem:[%s1 + $0x270] sm:$0xf]
    %v1181 = vld [vmem:[%s1 + $0x278] sm:$0xf]
    %v1182 = vld [vmem:[%s1 + $0x280] sm:$0xf]
    %v1183 = vld [vmem:[%s1 + $0x288] sm:$0xf]
    %v1184 = vld [vmem:[%s1 + $0x290] sm:$0xf]
    %v1185 = vld [vmem:[%s1 + $0x298] sm:$0xf]
    %v1186 = vpack.c.bf16 %v1147, %v1146
    %v1187 = vpack.c.bf16 %v1149, %v1148
    %v1188 = vpack.c.bf16 %v1111, %v1110
    %v1189 = vpack.c.bf16 %v1113, %v1112
    %v1198 = vunpack.c.l.b16 %v1170
    %v1199 = vunpack.c.l.b16 %v1171
    %v1200 = vunpack.c.l.b16 %v1172
    %v1201 = vunpack.c.l.b16 %v1173
    %v1202 = vunpack.c.l.b16 %v1174
    %v1203 = vunpack.c.l.b16 %v1175
    %v1204 = vunpack.c.l.b16 %v1176
    %v1205 = vunpack.c.l.b16 %v1177
    %v1206 = vpack.c.b16 %v1199, %v1198
    %v1207 = vpack.c.b16 %v1201, %v1200
    %v1208 = vpack.c.b16 %v1203, %v1202
    %v1209 = vpack.c.b16 %v1205, %v1204
    %v1215 = vsel %vm1086, %v1188, 0
    %v1218 = vsel %vm1086, %v1189, 0
    %1220 = vmatprep.subr.bf16.mxu0 0
    %1221 = vmatpush1.bf16.msra.mxu0 %v1206
    %1222 = vmatprep.subr.bf16.mxu0 0
    %1223 = vmatpush1.bf16.msra.mxu0 %v1207
    %1224 = vmatprep.subr.bf16.mxu0 0
    %1225 = vmatpush1.bf16.msra.mxu0 %v1208
    %1226 = vmatprep.subr.bf16.mxu0 0
    %1227 = vmatpush1.bf16.msra.mxu0 %v1209
    %1228 = vmatprep.subr.bf16.mxu0 0
    %1229 = vmatpush1.bf16.msra.mxu0 0
    %1230 = vmatprep.subr.bf16.mxu0 0
    %1231 = vmatpush1.bf16.msra.mxu0 0
    %1232 = vmatprep.subr.bf16.mxu0 0
    %1233 = vmatpush1.bf16.msra.mxu0 0
    %1234 = vmatprep.subr.bf16.mxu0 0
    %1235 = vmatpush1.bf16.msra.mxu0 0
    %1236 = vmatprep.subr.bf16.mxu0 0
    %1237 = vmatpush1.bf16.msra.mxu0 0
    %1238 = vmatprep.subr.bf16.mxu0 0
    %1239 = vmatpush1.bf16.msra.mxu0 0
    %1240 = vmatprep.subr.bf16.mxu0 0
    %1241 = vmatpush1.bf16.msra.mxu0 0
    %1242 = vmatprep.subr.bf16.mxu0 0
    %1243 = vmatpush1.bf16.msra.mxu0 0
    %1244 = vmatprep.subr.bf16.mxu0 0
    %1245 = vmatpush1.bf16.msra.mxu0 0
    %1246 = vmatprep.subr.bf16.mxu0 0
    %1247 = vmatpush1.bf16.msra.mxu0 0
    %1248 = vmatprep.subr.bf16.mxu0 0
    %1249 = vmatpush1.bf16.msra.mxu0 0
    %1250 = vmatprep.subr.bf16.mxu0 0
    %1251 = vmatpush1.bf16.msra.mxu0 0
    %1252 = vmatprep.mubr.bf16.mxu0 0
    %1253 = vmatmul.mubr.bf16.gmra.mrb[0].mxu0 %v1215
    %v1254 = vpop.f32.mrb[0].mxu0
    %v1255 = vadd.f32 0.0, %v1254
    %v1256 = vpop.f32.mrb[0].mxu0
    %v1257 = vpop.f32.mrb[0].mxu0
    %v1258 = vadd.f32 0.0, %v1257
    %v1259 = vpop.f32.mrb[0].mxu0
    %1260 = vmatprep.mubr.bf16.mxu0 0
    %1261 = vmatmul.mubr.bf16.gmra.mrb[0].mxu0 %v1218
    %v1262 = vpop.f32.mrb[0].mxu0
    %v1263 = vadd.f32 0.0, %v1262
    %v1264 = vpop.f32.mrb[0].mxu0
    %v1265 = vpop.f32.mrb[0].mxu0
    %v1266 = vadd.f32 0.0, %v1265
    %v1267 = vpop.f32.mrb[0].mxu0
    %1268 = vdwg.mxu0
    %v1277 = vunpack.c.l.b16 %v1162
    %v1278 = vunpack.c.l.b16 %v1163
    %v1279 = vunpack.c.l.b16 %v1164
    %v1280 = vunpack.c.l.b16 %v1165
    %v1281 = vunpack.c.l.b16 %v1166
    %v1282 = vunpack.c.l.b16 %v1167
    %v1283 = vunpack.c.l.b16 %v1168
    %v1284 = vunpack.c.l.b16 %v1169
    %v1285 = vpack.c.b16 %v1278, %v1277
    %v1286 = vpack.c.b16 %v1280, %v1279
    %v1287 = vpack.c.b16 %v1282, %v1281
    %v1288 = vpack.c.b16 %v1284, %v1283
    %v1294 = vsel %vm1086, %v1186, 0
    %v1297 = vsel %vm1086, %v1187, 0
    %1299 = vmatprep.subr.bf16.mxu0 0
    %1300 = vmatpush1.bf16.msra.mxu0 %v1285
    %1301 = vmatprep.subr.bf16.mxu0 0
    %1302 = vmatpush1.bf16.msra.mxu0 %v1286
    %1303 = vmatprep.subr.bf16.mxu0 0
    %1304 = vmatpush1.bf16.msra.mxu0 %v1287
    %1305 = vmatprep.subr.bf16.mxu0 0
    %1306 = vmatpush1.bf16.msra.mxu0 %v1288
    %1307 = vmatprep.subr.bf16.mxu0 0
    %1308 = vmatpush1.bf16.msra.mxu0 0
    %1309 = vmatprep.subr.bf16.mxu0 0
    %1310 = vmatpush1.bf16.msra.mxu0 0
    %1311 = vmatprep.subr.bf16.mxu0 0
    %1312 = vmatpush1.bf16.msra.mxu0 0
    %1313 = vmatprep.subr.bf16.mxu0 0
    %1314 = vmatpush1.bf16.msra.mxu0 0
    %1315 = vmatprep.subr.bf16.mxu0 0
    %1316 = vmatpush1.bf16.msra.mxu0 0
    %1317 = vmatprep.subr.bf16.mxu0 0
    %1318 = vmatpush1.bf16.msra.mxu0 0
    %1319 = vmatprep.subr.bf16.mxu0 0
    %1320 = vmatpush1.bf16.msra.mxu0 0
    %1321 = vmatprep.subr.bf16.mxu0 0
    %1322 = vmatpush1.bf16.msra.mxu0 0
    %1323 = vmatprep.subr.bf16.mxu0 0
    %1324 = vmatpush1.bf16.msra.mxu0 0
    %1325 = vmatprep.subr.bf16.mxu0 0
    %1326 = vmatpush1.bf16.msra.mxu0 0
    %1327 = vmatprep.subr.bf16.mxu0 0
    %1328 = vmatpush1.bf16.msra.mxu0 0
    %1329 = vmatprep.subr.bf16.mxu0 0
    %1330 = vmatpush1.bf16.msra.mxu0 0
    %1331 = vmatprep.mubr.bf16.mxu0 0
    %1332 = vmatmul.mubr.bf16.gmra.mrb[0].mxu0 %v1294
    %v1333 = vpop.f32.mrb[0].mxu0
    %v1334 = vadd.f32 %v1255, %v1333
    %v1335 = vpop.f32.mrb[0].mxu0
    %v1336 = vpop.f32.mrb[0].mxu0
    %v1337 = vadd.f32 %v1258, %v1336
    %v1338 = vpop.f32.mrb[0].mxu0
    %1339 = vmatprep.mubr.bf16.mxu0 0
    %1340 = vmatmul.mubr.bf16.gmra.mrb[0].mxu0 %v1297
    %v1341 = vpop.f32.mrb[0].mxu0
    %v1342 = vadd.f32 %v1263, %v1341
    %v1343 = vpop.f32.mrb[0].mxu0
    %v1344 = vpop.f32.mrb[0].mxu0
    %v1345 = vadd.f32 %v1266, %v1344
    %v1346 = vpop.f32.mrb[0].mxu0
    %1347 = vdwg.mxu0
    %v1348 = vpack.c.bf16 %v1159, %v1158
    %v1349 = vpack.c.bf16 %v1161, %v1160
    %v1358 = vunpack.c.l.b16 %v1178
    %v1359 = vunpack.c.l.b16 %v1179
    %v1360 = vunpack.c.l.b16 %v1180
    %v1361 = vunpack.c.l.b16 %v1181
    %v1362 = vunpack.c.l.b16 %v1182
    %v1363 = vunpack.c.l.b16 %v1183
    %v1364 = vunpack.c.l.b16 %v1184
    %v1365 = vunpack.c.l.b16 %v1185
    %v1366 = vpack.c.b16 %v1359, %v1358
    %v1367 = vpack.c.b16 %v1361, %v1360
    %v1368 = vpack.c.b16 %v1363, %v1362
    %v1369 = vpack.c.b16 %v1365, %v1364
    %v1375 = vsel %vm1086, %v1348, 0
    %v1378 = vsel %vm1086, %v1349, 0
    %1380 = vmatprep.subr.bf16.mxu0 0
    %1381 = vmatpush1.bf16.msra.mxu0 %v1366
    %1382 = vmatprep.subr.bf16.mxu0 0
    %1383 = vmatpush1.bf16.msra.mxu0 %v1367
    %1384 = vmatprep.subr.bf16.mxu0 0
    %1385 = vmatpush1.bf16.msra.mxu0 %v1368
    %1386 = vmatprep.subr.bf16.mxu0 0
    %1387 = vmatpush1.bf16.msra.mxu0 %v1369
    %1388 = vmatprep.subr.bf16.mxu0 0
    %1389 = vmatpush1.bf16.msra.mxu0 0
    %1390 = vmatprep.subr.bf16.mxu0 0
    %1391 = vmatpush1.bf16.msra.mxu0 0
    %1392 = vmatprep.subr.bf16.mxu0 0
    %1393 = vmatpush1.bf16.msra.mxu0 0
    %1394 = vmatprep.subr.bf16.mxu0 0
    %1395 = vmatpush1.bf16.msra.mxu0 0
    %1396 = vmatprep.subr.bf16.mxu0 0
    %1397 = vmatpush1.bf16.msra.mxu0 0
    %1398 = vmatprep.subr.bf16.mxu0 0
    %1399 = vmatpush1.bf16.msra.mxu0 0
    %1400 = vmatprep.subr.bf16.mxu0 0
    %1401 = vmatpush1.bf16.msra.mxu0 0
    %1402 = vmatprep.subr.bf16.mxu0 0
    %1403 = vmatpush1.bf16.msra.mxu0 0
    %1404 = vmatprep.subr.bf16.mxu0 0
    %1405 = vmatpush1.bf16.msra.mxu0 0
    %1406 = vmatprep.subr.bf16.mxu0 0
    %1407 = vmatpush1.bf16.msra.mxu0 0
    %1408 = vmatprep.subr.bf16.mxu0 0
    %1409 = vmatpush1.bf16.msra.mxu0 0
    %1410 = vmatprep.subr.bf16.mxu0 0
    %1411 = vmatpush1.bf16.msra.mxu0 0
    %1412 = vmatprep.mubr.bf16.mxu0 0
    %1413 = vmatmul.mubr.bf16.gmra.mrb[0].mxu0 %v1375
    %v1414 = vpop.f32.mrb[0].mxu0
    %v1415 = vadd.f32 0.0, %v1414
    %v1416 = vpop.f32.mrb[0].mxu0
    %v1417 = vpop.f32.mrb[0].mxu0
    %v1418 = vadd.f32 0.0, %v1417
    %v1419 = vpop.f32.mrb[0].mxu0
    %1420 = vmatprep.mubr.bf16.mxu0 0
    %1421 = vmatmul.mubr.bf16.gmra.mrb[0].mxu0 %v1378
    %v1422 = vpop.f32.mrb[0].mxu0
    %v1423 = vadd.f32 0.0, %v1422
    %v1424 = vpop.f32.mrb[0].mxu0
    %v1425 = vpop.f32.mrb[0].mxu0
    %v1426 = vadd.f32 0.0, %v1425
    %v1427 = vpop.f32.mrb[0].mxu0
    %1428 = vdwg.mxu0
    %v1429 = vadd.f32 %v1334, %v1415
    %v1430 = vadd.f32 %v1337, %v1418
    %v1431 = vadd.f32 %v1342, %v1423
    %v1432 = vadd.f32 %v1345, %v1426
    %v1433 = vld [vmem:[%s2 + $0x2] ss:$0 sm:$0xff]
    %v1434 = vadd.f32 %v1429, %v1433
    %v1435 = vadd.f32 %v1430, %v1433
    %v1436 = vadd.f32 %v1431, %v1433
    %v1437 = vadd.f32 %v1432, %v1433
    %v1438 = vmax.f32 %v1434, 0.0
    %v1439 = vmax.f32 %v1435, 0.0
    %v1440 = vmax.f32 %v1436, 0.0
    %v1441 = vmax.f32 %v1437, 0.0
    %1442 = vst [vmem:[#allocation2 + $0x10] sm:$0xff] %v1438
    %1443 = vst [vmem:[#allocation2 + $0x18] sm:$0xff] %v1439
    %1444 = vst [vmem:[#allocation2 + $0x20] sm:$0xff] %v1440
    %1445 = vst [vmem:[#allocation2 + $0x28] sm:$0xff] %v1441
    %v1446 = vld [vmem:[#allocation2 + $0xf] sm:$0xff]
    %v1447 = vld [vmem:[#allocation2 + $0x17] sm:$0xff]
    %v1448 = vld [vmem:[#allocation2 + $0x1f] sm:$0xff]
    %v1449 = vld [vmem:[#allocation2 + $0x27] sm:$0xff]
    %v1450 = vld [vmem:[#allocation2 + $0x11] sm:$0xff]
    %v1451 = vld [vmem:[#allocation2 + $0x19] sm:$0xff]
    %v1452 = vld [vmem:[#allocation2 + $0x21] sm:$0xff]
    %v1453 = vld [vmem:[#allocation2 + $0x29] sm:$0xff]
    %v1454 = vsel %vm1142, 0.0, %v1446
    %v1455 = vsel %vm1143, 0.0, %v1447
    %v1456 = vsel %vm1144, 0.0, %v1448
    %v1457 = vsel %vm1145, 0.0, %v1449
    %v1458 = vsel %vm1154, 0.0, %v1450
    %v1459 = vsel %vm1155, 0.0, %v1451
    %v1460 = vsel %vm1156, 0.0, %v1452
    %v1461 = vsel %vm1157, 0.0, %v1453
    %v1462 = vld [vmem:[%s1 + $0x2a0] sm:$0xff]
    %v1463 = vld [vmem:[%s1 + $0x2a8] sm:$0xff]
    %v1464 = vld [vmem:[%s1 + $0x2b0] sm:$0xff]
    %v1465 = vld [vmem:[%s1 + $0x2b8] sm:$0xff]
    %v1466 = vld [vmem:[%s1 + $0x2c0] sm:$0xff]
    %v1467 = vld [vmem:[%s1 + $0x2c8] sm:$0xff]
    %v1468 = vld [vmem:[%s1 + $0x2d0] sm:$0xff]
    %v1469 = vld [vmem:[%s1 + $0x2d8] sm:$0xff]
    %v1470 = vld [vmem:[%s1 + $0x2e0] sm:$0xff]
    %v1471 = vld [vmem:[%s1 + $0x2e8] sm:$0xff]
    %v1472 = vld [vmem:[%s1 + $0x2f0] sm:$0xff]
    %v1473 = vld [vmem:[%s1 + $0x2f8] sm:$0xff]
    %v1474 = vld [vmem:[%s1 + $0x300] sm:$0xff]
    %v1475 = vld [vmem:[%s1 + $0x308] sm:$0xff]
    %v1476 = vld [vmem:[%s1 + $0x310] sm:$0xff]
    %v1477 = vld [vmem:[%s1 + $0x318] sm:$0xff]
    %v1478 = vld [vmem:[%s1 + $0x320] sm:$0xff]
    %v1479 = vld [vmem:[%s1 + $0x328] sm:$0xff]
    %v1480 = vld [vmem:[%s1 + $0x330] sm:$0xff]
    %v1481 = vld [vmem:[%s1 + $0x338] sm:$0xff]
    %v1482 = vld [vmem:[%s1 + $0x340] sm:$0xff]
    %v1483 = vld [vmem:[%s1 + $0x348] sm:$0xff]
    %v1484 = vld [vmem:[%s1 + $0x350] sm:$0xff]
    %v1485 = vld [vmem:[%s1 + $0x358] sm:$0xff]
    %v1486 = vld [vmem:[%s1 + $0x360] sm:$0xff]
    %v1487 = vld [vmem:[%s1 + $0x368] sm:$0xff]
    %v1488 = vld [vmem:[%s1 + $0x370] sm:$0xff]
    %v1489 = vld [vmem:[%s1 + $0x378] sm:$0xff]
    %v1490 = vld [vmem:[%s1 + $0x380] sm:$0xff]
    %v1491 = vld [vmem:[%s1 + $0x388] sm:$0xff]
    %v1492 = vld [vmem:[%s1 + $0x390] sm:$0xff]
    %v1493 = vld [vmem:[%s1 + $0x398] sm:$0xff]
    %v1494 = vld [vmem:[%s1 + $0x3a0] sm:$0xff]
    %v1495 = vld [vmem:[%s1 + $0x3a8] sm:$0xff]
    %v1496 = vld [vmem:[%s1 + $0x3b0] sm:$0xff]
    %v1497 = vld [vmem:[%s1 + $0x3b8] sm:$0xff]
    %v1498 = vld [vmem:[%s1 + $0x3c0] sm:$0xff]
    %v1499 = vld [vmem:[%s1 + $0x3c8] sm:$0xff]
    %v1500 = vld [vmem:[%s1 + $0x3d0] sm:$0xff]
    %v1501 = vld [vmem:[%s1 + $0x3d8] sm:$0xff]
    %v1502 = vld [vmem:[%s1 + $0x3e0] sm:$0xff]
    %v1503 = vld [vmem:[%s1 + $0x3e8] sm:$0xff]
    %v1504 = vld [vmem:[%s1 + $0x3f0] sm:$0xff]
    %v1505 = vld [vmem:[%s1 + $0x3f8] sm:$0xff]
    %v1506 = vld [vmem:[%s1 + $0x400] sm:$0xff]
    %v1507 = vld [vmem:[%s1 + $0x408] sm:$0xff]
    %v1508 = vld [vmem:[%s1 + $0x410] sm:$0xff]
    %v1509 = vld [vmem:[%s1 + $0x418] sm:$0xff]
    %v1510 = vpack.c.bf16 %v1455, %v1454
    %v1511 = vpack.c.bf16 %v1457, %v1456
    %v1512 = vpack.c.bf16 %v1439, %v1438
    %v1513 = vpack.c.bf16 %v1441, %v1440
    %v1530 = vunpack.c.l.b16 %v1478
    %v1531 = vunpack.c.h.b16 %v1478
    %v1532 = vunpack.c.l.b16 %v1479
    %v1533 = vunpack.c.h.b16 %v1479
    %v1534 = vunpack.c.l.b16 %v1480
    %v1535 = vunpack.c.h.b16 %v1480
    %v1536 = vunpack.c.l.b16 %v1481
    %v1537 = vunpack.c.h.b16 %v1481
    %v1538 = vunpack.c.l.b16 %v1482
    %v1539 = vunpack.c.h.b16 %v1482
    %v1540 = vunpack.c.l.b16 %v1483
    %v1541 = vunpack.c.h.b16 %v1483
    %v1542 = vunpack.c.l.b16 %v1484
    %v1543 = vunpack.c.h.b16 %v1484
    %v1544 = vunpack.c.l.b16 %v1485
    %v1545 = vunpack.c.h.b16 %v1485
    %v1546 = vunpack.c.l.b16 %v1486
    %v1547 = vunpack.c.h.b16 %v1486
    %v1548 = vunpack.c.l.b16 %v1487
    %v1549 = vunpack.c.h.b16 %v1487
    %v1550 = vunpack.c.l.b16 %v1488
    %v1551 = vunpack.c.h.b16 %v1488
    %v1552 = vunpack.c.l.b16 %v1489
    %v1553 = vunpack.c.h.b16 %v1489
    %v1554 = vunpack.c.l.b16 %v1490
    %v1555 = vunpack.c.h.b16 %v1490
    %v1556 = vunpack.c.l.b16 %v1491
    %v1557 = vunpack.c.h.b16 %v1491
    %v1558 = vunpack.c.l.b16 %v1492
    %v1559 = vunpack.c.h.b16 %v1492
    %v1560 = vunpack.c.l.b16 %v1493
    %v1561 = vunpack.c.h.b16 %v1493
    %v1562 = vpack.c.b16 %v1532, %v1530
    %v1563 = vpack.c.b16 %v1533, %v1531
    %v1564 = vpack.c.b16 %v1536, %v1534
    %v1565 = vpack.c.b16 %v1537, %v1535
    %v1566 = vpack.c.b16 %v1540, %v1538
    %v1567 = vpack.c.b16 %v1541, %v1539
    %v1568 = vpack.c.b16 %v1544, %v1542
    %v1569 = vpack.c.b16 %v1545, %v1543
    %v1570 = vpack.c.b16 %v1548, %v1546
    %v1571 = vpack.c.b16 %v1549, %v1547
    %v1572 = vpack.c.b16 %v1552, %v1550
    %v1573 = vpack.c.b16 %v1553, %v1551
    %v1574 = vpack.c.b16 %v1556, %v1554
    %v1575 = vpack.c.b16 %v1557, %v1555
    %v1576 = vpack.c.b16 %v1560, %v1558
    %v1577 = vpack.c.b16 %v1561, %v1559
    %1594 = vmatprep.subr.bf16.mxu0 %v1563
    %1595 = vmatpush1.bf16.msra.mxu0 %v1562
    %1596 = vmatprep.subr.bf16.mxu0 %v1565
    %1597 = vmatpush1.bf16.msra.mxu0 %v1564
    %1598 = vmatprep.subr.bf16.mxu0 %v1567
    %1599 = vmatpush1.bf16.msra.mxu0 %v1566
    %1600 = vmatprep.subr.bf16.mxu0 %v1569
    %1601 = vmatpush1.bf16.msra.mxu0 %v1568
    %1602 = vmatprep.subr.bf16.mxu0 %v1571
    %1603 = vmatpush1.bf16.msra.mxu0 %v1570
    %1604 = vmatprep.subr.bf16.mxu0 %v1573
    %1605 = vmatpush1.bf16.msra.mxu0 %v1572
    %1606 = vmatprep.subr.bf16.mxu0 %v1575
    %1607 = vmatpush1.bf16.msra.mxu0 %v1574
    %1608 = vmatprep.subr.bf16.mxu0 %v1577
    %1609 = vmatpush1.bf16.msra.mxu0 %v1576
    %1610 = vmatprep.subr.bf16.mxu0 0
    %1611 = vmatpush1.bf16.msra.mxu0 0
    %1612 = vmatprep.subr.bf16.mxu0 0
    %1613 = vmatpush1.bf16.msra.mxu0 0
    %1614 = vmatprep.subr.bf16.mxu0 0
    %1615 = vmatpush1.bf16.msra.mxu0 0
    %1616 = vmatprep.subr.bf16.mxu0 0
    %1617 = vmatpush1.bf16.msra.mxu0 0
    %1618 = vmatprep.subr.bf16.mxu0 0
    %1619 = vmatpush1.bf16.msra.mxu0 0
    %1620 = vmatprep.subr.bf16.mxu0 0
    %1621 = vmatpush1.bf16.msra.mxu0 0
    %1622 = vmatprep.subr.bf16.mxu0 0
    %1623 = vmatpush1.bf16.msra.mxu0 0
    %1624 = vmatprep.subr.bf16.mxu0 0
    %1625 = vmatpush1.bf16.msra.mxu0 0
    %1626 = vmatprep.mubr.bf16.mxu0 0
    %1627 = vmatmul.mubr.bf16.gmra.mrb[0].mxu0 %v1512
    %v1628 = vpop.f32.mrb[0].mxu0
    %v1629 = vadd.f32 0.0, %v1628
    %v1630 = vpop.f32.mrb[0].mxu0
    %v1631 = vadd.f32 0.0, %v1630
    %v1632 = vpop.f32.mrb[0].mxu0
    %v1633 = vadd.f32 0.0, %v1632
    %v1634 = vpop.f32.mrb[0].mxu0
    %v1635 = vadd.f32 0.0, %v1634
    %1636 = vmatprep.mubr.bf16.mxu0 0
    %1637 = vmatmul.mubr.bf16.gmra.mrb[0].mxu0 %v1513
    %v1638 = vpop.f32.mrb[0].mxu0
    %v1639 = vadd.f32 0.0, %v1638
    %v1640 = vpop.f32.mrb[0].mxu0
    %v1641 = vadd.f32 0.0, %v1640
    %v1642 = vpop.f32.mrb[0].mxu0
    %v1643 = vadd.f32 0.0, %v1642
    %v1644 = vpop.f32.mrb[0].mxu0
    %v1645 = vadd.f32 0.0, %v1644
    %1646 = vdwg.mxu0
    %v1663 = vunpack.c.l.b16 %v1462
    %v1664 = vunpack.c.h.b16 %v1462
    %v1665 = vunpack.c.l.b16 %v1463
    %v1666 = vunpack.c.h.b16 %v1463
    %v1667 = vunpack.c.l.b16 %v1464
    %v1668 = vunpack.c.h.b16 %v1464
    %v1669 = vunpack.c.l.b16 %v1465
    %v1670 = vunpack.c.h.b16 %v1465
    %v1671 = vunpack.c.l.b16 %v1466
    %v1672 = vunpack.c.h.b16 %v1466
    %v1673 = vunpack.c.l.b16 %v1467
    %v1674 = vunpack.c.h.b16 %v1467
    %v1675 = vunpack.c.l.b16 %v1468
    %v1676 = vunpack.c.h.b16 %v1468
    %v1677 = vunpack.c.l.b16 %v1469
    %v1678 = vunpack.c.h.b16 %v1469
    %v1679 = vunpack.c.l.b16 %v1470
    %v1680 = vunpack.c.h.b16 %v1470
    %v1681 = vunpack.c.l.b16 %v1471
    %v1682 = vunpack.c.h.b16 %v1471
    %v1683 = vunpack.c.l.b16 %v1472
    %v1684 = vunpack.c.h.b16 %v1472
    %v1685 = vunpack.c.l.b16 %v1473
    %v1686 = vunpack.c.h.b16 %v1473
    %v1687 = vunpack.c.l.b16 %v1474
    %v1688 = vunpack.c.h.b16 %v1474
    %v1689 = vunpack.c.l.b16 %v1475
    %v1690 = vunpack.c.h.b16 %v1475
    %v1691 = vunpack.c.l.b16 %v1476
    %v1692 = vunpack.c.h.b16 %v1476
    %v1693 = vunpack.c.l.b16 %v1477
    %v1694 = vunpack.c.h.b16 %v1477
    %v1695 = vpack.c.b16 %v1665, %v1663
    %v1696 = vpack.c.b16 %v1666, %v1664
    %v1697 = vpack.c.b16 %v1669, %v1667
    %v1698 = vpack.c.b16 %v1670, %v1668
    %v1699 = vpack.c.b16 %v1673, %v1671
    %v1700 = vpack.c.b16 %v1674, %v1672
    %v1701 = vpack.c.b16 %v1677, %v1675
    %v1702 = vpack.c.b16 %v1678, %v1676
    %v1703 = vpack.c.b16 %v1681, %v1679
    %v1704 = vpack.c.b16 %v1682, %v1680
    %v1705 = vpack.c.b16 %v1685, %v1683
    %v1706 = vpack.c.b16 %v1686, %v1684
    %v1707 = vpack.c.b16 %v1689, %v1687
    %v1708 = vpack.c.b16 %v1690, %v1688
    %v1709 = vpack.c.b16 %v1693, %v1691
    %v1710 = vpack.c.b16 %v1694, %v1692
    %1727 = vmatprep.subr.bf16.mxu0 %v1696
    %1728 = vmatpush1.bf16.msra.mxu0 %v1695
    %1729 = vmatprep.subr.bf16.mxu0 %v1698
    %1730 = vmatpush1.bf16.msra.mxu0 %v1697
    %1731 = vmatprep.subr.bf16.mxu0 %v1700
    %1732 = vmatpush1.bf16.msra.mxu0 %v1699
    %1733 = vmatprep.subr.bf16.mxu0 %v1702
    %1734 = vmatpush1.bf16.msra.mxu0 %v1701
    %1735 = vmatprep.subr.bf16.mxu0 %v1704
    %1736 = vmatpush1.bf16.msra.mxu0 %v1703
    %1737 = vmatprep.subr.bf16.mxu0 %v1706
    %1738 = vmatpush1.bf16.msra.mxu0 %v1705
    %1739 = vmatprep.subr.bf16.mxu0 %v1708
    %1740 = vmatpush1.bf16.msra.mxu0 %v1707
    %1741 = vmatprep.subr.bf16.mxu0 %v1710
    %1742 = vmatpush1.bf16.msra.mxu0 %v1709
    %1743 = vmatprep.subr.bf16.mxu0 0
    %1744 = vmatpush1.bf16.msra.mxu0 0
    %1745 = vmatprep.subr.bf16.mxu0 0
    %1746 = vmatpush1.bf16.msra.mxu0 0
    %1747 = vmatprep.subr.bf16.mxu0 0
    %1748 = vmatpush1.bf16.msra.mxu0 0
    %1749 = vmatprep.subr.bf16.mxu0 0
    %1750 = vmatpush1.bf16.msra.mxu0 0
    %1751 = vmatprep.subr.bf16.mxu0 0
    %1752 = vmatpush1.bf16.msra.mxu0 0
    %1753 = vmatprep.subr.bf16.mxu0 0
    %1754 = vmatpush1.bf16.msra.mxu0 0
    %1755 = vmatprep.subr.bf16.mxu0 0
    %1756 = vmatpush1.bf16.msra.mxu0 0
    %1757 = vmatprep.subr.bf16.mxu0 0
    %1758 = vmatpush1.bf16.msra.mxu0 0
    %1759 = vmatprep.mubr.bf16.mxu0 0
    %1760 = vmatmul.mubr.bf16.gmra.mrb[0].mxu0 %v1510
    %v1761 = vpop.f32.mrb[0].mxu0
    %v1762 = vadd.f32 %v1629, %v1761
    %v1763 = vpop.f32.mrb[0].mxu0
    %v1764 = vadd.f32 %v1631, %v1763
    %v1765 = vpop.f32.mrb[0].mxu0
    %v1766 = vadd.f32 %v1633, %v1765
    %v1767 = vpop.f32.mrb[0].mxu0
    %v1768 = vadd.f32 %v1635, %v1767
    %1769 = vmatprep.mubr.bf16.mxu0 0
    %1770 = vmatmul.mubr.bf16.gmra.mrb[0].mxu0 %v1511
    %v1771 = vpop.f32.mrb[0].mxu0
    %v1772 = vadd.f32 %v1639, %v1771
    %v1773 = vpop.f32.mrb[0].mxu0
    %v1774 = vadd.f32 %v1641, %v1773
    %v1775 = vpop.f32.mrb[0].mxu0
    %v1776 = vadd.f32 %v1643, %v1775
    %v1777 = vpop.f32.mrb[0].mxu0
    %v1778 = vadd.f32 %v1645, %v1777
    %1779 = vdwg.mxu0
    %v1780 = vpack.c.bf16 %v1459, %v1458
    %v1781 = vpack.c.bf16 %v1461, %v1460
    %v1798 = vunpack.c.l.b16 %v1494
    %v1799 = vunpack.c.h.b16 %v1494
    %v1800 = vunpack.c.l.b16 %v1495
    %v1801 = vunpack.c.h.b16 %v1495
    %v1802 = vunpack.c.l.b16 %v1496
    %v1803 = vunpack.c.h.b16 %v1496
    %v1804 = vunpack.c.l.b16 %v1497
    %v1805 = vunpack.c.h.b16 %v1497
    %v1806 = vunpack.c.l.b16 %v1498
    %v1807 = vunpack.c.h.b16 %v1498
    %v1808 = vunpack.c.l.b16 %v1499
    %v1809 = vunpack.c.h.b16 %v1499
    %v1810 = vunpack.c.l.b16 %v1500
    %v1811 = vunpack.c.h.b16 %v1500
    %v1812 = vunpack.c.l.b16 %v1501
    %v1813 = vunpack.c.h.b16 %v1501
    %v1814 = vunpack.c.l.b16 %v1502
    %v1815 = vunpack.c.h.b16 %v1502
    %v1816 = vunpack.c.l.b16 %v1503
    %v1817 = vunpack.c.h.b16 %v1503
    %v1818 = vunpack.c.l.b16 %v1504
    %v1819 = vunpack.c.h.b16 %v1504
    %v1820 = vunpack.c.l.b16 %v1505
    %v1821 = vunpack.c.h.b16 %v1505
    %v1822 = vunpack.c.l.b16 %v1506
    %v1823 = vunpack.c.h.b16 %v1506
    %v1824 = vunpack.c.l.b16 %v1507
    %v1825 = vunpack.c.h.b16 %v1507
    %v1826 = vunpack.c.l.b16 %v1508
    %v1827 = vunpack.c.h.b16 %v1508
    %v1828 = vunpack.c.l.b16 %v1509
    %v1829 = vunpack.c.h.b16 %v1509
    %v1830 = vpack.c.b16 %v1800, %v1798
    %v1831 = vpack.c.b16 %v1801, %v1799
    %v1832 = vpack.c.b16 %v1804, %v1802
    %v1833 = vpack.c.b16 %v1805, %v1803
    %v1834 = vpack.c.b16 %v1808, %v1806
    %v1835 = vpack.c.b16 %v1809, %v1807
    %v1836 = vpack.c.b16 %v1812, %v1810
    %v1837 = vpack.c.b16 %v1813, %v1811
    %v1838 = vpack.c.b16 %v1816, %v1814
    %v1839 = vpack.c.b16 %v1817, %v1815
    %v1840 = vpack.c.b16 %v1820, %v1818
    %v1841 = vpack.c.b16 %v1821, %v1819
    %v1842 = vpack.c.b16 %v1824, %v1822
    %v1843 = vpack.c.b16 %v1825, %v1823
    %v1844 = vpack.c.b16 %v1828, %v1826
    %v1845 = vpack.c.b16 %v1829, %v1827
    %1862 = vmatprep.subr.bf16.mxu0 %v1831
    %1863 = vmatpush1.bf16.msra.mxu0 %v1830
    %1864 = vmatprep.subr.bf16.mxu0 %v1833
    %1865 = vmatpush1.bf16.msra.mxu0 %v1832
    %1866 = vmatprep.subr.bf16.mxu0 %v1835
    %1867 = vmatpush1.bf16.msra.mxu0 %v1834
    %1868 = vmatprep.subr.bf16.mxu0 %v1837
    %1869 = vmatpush1.bf16.msra.mxu0 %v1836
    %1870 = vmatprep.subr.bf16.mxu0 %v1839
    %1871 = vmatpush1.bf16.msra.mxu0 %v1838
    %1872 = vmatprep.subr.bf16.mxu0 %v1841
    %1873 = vmatpush1.bf16.msra.mxu0 %v1840
    %1874 = vmatprep.subr.bf16.mxu0 %v1843
    %1875 = vmatpush1.bf16.msra.mxu0 %v1842
    %1876 = vmatprep.subr.bf16.mxu0 %v1845
    %1877 = vmatpush1.bf16.msra.mxu0 %v1844
    %1878 = vmatprep.subr.bf16.mxu0 0
    %1879 = vmatpush1.bf16.msra.mxu0 0
    %1880 = vmatprep.subr.bf16.mxu0 0
    %1881 = vmatpush1.bf16.msra.mxu0 0
    %1882 = vmatprep.subr.bf16.mxu0 0
    %1883 = vmatpush1.bf16.msra.mxu0 0
    %1884 = vmatprep.subr.bf16.mxu0 0
    %1885 = vmatpush1.bf16.msra.mxu0 0
    %1886 = vmatprep.subr.bf16.mxu0 0
    %1887 = vmatpush1.bf16.msra.mxu0 0
    %1888 = vmatprep.subr.bf16.mxu0 0
    %1889 = vmatpush1.bf16.msra.mxu0 0
    %1890 = vmatprep.subr.bf16.mxu0 0
    %1891 = vmatpush1.bf16.msra.mxu0 0
    %1892 = vmatprep.subr.bf16.mxu0 0
    %1893 = vmatpush1.bf16.msra.mxu0 0
    %1894 = vmatprep.mubr.bf16.mxu0 0
    %1895 = vmatmul.mubr.bf16.gmra.mrb[0].mxu0 %v1780
    %v1896 = vpop.f32.mrb[0].mxu0
    %v1897 = vadd.f32 0.0, %v1896
    %v1898 = vpop.f32.mrb[0].mxu0
    %v1899 = vadd.f32 0.0, %v1898
    %v1900 = vpop.f32.mrb[0].mxu0
    %v1901 = vadd.f32 0.0, %v1900
    %v1902 = vpop.f32.mrb[0].mxu0
    %v1903 = vadd.f32 0.0, %v1902
    %1904 = vmatprep.mubr.bf16.mxu0 0
    %1905 = vmatmul.mubr.bf16.gmra.mrb[0].mxu0 %v1781
    %v1906 = vpop.f32.mrb[0].mxu0
    %v1907 = vadd.f32 0.0, %v1906
    %v1908 = vpop.f32.mrb[0].mxu0
    %v1909 = vadd.f32 0.0, %v1908
    %v1910 = vpop.f32.mrb[0].mxu0
    %v1911 = vadd.f32 0.0, %v1910
    %v1912 = vpop.f32.mrb[0].mxu0
    %v1913 = vadd.f32 0.0, %v1912
    %1914 = vdwg.mxu0
    %v1915 = vadd.f32 %v1762, %v1897
    %v1916 = vadd.f32 %v1764, %v1899
    %v1917 = vadd.f32 %v1766, %v1901
    %v1918 = vadd.f32 %v1768, %v1903
    %v1919 = vadd.f32 %v1772, %v1907
    %v1920 = vadd.f32 %v1774, %v1909
    %v1921 = vadd.f32 %v1776, %v1911
    %v1922 = vadd.f32 %v1778, %v1913
    %s1923 = scalar_lea.vmem %s2, 3
    %v1924 = vld [vmem:[%s1923] ss:$8 sm:$0x3]
    %v1926 = vlaneseq
    %v1927 = vshrl.u32 %v1926, 7
    %v1928 = vsub.s32 0, %v1927
    %v1929 = vrot.slane %v1924, %v1928
    %v1930 = vlaneseq
    %v1931 = vshrl.u32 %v1930, 7
    %v1932 = vsub.s32 1, %v1931
    %v1933 = vrot.slane %v1924, %v1932
    %v1936 = vadd.f32 %v1915, %v1929
    %v1937 = vadd.f32 %v1916, %v1933
    %v1938 = vadd.f32 %v1917, %v1929
    %v1939 = vadd.f32 %v1918, %v1933
    %v1940 = vadd.f32 %v1919, %v1929
    %v1941 = vadd.f32 %v1920, %v1933
    %v1942 = vadd.f32 %v1921, %v1929
    %v1943 = vadd.f32 %v1922, %v1933
    %v1944 = vmax.f32 %v1936, 0.0
    %v1945 = vmax.f32 %v1937, 0.0
    %v1946 = vmax.f32 %v1938, 0.0
    %v1947 = vmax.f32 %v1939, 0.0
    %v1948 = vmax.f32 %v1940, 0.0
    %v1949 = vmax.f32 %v1941, 0.0
    %v1950 = vmax.f32 %v1942, 0.0
    %v1951 = vmax.f32 %v1943, 0.0
    %v1952 = vmax.f32 %v1944, %v1945
    %v1953 = vmax.f32 %v1946, %v1947
    %v1954 = vmax.f32 %v1948, %v1949
    %v1955 = vmax.f32 %v1950, %v1951
    %1956 = vst.msk [vmem:[#allocation3] sm:$0xff] %vm1086, %v1952
    %1957 = vst.msk [vmem:[#allocation3 + $0x8] sm:$0xff] %vm1086, %v1953
    %1958 = vst.msk [vmem:[#allocation3 + $0x10] sm:$0xff] %vm1086, %v1954
    %1959 = vst.msk [vmem:[#allocation3 + $0x18] sm:$0xff] %vm1086, %v1955
    %v1960 = vld [vmem:[#allocation3] ss:$2 sm:$0xff]
    %v1961 = vld [vmem:[%s1096] ss:$2 sm:$0xff]
    %v1962 = vld [vmem:[%s1102] ss:$2 sm:$0xff]
    %v1963 = vld [vmem:[%s1104] ss:$2 sm:$0xff]
    %v1964 = vmax.f32 %v1960, %v1962
    %v1965 = vmax.f32 %v1961, %v1963
    %v1966 = vand.u32 %v37, 7
    %v1967 = vand.u32 %v38, 7
    %vm1968 = vcmp.eq.s32.totalorder %v1966, 0
    %vm1969 = vcmp.eq.s32.totalorder %v1967, 0
    %vm1970 = vcmp.eq.s32.totalorder %v1966, 7
    %vm1971 = vcmp.eq.s32.totalorder %v1967, 7
    %1972 = vst.msk [vmem:[#allocation2 + $0x10] sm:$0xff] %vm1086, %v1964
    %1973 = vst.msk [vmem:[#allocation2 + $0x18] sm:$0xff] %vm1086, %v1965
    %v1974 = vld [vmem:[#allocation2 + $0xf] sm:$0xff]
    %v1975 = vld [vmem:[#allocation2 + $0x17] sm:$0xff]
    %v1976 = vld [vmem:[#allocation2 + $0x11] sm:$0xff]
    %v1977 = vld [vmem:[#allocation2 + $0x19] sm:$0xff]
    %v1978 = vsel %vm1968, 1, 0
    %v1979 = vsel %vm1969, 1, 0
    %vm1980 = vcmp.eq.s32.totalorder %v1978, 1
    %vm1981 = vcmp.eq.s32.totalorder %v1979, 1
    %v1982 = vsel %vm1980, 0.0, %v1974
    %v1983 = vsel %vm1981, 0.0, %v1975
    %v1984 = vsel %vm1970, 1, 0
    %v1985 = vsel %vm1971, 1, 0
    %vm1986 = vcmp.eq.s32.totalorder %v1984, 1
    %vm1987 = vcmp.eq.s32.totalorder %v1985, 1
    %v1988 = vsel %vm1986, 0.0, %v1976
    %v1989 = vsel %vm1987, 0.0, %v1977
    %v1990 = vld [vmem:[%s1 + $0x420] sm:$0xf]
    %v1991 = vld [vmem:[%s1 + $0x428] sm:$0xf]
    %v1992 = vld [vmem:[%s1 + $0x430] sm:$0xf]
    %v1993 = vld [vmem:[%s1 + $0x438] sm:$0xf]
    %v1994 = vld [vmem:[%s1 + $0x440] sm:$0xf]
    %v1995 = vld [vmem:[%s1 + $0x448] sm:$0xf]
    %v1996 = vld [vmem:[%s1 + $0x450] sm:$0xf]
    %v1997 = vld [vmem:[%s1 + $0x458] sm:$0xf]
    %v1998 = vld [vmem:[%s1 + $0x460] sm:$0xf]
    %v1999 = vld [vmem:[%s1 + $0x468] sm:$0xf]
    %v2000 = vld [vmem:[%s1 + $0x470] sm:$0xf]
    %v2001 = vld [vmem:[%s1 + $0x478] sm:$0xf]
    %v2002 = vld [vmem:[%s1 + $0x480] sm:$0xf]
    %v2003 = vld [vmem:[%s1 + $0x488] sm:$0xf]
    %v2004 = vld [vmem:[%s1 + $0x490] sm:$0xf]
    %v2005 = vld [vmem:[%s1 + $0x498] sm:$0xf]
    %v2006 = vld [vmem:[%s1 + $0x4a0] sm:$0xf]
    %v2007 = vld [vmem:[%s1 + $0x4a8] sm:$0xf]
    %v2008 = vld [vmem:[%s1 + $0x4b0] sm:$0xf]
    %v2009 = vld [vmem:[%s1 + $0x4b8] sm:$0xf]
    %v2010 = vld [vmem:[%s1 + $0x4c0] sm:$0xf]
    %v2011 = vld [vmem:[%s1 + $0x4c8] sm:$0xf]
    %v2012 = vld [vmem:[%s1 + $0x4d0] sm:$0xf]
    %v2013 = vld [vmem:[%s1 + $0x4d8] sm:$0xf]
    %v2014 = vpack.c.bf16 %v1983, %v1982
    %v2015 = vpack.c.bf16 %v1965, %v1964
    %v2024 = vunpack.c.l.b16 %v1998
    %v2025 = vunpack.c.l.b16 %v1999
    %v2026 = vunpack.c.l.b16 %v2000
    %v2027 = vunpack.c.l.b16 %v2001
    %v2028 = vunpack.c.l.b16 %v2002
    %v2029 = vunpack.c.l.b16 %v2003
    %v2030 = vunpack.c.l.b16 %v2004
    %v2031 = vunpack.c.l.b16 %v2005
    %v2032 = vpack.c.b16 %v2025, %v2024
    %v2033 = vpack.c.b16 %v2027, %v2026
    %v2034 = vpack.c.b16 %v2029, %v2028
    %v2035 = vpack.c.b16 %v2031, %v2030
    %v2041 = vsel %vm1086, %v2015, 0
    %2043 = vmatprep.subr.bf16.mxu0 0
    %2044 = vmatpush1.bf16.msra.mxu0 %v2032
    %2045 = vmatprep.subr.bf16.mxu0 0
    %2046 = vmatpush1.bf16.msra.mxu0 %v2033
    %2047 = vmatprep.subr.bf16.mxu0 0
    %2048 = vmatpush1.bf16.msra.mxu0 %v2034
    %2049 = vmatprep.subr.bf16.mxu0 0
    %2050 = vmatpush1.bf16.msra.mxu0 %v2035
    %2051 = vmatprep.subr.bf16.mxu0 0
    %2052 = vmatpush1.bf16.msra.mxu0 0
    %2053 = vmatprep.subr.bf16.mxu0 0
    %2054 = vmatpush1.bf16.msra.mxu0 0
    %2055 = vmatprep.subr.bf16.mxu0 0
    %2056 = vmatpush1.bf16.msra.mxu0 0
    %2057 = vmatprep.subr.bf16.mxu0 0
    %2058 = vmatpush1.bf16.msra.mxu0 0
    %2059 = vmatprep.subr.bf16.mxu0 0
    %2060 = vmatpush1.bf16.msra.mxu0 0
    %2061 = vmatprep.subr.bf16.mxu0 0
    %2062 = vmatpush1.bf16.msra.mxu0 0
    %2063 = vmatprep.subr.bf16.mxu0 0
    %2064 = vmatpush1.bf16.msra.mxu0 0
    %2065 = vmatprep.subr.bf16.mxu0 0
    %2066 = vmatpush1.bf16.msra.mxu0 0
    %2067 = vmatprep.subr.bf16.mxu0 0
    %2068 = vmatpush1.bf16.msra.mxu0 0
    %2069 = vmatprep.subr.bf16.mxu0 0
    %2070 = vmatpush1.bf16.msra.mxu0 0
    %2071 = vmatprep.subr.bf16.mxu0 0
    %2072 = vmatpush1.bf16.msra.mxu0 0
    %2073 = vmatprep.subr.bf16.mxu0 0
    %2074 = vmatpush1.bf16.msra.mxu0 0
    %2075 = vmatprep.mubr.bf16.mxu0 0
    %2076 = vmatmul.mubr.bf16.gmra.mrb[0].mxu0 %v2041
    %v2077 = vpop.f32.mrb[0].mxu0
    %v2078 = vadd.f32 0.0, %v2077
    %v2079 = vpop.f32.mrb[0].mxu0
    %v2080 = vpop.f32.mrb[0].mxu0
    %v2081 = vadd.f32 0.0, %v2080
    %v2082 = vpop.f32.mrb[0].mxu0
    %2083 = vdwg.mxu0
    %v2092 = vunpack.c.l.b16 %v1990
    %v2093 = vunpack.c.l.b16 %v1991
    %v2094 = vunpack.c.l.b16 %v1992
    %v2095 = vunpack.c.l.b16 %v1993
    %v2096 = vunpack.c.l.b16 %v1994
    %v2097 = vunpack.c.l.b16 %v1995
    %v2098 = vunpack.c.l.b16 %v1996
    %v2099 = vunpack.c.l.b16 %v1997
    %v2100 = vpack.c.b16 %v2093, %v2092
    %v2101 = vpack.c.b16 %v2095, %v2094
    %v2102 = vpack.c.b16 %v2097, %v2096
    %v2103 = vpack.c.b16 %v2099, %v2098
    %v2109 = vsel %vm1086, %v2014, 0
    %2111 = vmatprep.subr.bf16.mxu0 0
    %2112 = vmatpush1.bf16.msra.mxu0 %v2100
    %2113 = vmatprep.subr.bf16.mxu0 0
    %2114 = vmatpush1.bf16.msra.mxu0 %v2101
    %2115 = vmatprep.subr.bf16.mxu0 0
    %2116 = vmatpush1.bf16.msra.mxu0 %v2102
    %2117 = vmatprep.subr.bf16.mxu0 0
    %2118 = vmatpush1.bf16.msra.mxu0 %v2103
    %2119 = vmatprep.subr.bf16.mxu0 0
    %2120 = vmatpush1.bf16.msra.mxu0 0
    %2121 = vmatprep.subr.bf16.mxu0 0
    %2122 = vmatpush1.bf16.msra.mxu0 0
    %2123 = vmatprep.subr.bf16.mxu0 0
    %2124 = vmatpush1.bf16.msra.mxu0 0
    %2125 = vmatprep.subr.bf16.mxu0 0
    %2126 = vmatpush1.bf16.msra.mxu0 0
    %2127 = vmatprep.subr.bf16.mxu0 0
    %2128 = vmatpush1.bf16.msra.mxu0 0
    %2129 = vmatprep.subr.bf16.mxu0 0
    %2130 = vmatpush1.bf16.msra.mxu0 0
    %2131 = vmatprep.subr.bf16.mxu0 0
    %2132 = vmatpush1.bf16.msra.mxu0 0
    %2133 = vmatprep.subr.bf16.mxu0 0
    %2134 = vmatpush1.bf16.msra.mxu0 0
    %2135 = vmatprep.subr.bf16.mxu0 0
    %2136 = vmatpush1.bf16.msra.mxu0 0
    %2137 = vmatprep.subr.bf16.mxu0 0
    %2138 = vmatpush1.bf16.msra.mxu0 0
    %2139 = vmatprep.subr.bf16.mxu0 0
    %2140 = vmatpush1.bf16.msra.mxu0 0
    %2141 = vmatprep.subr.bf16.mxu0 0
    %2142 = vmatpush1.bf16.msra.mxu0 0
    %2143 = vmatprep.mubr.bf16.mxu0 0
    %2144 = vmatmul.mubr.bf16.gmra.mrb[0].mxu0 %v2109
    %v2145 = vpop.f32.mrb[0].mxu0
    %v2146 = vadd.f32 %v2078, %v2145
    %v2147 = vpop.f32.mrb[0].mxu0
    %v2148 = vpop.f32.mrb[0].mxu0
    %v2149 = vadd.f32 %v2081, %v2148
    %v2150 = vpop.f32.mrb[0].mxu0
    %2151 = vdwg.mxu0
    %v2152 = vpack.c.bf16 %v1989, %v1988
    %v2161 = vunpack.c.l.b16 %v2006
    %v2162 = vunpack.c.l.b16 %v2007
    %v2163 = vunpack.c.l.b16 %v2008
    %v2164 = vunpack.c.l.b16 %v2009
    %v2165 = vunpack.c.l.b16 %v2010
    %v2166 = vunpack.c.l.b16 %v2011
    %v2167 = vunpack.c.l.b16 %v2012
    %v2168 = vunpack.c.l.b16 %v2013
    %v2169 = vpack.c.b16 %v2162, %v2161
    %v2170 = vpack.c.b16 %v2164, %v2163
    %v2171 = vpack.c.b16 %v2166, %v2165
    %v2172 = vpack.c.b16 %v2168, %v2167
    %v2178 = vsel %vm1086, %v2152, 0
    %2180 = vmatprep.subr.bf16.mxu0 0
    %2181 = vmatpush1.bf16.msra.mxu0 %v2169
    %2182 = vmatprep.subr.bf16.mxu0 0
    %2183 = vmatpush1.bf16.msra.mxu0 %v2170
    %2184 = vmatprep.subr.bf16.mxu0 0
    %2185 = vmatpush1.bf16.msra.mxu0 %v2171
    %2186 = vmatprep.subr.bf16.mxu0 0
    %2187 = vmatpush1.bf16.msra.mxu0 %v2172
    %2188 = vmatprep.subr.bf16.mxu0 0
    %2189 = vmatpush1.bf16.msra.mxu0 0
    %2190 = vmatprep.subr.bf16.mxu0 0
    %2191 = vmatpush1.bf16.msra.mxu0 0
    %2192 = vmatprep.subr.bf16.mxu0 0
    %2193 = vmatpush1.bf16.msra.mxu0 0
    %2194 = vmatprep.subr.bf16.mxu0 0
    %2195 = vmatpush1.bf16.msra.mxu0 0
    %2196 = vmatprep.subr.bf16.mxu0 0
    %2197 = vmatpush1.bf16.msra.mxu0 0
    %2198 = vmatprep.subr.bf16.mxu0 0
    %2199 = vmatpush1.bf16.msra.mxu0 0
    %2200 = vmatprep.subr.bf16.mxu0 0
    %2201 = vmatpush1.bf16.msra.mxu0 0
    %2202 = vmatprep.subr.bf16.mxu0 0
    %2203 = vmatpush1.bf16.msra.mxu0 0
    %2204 = vmatprep.subr.bf16.mxu0 0
    %2205 = vmatpush1.bf16.msra.mxu0 0
    %2206 = vmatprep.subr.bf16.mxu0 0
    %2207 = vmatpush1.bf16.msra.mxu0 0
    %2208 = vmatprep.subr.bf16.mxu0 0
    %2209 = vmatpush1.bf16.msra.mxu0 0
    %2210 = vmatprep.subr.bf16.mxu0 0
    %2211 = vmatpush1.bf16.msra.mxu0 0
    %2212 = vmatprep.mubr.bf16.mxu0 0
    %2213 = vmatmul.mubr.bf16.gmra.mrb[0].mxu0 %v2178
    %v2214 = vpop.f32.mrb[0].mxu0
    %v2215 = vadd.f32 0.0, %v2214
    %v2216 = vpop.f32.mrb[0].mxu0
    %v2217 = vpop.f32.mrb[0].mxu0
    %v2218 = vadd.f32 0.0, %v2217
    %v2219 = vpop.f32.mrb[0].mxu0
    %2220 = vdwg.mxu0
    %v2221 = vadd.f32 %v2146, %v2215
    %v2222 = vadd.f32 %v2149, %v2218
    %v2223 = vld [vmem:[%s2 + $0x4] ss:$0 sm:$0xff]
    %v2224 = vadd.f32 %v2221, %v2223
    %v2225 = vadd.f32 %v2222, %v2223
    %v2226 = vmax.f32 %v2224, 0.0
    %v2227 = vmax.f32 %v2225, 0.0
    %2228 = vst.msk [vmem:[#allocation2 + $0x10] sm:$0xff] %vm1086, %v2226
    %2229 = vst.msk [vmem:[#allocation2 + $0x18] sm:$0xff] %vm1086, %v2227
    %v2230 = vld [vmem:[#allocation2 + $0xf] sm:$0xff]
    %v2231 = vld [vmem:[#allocation2 + $0x17] sm:$0xff]
    %v2232 = vld [vmem:[#allocation2 + $0x11] sm:$0xff]
    %v2233 = vld [vmem:[#allocation2 + $0x19] sm:$0xff]
    %v2234 = vsel %vm1980, 0.0, %v2230
    %v2235 = vsel %vm1981, 0.0, %v2231
    %v2236 = vsel %vm1986, 0.0, %v2232
    %v2237 = vsel %vm1987, 0.0, %v2233
    %v2238 = vld [vmem:[%s1 + $0x4e0] sm:$0xf]
    %v2239 = vld [vmem:[%s1 + $0x4e8] sm:$0xf]
    %v2240 = vld [vmem:[%s1 + $0x4f0] sm:$0xf]
    %v2241 = vld [vmem:[%s1 + $0x4f8] sm:$0xf]
    %v2242 = vld [vmem:[%s1 + $0x500] sm:$0xf]
    %v2243 = vld [vmem:[%s1 + $0x508] sm:$0xf]
    %v2244 = vld [vmem:[%s1 + $0x510] sm:$0xf]
    %v2245 = vld [vmem:[%s1 + $0x518] sm:$0xf]
    %v2246 = vld [vmem:[%s1 + $0x520] sm:$0xf]
    %v2247 = vld [vmem:[%s1 + $0x528] sm:$0xf]
    %v2248 = vld [vmem:[%s1 + $0x530] sm:$0xf]
    %v2249 = vld [vmem:[%s1 + $0x538] sm:$0xf]
    %v2250 = vld [vmem:[%s1 + $0x540] sm:$0xf]
    %v2251 = vld [vmem:[%s1 + $0x548] sm:$0xf]
    %v2252 = vld [vmem:[%s1 + $0x550] sm:$0xf]
    %v2253 = vld [vmem:[%s1 + $0x558] sm:$0xf]
    %v2254 = vld [vmem:[%s1 + $0x560] sm:$0xf]
    %v2255 = vld [vmem:[%s1 + $0x568] sm:$0xf]
    %v2256 = vld [vmem:[%s1 + $0x570] sm:$0xf]
    %v2257 = vld [vmem:[%s1 + $0x578] sm:$0xf]
    %v2258 = vld [vmem:[%s1 + $0x580] sm:$0xf]
    %v2259 = vld [vmem:[%s1 + $0x588] sm:$0xf]
    %v2260 = vld [vmem:[%s1 + $0x590] sm:$0xf]
    %v2261 = vld [vmem:[%s1 + $0x598] sm:$0xf]
    %v2262 = vpack.c.bf16 %v2235, %v2234
    %v2263 = vpack.c.bf16 %v2227, %v2226
    %v2272 = vunpack.c.l.b16 %v2246
    %v2273 = vunpack.c.l.b16 %v2247
    %v2274 = vunpack.c.l.b16 %v2248
    %v2275 = vunpack.c.l.b16 %v2249
    %v2276 = vunpack.c.l.b16 %v2250
    %v2277 = vunpack.c.l.b16 %v2251
    %v2278 = vunpack.c.l.b16 %v2252
    %v2279 = vunpack.c.l.b16 %v2253
    %v2280 = vpack.c.b16 %v2273, %v2272
    %v2281 = vpack.c.b16 %v2275, %v2274
    %v2282 = vpack.c.b16 %v2277, %v2276
    %v2283 = vpack.c.b16 %v2279, %v2278
    %v2289 = vsel %vm1086, %v2263, 0
    %2291 = vmatprep.subr.bf16.mxu0 0
    %2292 = vmatpush1.bf16.msra.mxu0 %v2280
    %2293 = vmatprep.subr.bf16.mxu0 0
    %2294 = vmatpush1.bf16.msra.mxu0 %v2281
    %2295 = vmatprep.subr.bf16.mxu0 0
    %2296 = vmatpush1.bf16.msra.mxu0 %v2282
    %2297 = vmatprep.subr.bf16.mxu0 0
    %2298 = vmatpush1.bf16.msra.mxu0 %v2283
    %2299 = vmatprep.subr.bf16.mxu0 0
    %2300 = vmatpush1.bf16.msra.mxu0 0
    %2301 = vmatprep.subr.bf16.mxu0 0
    %2302 = vmatpush1.bf16.msra.mxu0 0
    %2303 = vmatprep.subr.bf16.mxu0 0
    %2304 = vmatpush1.bf16.msra.mxu0 0
    %2305 = vmatprep.subr.bf16.mxu0 0
    %2306 = vmatpush1.bf16.msra.mxu0 0
    %2307 = vmatprep.subr.bf16.mxu0 0
    %2308 = vmatpush1.bf16.msra.mxu0 0
    %2309 = vmatprep.subr.bf16.mxu0 0
    %2310 = vmatpush1.bf16.msra.mxu0 0
    %2311 = vmatprep.subr.bf16.mxu0 0
    %2312 = vmatpush1.bf16.msra.mxu0 0
    %2313 = vmatprep.subr.bf16.mxu0 0
    %2314 = vmatpush1.bf16.msra.mxu0 0
    %2315 = vmatprep.subr.bf16.mxu0 0
    %2316 = vmatpush1.bf16.msra.mxu0 0
    %2317 = vmatprep.subr.bf16.mxu0 0
    %2318 = vmatpush1.bf16.msra.mxu0 0
    %2319 = vmatprep.subr.bf16.mxu0 0
    %2320 = vmatpush1.bf16.msra.mxu0 0
    %2321 = vmatprep.subr.bf16.mxu0 0
    %2322 = vmatpush1.bf16.msra.mxu0 0
    %2323 = vmatprep.mubr.bf16.mxu0 0
    %2324 = vmatmul.mubr.bf16.gmra.mrb[0].mxu0 %v2289
    %v2325 = vpop.f32.mrb[0].mxu0
    %v2326 = vadd.f32 0.0, %v2325
    %v2327 = vpop.f32.mrb[0].mxu0
    %v2328 = vpop.f32.mrb[0].mxu0
    %v2329 = vadd.f32 0.0, %v2328
    %v2330 = vpop.f32.mrb[0].mxu0
    %2331 = vdwg.mxu0
    %v2340 = vunpack.c.l.b16 %v2238
    %v2341 = vunpack.c.l.b16 %v2239
    %v2342 = vunpack.c.l.b16 %v2240
    %v2343 = vunpack.c.l.b16 %v2241
    %v2344 = vunpack.c.l.b16 %v2242
    %v2345 = vunpack.c.l.b16 %v2243
    %v2346 = vunpack.c.l.b16 %v2244
    %v2347 = vunpack.c.l.b16 %v2245
    %v2348 = vpack.c.b16 %v2341, %v2340
    %v2349 = vpack.c.b16 %v2343, %v2342
    %v2350 = vpack.c.b16 %v2345, %v2344
    %v2351 = vpack.c.b16 %v2347, %v2346
    %v2357 = vsel %vm1086, %v2262, 0
    %2359 = vmatprep.subr.bf16.mxu0 0
    %2360 = vmatpush1.bf16.msra.mxu0 %v2348
    %2361 = vmatprep.subr.bf16.mxu0 0
    %2362 = vmatpush1.bf16.msra.mxu0 %v2349
    %2363 = vmatprep.subr.bf16.mxu0 0
    %2364 = vmatpush1.bf16.msra.mxu0 %v2350
    %2365 = vmatprep.subr.bf16.mxu0 0
    %2366 = vmatpush1.bf16.msra.mxu0 %v2351
    %2367 = vmatprep.subr.bf16.mxu0 0
    %2368 = vmatpush1.bf16.msra.mxu0 0
    %2369 = vmatprep.subr.bf16.mxu0 0
    %2370 = vmatpush1.bf16.msra.mxu0 0
    %2371 = vmatprep.subr.bf16.mxu0 0
    %2372 = vmatpush1.bf16.msra.mxu0 0
    %2373 = vmatprep.subr.bf16.mxu0 0
    %2374 = vmatpush1.bf16.msra.mxu0 0
    %2375 = vmatprep.subr.bf16.mxu0 0
    %2376 = vmatpush1.bf16.msra.mxu0 0
    %2377 = vmatprep.subr.bf16.mxu0 0
    %2378 = vmatpush1.bf16.msra.mxu0 0
    %2379 = vmatprep.subr.bf16.mxu0 0
    %2380 = vmatpush1.bf16.msra.mxu0 0
    %2381 = vmatprep.subr.bf16.mxu0 0
    %2382 = vmatpush1.bf16.msra.mxu0 0
    %2383 = vmatprep.subr.bf16.mxu0 0
    %2384 = vmatpush1.bf16.msra.mxu0 0
    %2385 = vmatprep.subr.bf16.mxu0 0
    %2386 = vmatpush1.bf16.msra.mxu0 0
    %2387 = vmatprep.subr.bf16.mxu0 0
    %2388 = vmatpush1.bf16.msra.mxu0 0
    %2389 = vmatprep.subr.bf16.mxu0 0
    %2390 = vmatpush1.bf16.msra.mxu0 0
    %2391 = vmatprep.mubr.bf16.mxu0 0
    %2392 = vmatmul.mubr.bf16.gmra.mrb[0].mxu0 %v2357
    %v2393 = vpop.f32.mrb[0].mxu0
    %v2394 = vadd.f32 %v2326, %v2393
    %v2395 = vpop.f32.mrb[0].mxu0
    %v2396 = vpop.f32.mrb[0].mxu0
    %v2397 = vadd.f32 %v2329, %v2396
    %v2398 = vpop.f32.mrb[0].mxu0
    %2399 = vdwg.mxu0
    %v2400 = vpack.c.bf16 %v2237, %v2236
    %v2409 = vunpack.c.l.b16 %v2254
    %v2410 = vunpack.c.l.b16 %v2255
    %v2411 = vunpack.c.l.b16 %v2256
    %v2412 = vunpack.c.l.b16 %v2257
    %v2413 = vunpack.c.l.b16 %v2258
    %v2414 = vunpack.c.l.b16 %v2259
    %v2415 = vunpack.c.l.b16 %v2260
    %v2416 = vunpack.c.l.b16 %v2261
    %v2417 = vpack.c.b16 %v2410, %v2409
    %v2418 = vpack.c.b16 %v2412, %v2411
    %v2419 = vpack.c.b16 %v2414, %v2413
    %v2420 = vpack.c.b16 %v2416, %v2415
    %v2426 = vsel %vm1086, %v2400, 0
    %2428 = vmatprep.subr.bf16.mxu0 0
    %2429 = vmatpush1.bf16.msra.mxu0 %v2417
    %2430 = vmatprep.subr.bf16.mxu0 0
    %2431 = vmatpush1.bf16.msra.mxu0 %v2418
    %2432 = vmatprep.subr.bf16.mxu0 0
    %2433 = vmatpush1.bf16.msra.mxu0 %v2419
    %2434 = vmatprep.subr.bf16.mxu0 0
    %2435 = vmatpush1.bf16.msra.mxu0 %v2420
    %2436 = vmatprep.subr.bf16.mxu0 0
    %2437 = vmatpush1.bf16.msra.mxu0 0
    %2438 = vmatprep.subr.bf16.mxu0 0
    %2439 = vmatpush1.bf16.msra.mxu0 0
    %2440 = vmatprep.subr.bf16.mxu0 0
    %2441 = vmatpush1.bf16.msra.mxu0 0
    %2442 = vmatprep.subr.bf16.mxu0 0
    %2443 = vmatpush1.bf16.msra.mxu0 0
    %2444 = vmatprep.subr.bf16.mxu0 0
    %2445 = vmatpush1.bf16.msra.mxu0 0
    %2446 = vmatprep.subr.bf16.mxu0 0
    %2447 = vmatpush1.bf16.msra.mxu0 0
    %2448 = vmatprep.subr.bf16.mxu0 0
    %2449 = vmatpush1.bf16.msra.mxu0 0
    %2450 = vmatprep.subr.bf16.mxu0 0
    %2451 = vmatpush1.bf16.msra.mxu0 0
    %2452 = vmatprep.subr.bf16.mxu0 0
    %2453 = vmatpush1.bf16.msra.mxu0 0
    %2454 = vmatprep.subr.bf16.mxu0 0
    %2455 = vmatpush1.bf16.msra.mxu0 0
    %2456 = vmatprep.subr.bf16.mxu0 0
    %2457 = vmatpush1.bf16.msra.mxu0 0
    %2458 = vmatprep.subr.bf16.mxu0 0
    %2459 = vmatpush1.bf16.msra.mxu0 0
    %2460 = vmatprep.mubr.bf16.mxu0 0
    %2461 = vmatmul.mubr.bf16.gmra.mrb[0].mxu0 %v2426
    %v2462 = vpop.f32.mrb[0].mxu0
    %v2463 = vadd.f32 0.0, %v2462
    %v2464 = vpop.f32.mrb[0].mxu0
    %v2465 = vpop.f32.mrb[0].mxu0
    %v2466 = vadd.f32 0.0, %v2465
    %v2467 = vpop.f32.mrb[0].mxu0
    %2468 = vdwg.mxu0
    %v2469 = vadd.f32 %v2394, %v2463
    %v2470 = vadd.f32 %v2397, %v2466
    %v2471 = vld [vmem:[%s2 + $0x5] ss:$0 sm:$0xff]
    %v2472 = vadd.f32 %v2469, %v2471
    %v2473 = vadd.f32 %v2470, %v2471
    %v2474 = vmax.f32 %v2472, 0.0
    %v2475 = vmax.f32 %v2473, 0.0
    %2476 = vst.msk [vmem:[#allocation2 + $0x10] sm:$0xff] %vm1086, %v2474
    %2477 = vst.msk [vmem:[#allocation2 + $0x18] sm:$0xff] %vm1086, %v2475
    %v2478 = vld [vmem:[#allocation2 + $0xf] sm:$0xff]
    %v2479 = vld [vmem:[#allocation2 + $0x17] sm:$0xff]
    %v2480 = vld [vmem:[#allocation2 + $0x11] sm:$0xff]
    %v2481 = vld [vmem:[#allocation2 + $0x19] sm:$0xff]
    %v2482 = vsel %vm1980, 0.0, %v2478
    %v2483 = vsel %vm1981, 0.0, %v2479
    %v2484 = vsel %vm1986, 0.0, %v2480
    %v2485 = vsel %vm1987, 0.0, %v2481
    %v2486 = vld [vmem:[%s1 + $0x5a0] sm:$0xf]
    %v2487 = vld [vmem:[%s1 + $0x5a8] sm:$0xf]
    %v2488 = vld [vmem:[%s1 + $0x5b0] sm:$0xf]
    %v2489 = vld [vmem:[%s1 + $0x5b8] sm:$0xf]
    %v2490 = vld [vmem:[%s1 + $0x5c0] sm:$0xf]
    %v2491 = vld [vmem:[%s1 + $0x5c8] sm:$0xf]
    %v2492 = vld [vmem:[%s1 + $0x5d0] sm:$0xf]
    %v2493 = vld [vmem:[%s1 + $0x5d8] sm:$0xf]
    %v2494 = vld [vmem:[%s1 + $0x5e0] sm:$0xf]
    %v2495 = vld [vmem:[%s1 + $0x5e8] sm:$0xf]
    %v2496 = vld [vmem:[%s1 + $0x5f0] sm:$0xf]
    %v2497 = vld [vmem:[%s1 + $0x5f8] sm:$0xf]
    %v2498 = vld [vmem:[%s1 + $0x600] sm:$0xf]
    %v2499 = vld [vmem:[%s1 + $0x608] sm:$0xf]
    %v2500 = vld [vmem:[%s1 + $0x610] sm:$0xf]
    %v2501 = vld [vmem:[%s1 + $0x618] sm:$0xf]
    %v2502 = vld [vmem:[%s1 + $0x620] sm:$0xf]
    %v2503 = vld [vmem:[%s1 + $0x628] sm:$0xf]
    %v2504 = vld [vmem:[%s1 + $0x630] sm:$0xf]
    %v2505 = vld [vmem:[%s1 + $0x638] sm:$0xf]
    %v2506 = vld [vmem:[%s1 + $0x640] sm:$0xf]
    %v2507 = vld [vmem:[%s1 + $0x648] sm:$0xf]
    %v2508 = vld [vmem:[%s1 + $0x650] sm:$0xf]
    %v2509 = vld [vmem:[%s1 + $0x658] sm:$0xf]
    %v2510 = vpack.c.bf16 %v2483, %v2482
    %v2511 = vpack.c.bf16 %v2475, %v2474
    %v2520 = vunpack.c.l.b16 %v2494
    %v2521 = vunpack.c.l.b16 %v2495
    %v2522 = vunpack.c.l.b16 %v2496
    %v2523 = vunpack.c.l.b16 %v2497
    %v2524 = vunpack.c.l.b16 %v2498
    %v2525 = vunpack.c.l.b16 %v2499
    %v2526 = vunpack.c.l.b16 %v2500
    %v2527 = vunpack.c.l.b16 %v2501
    %v2528 = vpack.c.b16 %v2521, %v2520
    %v2529 = vpack.c.b16 %v2523, %v2522
    %v2530 = vpack.c.b16 %v2525, %v2524
    %v2531 = vpack.c.b16 %v2527, %v2526
    %v2537 = vsel %vm1086, %v2511, 0
    %2539 = vmatprep.subr.bf16.mxu0 0
    %2540 = vmatpush1.bf16.msra.mxu0 %v2528
    %2541 = vmatprep.subr.bf16.mxu0 0
    %2542 = vmatpush1.bf16.msra.mxu0 %v2529
    %2543 = vmatprep.subr.bf16.mxu0 0
    %2544 = vmatpush1.bf16.msra.mxu0 %v2530
    %2545 = vmatprep.subr.bf16.mxu0 0
    %2546 = vmatpush1.bf16.msra.mxu0 %v2531
    %2547 = vmatprep.subr.bf16.mxu0 0
    %2548 = vmatpush1.bf16.msra.mxu0 0
    %2549 = vmatprep.subr.bf16.mxu0 0
    %2550 = vmatpush1.bf16.msra.mxu0 0
    %2551 = vmatprep.subr.bf16.mxu0 0
    %2552 = vmatpush1.bf16.msra.mxu0 0
    %2553 = vmatprep.subr.bf16.mxu0 0
    %2554 = vmatpush1.bf16.msra.mxu0 0
    %2555 = vmatprep.subr.bf16.mxu0 0
    %2556 = vmatpush1.bf16.msra.mxu0 0
    %2557 = vmatprep.subr.bf16.mxu0 0
    %2558 = vmatpush1.bf16.msra.mxu0 0
    %2559 = vmatprep.subr.bf16.mxu0 0
    %2560 = vmatpush1.bf16.msra.mxu0 0
    %2561 = vmatprep.subr.bf16.mxu0 0
    %2562 = vmatpush1.bf16.msra.mxu0 0
    %2563 = vmatprep.subr.bf16.mxu0 0
    %2564 = vmatpush1.bf16.msra.mxu0 0
    %2565 = vmatprep.subr.bf16.mxu0 0
    %2566 = vmatpush1.bf16.msra.mxu0 0
    %2567 = vmatprep.subr.bf16.mxu0 0
    %2568 = vmatpush1.bf16.msra.mxu0 0
    %2569 = vmatprep.subr.bf16.mxu0 0
    %2570 = vmatpush1.bf16.msra.mxu0 0
    %2571 = vmatprep.mubr.bf16.mxu0 0
    %2572 = vmatmul.mubr.bf16.gmra.mrb[0].mxu0 %v2537
    %v2573 = vpop.f32.mrb[0].mxu0
    %v2574 = vadd.f32 0.0, %v2573
    %v2575 = vpop.f32.mrb[0].mxu0
    %v2576 = vpop.f32.mrb[0].mxu0
    %v2577 = vadd.f32 0.0, %v2576
    %v2578 = vpop.f32.mrb[0].mxu0
    %2579 = vdwg.mxu0
    %v2588 = vunpack.c.l.b16 %v2486
    %v2589 = vunpack.c.l.b16 %v2487
    %v2590 = vunpack.c.l.b16 %v2488
    %v2591 = vunpack.c.l.b16 %v2489
    %v2592 = vunpack.c.l.b16 %v2490
    %v2593 = vunpack.c.l.b16 %v2491
    %v2594 = vunpack.c.l.b16 %v2492
    %v2595 = vunpack.c.l.b16 %v2493
    %v2596 = vpack.c.b16 %v2589, %v2588
    %v2597 = vpack.c.b16 %v2591, %v2590
    %v2598 = vpack.c.b16 %v2593, %v2592
    %v2599 = vpack.c.b16 %v2595, %v2594
    %v2605 = vsel %vm1086, %v2510, 0
    %2607 = vmatprep.subr.bf16.mxu0 0
    %2608 = vmatpush1.bf16.msra.mxu0 %v2596
    %2609 = vmatprep.subr.bf16.mxu0 0
    %2610 = vmatpush1.bf16.msra.mxu0 %v2597
    %2611 = vmatprep.subr.bf16.mxu0 0
    %2612 = vmatpush1.bf16.msra.mxu0 %v2598
    %2613 = vmatprep.subr.bf16.mxu0 0
    %2614 = vmatpush1.bf16.msra.mxu0 %v2599
    %2615 = vmatprep.subr.bf16.mxu0 0
    %2616 = vmatpush1.bf16.msra.mxu0 0
    %2617 = vmatprep.subr.bf16.mxu0 0
    %2618 = vmatpush1.bf16.msra.mxu0 0
    %2619 = vmatprep.subr.bf16.mxu0 0
    %2620 = vmatpush1.bf16.msra.mxu0 0
    %2621 = vmatprep.subr.bf16.mxu0 0
    %2622 = vmatpush1.bf16.msra.mxu0 0
    %2623 = vmatprep.subr.bf16.mxu0 0
    %2624 = vmatpush1.bf16.msra.mxu0 0
    %2625 = vmatprep.subr.bf16.mxu0 0
    %2626 = vmatpush1.bf16.msra.mxu0 0
    %2627 = vmatprep.subr.bf16.mxu0 0
    %2628 = vmatpush1.bf16.msra.mxu0 0
    %2629 = vmatprep.subr.bf16.mxu0 0
    %2630 = vmatpush1.bf16.msra.mxu0 0
    %2631 = vmatprep.subr.bf16.mxu0 0
    %2632 = vmatpush1.bf16.msra.mxu0 0
    %2633 = vmatprep.subr.bf16.mxu0 0
    %2634 = vmatpush1.bf16.msra.mxu0 0
    %2635 = vmatprep.subr.bf16.mxu0 0
    %2636 = vmatpush1.bf16.msra.mxu0 0
    %2637 = vmatprep.subr.bf16.mxu0 0
    %2638 = vmatpush1.bf16.msra.mxu0 0
    %2639 = vmatprep.mubr.bf16.mxu0 0
    %2640 = vmatmul.mubr.bf16.gmra.mrb[0].mxu0 %v2605
    %v2641 = vpop.f32.mrb[0].mxu0
    %v2642 = vadd.f32 %v2574, %v2641
    %v2643 = vpop.f32.mrb[0].mxu0
    %v2644 = vpop.f32.mrb[0].mxu0
    %v2645 = vadd.f32 %v2577, %v2644
    %v2646 = vpop.f32.mrb[0].mxu0
    %2647 = vdwg.mxu0
    %v2648 = vpack.c.bf16 %v2485, %v2484
    %v2657 = vunpack.c.l.b16 %v2502
    %v2658 = vunpack.c.l.b16 %v2503
    %v2659 = vunpack.c.l.b16 %v2504
    %v2660 = vunpack.c.l.b16 %v2505
    %v2661 = vunpack.c.l.b16 %v2506
    %v2662 = vunpack.c.l.b16 %v2507
    %v2663 = vunpack.c.l.b16 %v2508
    %v2664 = vunpack.c.l.b16 %v2509
    %v2665 = vpack.c.b16 %v2658, %v2657
    %v2666 = vpack.c.b16 %v2660, %v2659
    %v2667 = vpack.c.b16 %v2662, %v2661
    %v2668 = vpack.c.b16 %v2664, %v2663
    %v2674 = vsel %vm1086, %v2648, 0
    %2676 = vmatprep.subr.bf16.mxu0 0
    %2677 = vmatpush1.bf16.msra.mxu0 %v2665
    %2678 = vmatprep.subr.bf16.mxu0 0
    %2679 = vmatpush1.bf16.msra.mxu0 %v2666
    %2680 = vmatprep.subr.bf16.mxu0 0
    %2681 = vmatpush1.bf16.msra.mxu0 %v2667
    %2682 = vmatprep.subr.bf16.mxu0 0
    %2683 = vmatpush1.bf16.msra.mxu0 %v2668
    %2684 = vmatprep.subr.bf16.mxu0 0
    %2685 = vmatpush1.bf16.msra.mxu0 0
    %2686 = vmatprep.subr.bf16.mxu0 0
    %2687 = vmatpush1.bf16.msra.mxu0 0
    %2688 = vmatprep.subr.bf16.mxu0 0
    %2689 = vmatpush1.bf16.msra.mxu0 0
    %2690 = vmatprep.subr.bf16.mxu0 0
    %2691 = vmatpush1.bf16.msra.mxu0 0
    %2692 = vmatprep.subr.bf16.mxu0 0
    %2693 = vmatpush1.bf16.msra.mxu0 0
    %2694 = vmatprep.subr.bf16.mxu0 0
    %2695 = vmatpush1.bf16.msra.mxu0 0
    %2696 = vmatprep.subr.bf16.mxu0 0
    %2697 = vmatpush1.bf16.msra.mxu0 0
    %2698 = vmatprep.subr.bf16.mxu0 0
    %2699 = vmatpush1.bf16.msra.mxu0 0
    %2700 = vmatprep.subr.bf16.mxu0 0
    %2701 = vmatpush1.bf16.msra.mxu0 0
    %2702 = vmatprep.subr.bf16.mxu0 0
    %2703 = vmatpush1.bf16.msra.mxu0 0
    %2704 = vmatprep.subr.bf16.mxu0 0
    %2705 = vmatpush1.bf16.msra.mxu0 0
    %2706 = vmatprep.subr.bf16.mxu0 0
    %2707 = vmatpush1.bf16.msra.mxu0 0
    %2708 = vmatprep.mubr.bf16.mxu0 0
    %2709 = vmatmul.mubr.bf16.gmra.mrb[0].mxu0 %v2674
    %v2710 = vpop.f32.mrb[0].mxu0
    %v2711 = vadd.f32 0.0, %v2710
    %v2712 = vpop.f32.mrb[0].mxu0
    %v2713 = vpop.f32.mrb[0].mxu0
    %v2714 = vadd.f32 0.0, %v2713
    %v2715 = vpop.f32.mrb[0].mxu0
    %2716 = vdwg.mxu0
    %v2717 = vadd.f32 %v2642, %v2711
    %v2718 = vadd.f32 %v2645, %v2714
    %v2719 = vld [vmem:[%s2 + $0x6] ss:$0 sm:$0xff]
    %v2720 = vadd.f32 %v2717, %v2719
    %v2721 = vadd.f32 %v2718, %v2719
    %v2722 = vmax.f32 %v2720, 0.0
    %v2723 = vmax.f32 %v2721, 0.0
    %2724 = vst.msk [vmem:[#allocation2 + $0x10] sm:$0xff] %vm1086, %v2722
    %2725 = vst.msk [vmem:[#allocation2 + $0x18] sm:$0xff] %vm1086, %v2723
    %v2726 = vld [vmem:[#allocation2 + $0xf] sm:$0xff]
    %v2727 = vld [vmem:[#allocation2 + $0x17] sm:$0xff]
    %v2728 = vld [vmem:[#allocation2 + $0x11] sm:$0xff]
    %v2729 = vld [vmem:[#allocation2 + $0x19] sm:$0xff]
    %v2730 = vsel %vm1980, 0.0, %v2726
    %v2731 = vsel %vm1981, 0.0, %v2727
    %v2732 = vsel %vm1986, 0.0, %v2728
    %v2733 = vsel %vm1987, 0.0, %v2729
    %v2734 = vld [vmem:[%s1 + $0x660] sm:$0xff]
    %v2735 = vld [vmem:[%s1 + $0x668] sm:$0xff]
    %v2736 = vld [vmem:[%s1 + $0x670] sm:$0xff]
    %v2737 = vld [vmem:[%s1 + $0x678] sm:$0xff]
    %v2738 = vld [vmem:[%s1 + $0x680] sm:$0xff]
    %v2739 = vld [vmem:[%s1 + $0x688] sm:$0xff]
    %v2740 = vld [vmem:[%s1 + $0x690] sm:$0xff]
    %v2741 = vld [vmem:[%s1 + $0x698] sm:$0xff]
    %v2742 = vld [vmem:[%s1 + $0x6a0] sm:$0xff]
    %v2743 = vld [vmem:[%s1 + $0x6a8] sm:$0xff]
    %v2744 = vld [vmem:[%s1 + $0x6b0] sm:$0xff]
    %v2745 = vld [vmem:[%s1 + $0x6b8] sm:$0xff]
    %v2746 = vld [vmem:[%s1 + $0x6c0] sm:$0xff]
    %v2747 = vld [vmem:[%s1 + $0x6c8] sm:$0xff]
    %v2748 = vld [vmem:[%s1 + $0x6d0] sm:$0xff]
    %v2749 = vld [vmem:[%s1 + $0x6d8] sm:$0xff]
    %v2750 = vld [vmem:[%s1 + $0x6e0] sm:$0xff]
    %v2751 = vld [vmem:[%s1 + $0x6e8] sm:$0xff]
    %v2752 = vld [vmem:[%s1 + $0x6f0] sm:$0xff]
    %v2753 = vld [vmem:[%s1 + $0x6f8] sm:$0xff]
    %v2754 = vld [vmem:[%s1 + $0x700] sm:$0xff]
    %v2755 = vld [vmem:[%s1 + $0x708] sm:$0xff]
    %v2756 = vld [vmem:[%s1 + $0x710] sm:$0xff]
    %v2757 = vld [vmem:[%s1 + $0x718] sm:$0xff]
    %v2758 = vpack.c.bf16 %v2731, %v2730
    %v2759 = vpack.c.bf16 %v2723, %v2722
    %v2768 = vunpack.c.l.b16 %v2742
    %v2769 = vunpack.c.h.b16 %v2742
    %v2770 = vunpack.c.l.b16 %v2743
    %v2771 = vunpack.c.h.b16 %v2743
    %v2772 = vunpack.c.l.b16 %v2744
    %v2773 = vunpack.c.h.b16 %v2744
    %v2774 = vunpack.c.l.b16 %v2745
    %v2775 = vunpack.c.h.b16 %v2745
    %v2776 = vunpack.c.l.b16 %v2746
    %v2777 = vunpack.c.h.b16 %v2746
    %v2778 = vunpack.c.l.b16 %v2747
    %v2779 = vunpack.c.h.b16 %v2747
    %v2780 = vunpack.c.l.b16 %v2748
    %v2781 = vunpack.c.h.b16 %v2748
    %v2782 = vunpack.c.l.b16 %v2749
    %v2783 = vunpack.c.h.b16 %v2749
    %v2784 = vpack.c.b16 %v2770, %v2768
    %v2785 = vpack.c.b16 %v2771, %v2769
    %v2786 = vpack.c.b16 %v2774, %v2772
    %v2787 = vpack.c.b16 %v2775, %v2773
    %v2788 = vpack.c.b16 %v2778, %v2776
    %v2789 = vpack.c.b16 %v2779, %v2777
    %v2790 = vpack.c.b16 %v2782, %v2780
    %v2791 = vpack.c.b16 %v2783, %v2781
    %v2801 = vsel %vm1086, %v2759, 0
    %2803 = vmatprep.subr.bf16.mxu0 %v2785
    %2804 = vmatpush1.bf16.msra.mxu0 %v2784
    %2805 = vmatprep.subr.bf16.mxu0 %v2787
    %2806 = vmatpush1.bf16.msra.mxu0 %v2786
    %2807 = vmatprep.subr.bf16.mxu0 %v2789
    %2808 = vmatpush1.bf16.msra.mxu0 %v2788
    %2809 = vmatprep.subr.bf16.mxu0 %v2791
    %2810 = vmatpush1.bf16.msra.mxu0 %v2790
    %2811 = vmatprep.subr.bf16.mxu0 0
    %2812 = vmatpush1.bf16.msra.mxu0 0
    %2813 = vmatprep.subr.bf16.mxu0 0
    %2814 = vmatpush1.bf16.msra.mxu0 0
    %2815 = vmatprep.subr.bf16.mxu0 0
    %2816 = vmatpush1.bf16.msra.mxu0 0
    %2817 = vmatprep.subr.bf16.mxu0 0
    %2818 = vmatpush1.bf16.msra.mxu0 0
    %2819 = vmatprep.subr.bf16.mxu0 0
    %2820 = vmatpush1.bf16.msra.mxu0 0
    %2821 = vmatprep.subr.bf16.mxu0 0
    %2822 = vmatpush1.bf16.msra.mxu0 0
    %2823 = vmatprep.subr.bf16.mxu0 0
    %2824 = vmatpush1.bf16.msra.mxu0 0
    %2825 = vmatprep.subr.bf16.mxu0 0
    %2826 = vmatpush1.bf16.msra.mxu0 0
    %2827 = vmatprep.subr.bf16.mxu0 0
    %2828 = vmatpush1.bf16.msra.mxu0 0
    %2829 = vmatprep.subr.bf16.mxu0 0
    %2830 = vmatpush1.bf16.msra.mxu0 0
    %2831 = vmatprep.subr.bf16.mxu0 0
    %2832 = vmatpush1.bf16.msra.mxu0 0
    %2833 = vmatprep.subr.bf16.mxu0 0
    %2834 = vmatpush1.bf16.msra.mxu0 0
    %2835 = vmatprep.mubr.bf16.mxu0 0
    %2836 = vmatmul.mubr.bf16.gmra.mrb[0].mxu0 %v2801
    %v2837 = vpop.f32.mrb[0].mxu0
    %v2838 = vadd.f32 0.0, %v2837
    %v2839 = vpop.f32.mrb[0].mxu0
    %v2840 = vadd.f32 0.0, %v2839
    %v2841 = vpop.f32.mrb[0].mxu0
    %v2842 = vadd.f32 0.0, %v2841
    %v2843 = vpop.f32.mrb[0].mxu0
    %v2844 = vadd.f32 0.0, %v2843
    %2845 = vdwg.mxu0
    %v2854 = vunpack.c.l.b16 %v2734
    %v2855 = vunpack.c.h.b16 %v2734
    %v2856 = vunpack.c.l.b16 %v2735
    %v2857 = vunpack.c.h.b16 %v2735
    %v2858 = vunpack.c.l.b16 %v2736
    %v2859 = vunpack.c.h.b16 %v2736
    %v2860 = vunpack.c.l.b16 %v2737
    %v2861 = vunpack.c.h.b16 %v2737
    %v2862 = vunpack.c.l.b16 %v2738
    %v2863 = vunpack.c.h.b16 %v2738
    %v2864 = vunpack.c.l.b16 %v2739
    %v2865 = vunpack.c.h.b16 %v2739
    %v2866 = vunpack.c.l.b16 %v2740
    %v2867 = vunpack.c.h.b16 %v2740
    %v2868 = vunpack.c.l.b16 %v2741
    %v2869 = vunpack.c.h.b16 %v2741
    %v2870 = vpack.c.b16 %v2856, %v2854
    %v2871 = vpack.c.b16 %v2857, %v2855
    %v2872 = vpack.c.b16 %v2860, %v2858
    %v2873 = vpack.c.b16 %v2861, %v2859
    %v2874 = vpack.c.b16 %v2864, %v2862
    %v2875 = vpack.c.b16 %v2865, %v2863
    %v2876 = vpack.c.b16 %v2868, %v2866
    %v2877 = vpack.c.b16 %v2869, %v2867
    %v2887 = vsel %vm1086, %v2758, 0
    %2889 = vmatprep.subr.bf16.mxu0 %v2871
    %2890 = vmatpush1.bf16.msra.mxu0 %v2870
    %2891 = vmatprep.subr.bf16.mxu0 %v2873
    %2892 = vmatpush1.bf16.msra.mxu0 %v2872
    %2893 = vmatprep.subr.bf16.mxu0 %v2875
    %2894 = vmatpush1.bf16.msra.mxu0 %v2874
    %2895 = vmatprep.subr.bf16.mxu0 %v2877
    %2896 = vmatpush1.bf16.msra.mxu0 %v2876
    %2897 = vmatprep.subr.bf16.mxu0 0
    %2898 = vmatpush1.bf16.msra.mxu0 0
    %2899 = vmatprep.subr.bf16.mxu0 0
    %2900 = vmatpush1.bf16.msra.mxu0 0
    %2901 = vmatprep.subr.bf16.mxu0 0
    %2902 = vmatpush1.bf16.msra.mxu0 0
    %2903 = vmatprep.subr.bf16.mxu0 0
    %2904 = vmatpush1.bf16.msra.mxu0 0
    %2905 = vmatprep.subr.bf16.mxu0 0
    %2906 = vmatpush1.bf16.msra.mxu0 0
    %2907 = vmatprep.subr.bf16.mxu0 0
    %2908 = vmatpush1.bf16.msra.mxu0 0
    %2909 = vmatprep.subr.bf16.mxu0 0
    %2910 = vmatpush1.bf16.msra.mxu0 0
    %2911 = vmatprep.subr.bf16.mxu0 0
    %2912 = vmatpush1.bf16.msra.mxu0 0
    %2913 = vmatprep.subr.bf16.mxu0 0
    %2914 = vmatpush1.bf16.msra.mxu0 0
    %2915 = vmatprep.subr.bf16.mxu0 0
    %2916 = vmatpush1.bf16.msra.mxu0 0
    %2917 = vmatprep.subr.bf16.mxu0 0
    %2918 = vmatpush1.bf16.msra.mxu0 0
    %2919 = vmatprep.subr.bf16.mxu0 0
    %2920 = vmatpush1.bf16.msra.mxu0 0
    %2921 = vmatprep.mubr.bf16.mxu0 0
    %2922 = vmatmul.mubr.bf16.gmra.mrb[0].mxu0 %v2887
    %v2923 = vpop.f32.mrb[0].mxu0
    %v2924 = vadd.f32 %v2838, %v2923
    %v2925 = vpop.f32.mrb[0].mxu0
    %v2926 = vadd.f32 %v2840, %v2925
    %v2927 = vpop.f32.mrb[0].mxu0
    %v2928 = vadd.f32 %v2842, %v2927
    %v2929 = vpop.f32.mrb[0].mxu0
    %v2930 = vadd.f32 %v2844, %v2929
    %2931 = vdwg.mxu0
    %v2932 = vpack.c.bf16 %v2733, %v2732
    %v2941 = vunpack.c.l.b16 %v2750
    %v2942 = vunpack.c.h.b16 %v2750
    %v2943 = vunpack.c.l.b16 %v2751
    %v2944 = vunpack.c.h.b16 %v2751
    %v2945 = vunpack.c.l.b16 %v2752
    %v2946 = vunpack.c.h.b16 %v2752
    %v2947 = vunpack.c.l.b16 %v2753
    %v2948 = vunpack.c.h.b16 %v2753
    %v2949 = vunpack.c.l.b16 %v2754
    %v2950 = vunpack.c.h.b16 %v2754
    %v2951 = vunpack.c.l.b16 %v2755
    %v2952 = vunpack.c.h.b16 %v2755
    %v2953 = vunpack.c.l.b16 %v2756
    %v2954 = vunpack.c.h.b16 %v2756
    %v2955 = vunpack.c.l.b16 %v2757
    %v2956 = vunpack.c.h.b16 %v2757
    %v2957 = vpack.c.b16 %v2943, %v2941
    %v2958 = vpack.c.b16 %v2944, %v2942
    %v2959 = vpack.c.b16 %v2947, %v2945
    %v2960 = vpack.c.b16 %v2948, %v2946
    %v2961 = vpack.c.b16 %v2951, %v2949
    %v2962 = vpack.c.b16 %v2952, %v2950
    %v2963 = vpack.c.b16 %v2955, %v2953
    %v2964 = vpack.c.b16 %v2956, %v2954
    %v2974 = vsel %vm1086, %v2932, 0
    %2976 = vmatprep.subr.bf16.mxu0 %v2958
    %2977 = vmatpush1.bf16.msra.mxu0 %v2957
    %2978 = vmatprep.subr.bf16.mxu0 %v2960
    %2979 = vmatpush1.bf16.msra.mxu0 %v2959
    %2980 = vmatprep.subr.bf16.mxu0 %v2962
    %2981 = vmatpush1.bf16.msra.mxu0 %v2961
    %2982 = vmatprep.subr.bf16.mxu0 %v2964
    %2983 = vmatpush1.bf16.msra.mxu0 %v2963
    %2984 = vmatprep.subr.bf16.mxu0 0
    %2985 = vmatpush1.bf16.msra.mxu0 0
    %2986 = vmatprep.subr.bf16.mxu0 0
    %2987 = vmatpush1.bf16.msra.mxu0 0
    %2988 = vmatprep.subr.bf16.mxu0 0
    %2989 = vmatpush1.bf16.msra.mxu0 0
    %2990 = vmatprep.subr.bf16.mxu0 0
    %2991 = vmatpush1.bf16.msra.mxu0 0
    %2992 = vmatprep.subr.bf16.mxu0 0
    %2993 = vmatpush1.bf16.msra.mxu0 0
    %2994 = vmatprep.subr.bf16.mxu0 0
    %2995 = vmatpush1.bf16.msra.mxu0 0
    %2996 = vmatprep.subr.bf16.mxu0 0
    %2997 = vmatpush1.bf16.msra.mxu0 0
    %2998 = vmatprep.subr.bf16.mxu0 0
    %2999 = vmatpush1.bf16.msra.mxu0 0
    %3000 = vmatprep.subr.bf16.mxu0 0
    %3001 = vmatpush1.bf16.msra.mxu0 0
    %3002 = vmatprep.subr.bf16.mxu0 0
    %3003 = vmatpush1.bf16.msra.mxu0 0
    %3004 = vmatprep.subr.bf16.mxu0 0
    %3005 = vmatpush1.bf16.msra.mxu0 0
    %3006 = vmatprep.subr.bf16.mxu0 0
    %3007 = vmatpush1.bf16.msra.mxu0 0
    %3008 = vmatprep.mubr.bf16.mxu0 0
    %3009 = vmatmul.mubr.bf16.gmra.mrb[0].mxu0 %v2974
    %v3010 = vpop.f32.mrb[0].mxu0
    %v3011 = vadd.f32 0.0, %v3010
    %v3012 = vpop.f32.mrb[0].mxu0
    %v3013 = vadd.f32 0.0, %v3012
    %v3014 = vpop.f32.mrb[0].mxu0
    %v3015 = vadd.f32 0.0, %v3014
    %v3016 = vpop.f32.mrb[0].mxu0
    %v3017 = vadd.f32 0.0, %v3016
    %3018 = vdwg.mxu0
    %v3019 = vadd.f32 %v2924, %v3011
    %v3020 = vadd.f32 %v2926, %v3013
    %v3021 = vadd.f32 %v2928, %v3015
    %v3022 = vadd.f32 %v2930, %v3017
    %s3023 = scalar_lea.vmem %s2, 7
    %v3024 = vld [vmem:[%s3023] ss:$8 sm:$0x3]
    %v3026 = vlaneseq
    %v3027 = vshrl.u32 %v3026, 7
    %v3028 = vsub.s32 0, %v3027
    %v3029 = vrot.slane %v3024, %v3028
    %v3030 = vlaneseq
    %v3031 = vshrl.u32 %v3030, 7
    %v3032 = vsub.s32 1, %v3031
    %v3033 = vrot.slane %v3024, %v3032
    %v3036 = vadd.f32 %v3019, %v3029
    %v3037 = vadd.f32 %v3020, %v3033
    %v3038 = vadd.f32 %v3021, %v3029
    %v3039 = vadd.f32 %v3022, %v3033
    %v3040 = vmax.f32 %v3036, 0.0
    %v3041 = vmax.f32 %v3037, 0.0
    %v3042 = vmax.f32 %v3038, 0.0
    %v3043 = vmax.f32 %v3039, 0.0
    %v3044 = vmax.f32 %v3040, %v3041
    %v3045 = vmax.f32 %v3042, %v3043
    %3046 = vst.msk [vmem:[#allocation3] sm:$0xff] %vm69, %v3044
    %3047 = vst.msk [vmem:[#allocation3 + $0x8] sm:$0xff] %vm69, %v3045
    %v3048 = vld [vmem:[#allocation3] ss:$2 sm:$0xff]
    %v3049 = vld [vmem:[%s1102] ss:$2 sm:$0xff]
    %v3050 = vmax.f32 %v3048, %v3049
    %v3051 = vand.u32 %v37, 3
    %vm3052 = vcmp.eq.s32.totalorder %v3051, 0
    %vm3053 = vcmp.eq.s32.totalorder %v3051, 3
    %3054 = vst.msk [vmem:[#allocation2 + $0x10] sm:$0xff] %vm69, %v3050
    %v3055 = vld [vmem:[#allocation2 + $0xf] sm:$0xff]
    %v3056 = vld [vmem:[#allocation2 + $0x11] sm:$0xff]
    %v3057 = vsel %vm3052, 1, 0
    %vm3058 = vcmp.eq.s32.totalorder %v3057, 1
    %v3059 = vsel %vm3058, 0.0, %v3055
    %v3060 = vsel %vm3053, 1, 0
    %vm3061 = vcmp.eq.s32.totalorder %v3060, 1
    %v3062 = vsel %vm3061, 0.0, %v3056
    %v3063 = vld [vmem:[%s1 + $0x720] sm:$0xf]
    %v3064 = vld [vmem:[%s1 + $0x728] sm:$0xf]
    %v3065 = vld [vmem:[%s1 + $0x730] sm:$0xf]
    %v3066 = vld [vmem:[%s1 + $0x738] sm:$0xf]
    %v3067 = vld [vmem:[%s1 + $0x740] sm:$0xf]
    %v3068 = vld [vmem:[%s1 + $0x748] sm:$0xf]
    %v3069 = vld [vmem:[%s1 + $0x750] sm:$0xf]
    %v3070 = vld [vmem:[%s1 + $0x758] sm:$0xf]
    %v3071 = vld [vmem:[%s1 + $0x760] sm:$0xf]
    %v3072 = vld [vmem:[%s1 + $0x768] sm:$0xf]
    %v3073 = vld [vmem:[%s1 + $0x770] sm:$0xf]
    %v3074 = vld [vmem:[%s1 + $0x778] sm:$0xf]
    %v3075 = vpack.c.bf16 %v3059, %v3059
    %v3076 = vpack.c.bf16 %v3050, %v3050
    %v3081 = vunpack.c.l.b16 %v3067
    %v3082 = vunpack.c.l.b16 %v3068
    %v3083 = vunpack.c.l.b16 %v3069
    %v3084 = vunpack.c.l.b16 %v3070
    %v3085 = vpack.c.b16 %v3082, %v3081
    %v3086 = vpack.c.b16 %v3084, %v3083
    %v3090 = vsel %vm69, %v3076, 0
    %3092 = vmatprep.subr.bf16.mxu0 0
    %3093 = vmatpush1.bf16.msra.mxu0 %v3085
    %3094 = vmatprep.subr.bf16.mxu0 0
    %3095 = vmatpush1.bf16.msra.mxu0 %v3086
    %3096 = vmatprep.subr.bf16.mxu0 0
    %3097 = vmatpush1.bf16.msra.mxu0 0
    %3098 = vmatprep.subr.bf16.mxu0 0
    %3099 = vmatpush1.bf16.msra.mxu0 0
    %3100 = vmatprep.subr.bf16.mxu0 0
    %3101 = vmatpush1.bf16.msra.mxu0 0
    %3102 = vmatprep.subr.bf16.mxu0 0
    %3103 = vmatpush1.bf16.msra.mxu0 0
    %3104 = vmatprep.subr.bf16.mxu0 0
    %3105 = vmatpush1.bf16.msra.mxu0 0
    %3106 = vmatprep.subr.bf16.mxu0 0
    %3107 = vmatpush1.bf16.msra.mxu0 0
    %3108 = vmatprep.subr.bf16.mxu0 0
    %3109 = vmatpush1.bf16.msra.mxu0 0
    %3110 = vmatprep.subr.bf16.mxu0 0
    %3111 = vmatpush1.bf16.msra.mxu0 0
    %3112 = vmatprep.subr.bf16.mxu0 0
    %3113 = vmatpush1.bf16.msra.mxu0 0
    %3114 = vmatprep.subr.bf16.mxu0 0
    %3115 = vmatpush1.bf16.msra.mxu0 0
    %3116 = vmatprep.subr.bf16.mxu0 0
    %3117 = vmatpush1.bf16.msra.mxu0 0
    %3118 = vmatprep.subr.bf16.mxu0 0
    %3119 = vmatpush1.bf16.msra.mxu0 0
    %3120 = vmatprep.subr.bf16.mxu0 0
    %3121 = vmatpush1.bf16.msra.mxu0 0
    %3122 = vmatprep.subr.bf16.mxu0 0
    %3123 = vmatpush1.bf16.msra.mxu0 0
    %3124 = vmatprep.mubr.bf16.mxu0 0
    %3125 = vmatmul.mubr.bf16.gmra.mrb[0].mxu0 %v3090
    %v3126 = vpop.f32.mrb[0].mxu0
    %v3127 = vadd.f32 0.0, %v3126
    %v3128 = vpop.f32.mrb[0].mxu0
    %v3129 = vpop.f32.mrb[0].mxu0
    %v3130 = vpop.f32.mrb[0].mxu0
    %3131 = vdwg.mxu0
    %v3136 = vunpack.c.l.b16 %v3063
    %v3137 = vunpack.c.l.b16 %v3064
    %v3138 = vunpack.c.l.b16 %v3065
    %v3139 = vunpack.c.l.b16 %v3066
    %v3140 = vpack.c.b16 %v3137, %v3136
    %v3141 = vpack.c.b16 %v3139, %v3138
    %v3145 = vsel %vm69, %v3075, 0
    %3147 = vmatprep.subr.bf16.mxu0 0
    %3148 = vmatpush1.bf16.msra.mxu0 %v3140
    %3149 = vmatprep.subr.bf16.mxu0 0
    %3150 = vmatpush1.bf16.msra.mxu0 %v3141
    %3151 = vmatprep.subr.bf16.mxu0 0
    %3152 = vmatpush1.bf16.msra.mxu0 0
    %3153 = vmatprep.subr.bf16.mxu0 0
    %3154 = vmatpush1.bf16.msra.mxu0 0
    %3155 = vmatprep.subr.bf16.mxu0 0
    %3156 = vmatpush1.bf16.msra.mxu0 0
    %3157 = vmatprep.subr.bf16.mxu0 0
    %3158 = vmatpush1.bf16.msra.mxu0 0
    %3159 = vmatprep.subr.bf16.mxu0 0
    %3160 = vmatpush1.bf16.msra.mxu0 0
    %3161 = vmatprep.subr.bf16.mxu0 0
    %3162 = vmatpush1.bf16.msra.mxu0 0
    %3163 = vmatprep.subr.bf16.mxu0 0
    %3164 = vmatpush1.bf16.msra.mxu0 0
    %3165 = vmatprep.subr.bf16.mxu0 0
    %3166 = vmatpush1.bf16.msra.mxu0 0
    %3167 = vmatprep.subr.bf16.mxu0 0
    %3168 = vmatpush1.bf16.msra.mxu0 0
    %3169 = vmatprep.subr.bf16.mxu0 0
    %3170 = vmatpush1.bf16.msra.mxu0 0
    %3171 = vmatprep.subr.bf16.mxu0 0
    %3172 = vmatpush1.bf16.msra.mxu0 0
    %3173 = vmatprep.subr.bf16.mxu0 0
    %3174 = vmatpush1.bf16.msra.mxu0 0
    %3175 = vmatprep.subr.bf16.mxu0 0
    %3176 = vmatpush1.bf16.msra.mxu0 0
    %3177 = vmatprep.subr.bf16.mxu0 0
    %3178 = vmatpush1.bf16.msra.mxu0 0
    %3179 = vmatprep.mubr.bf16.mxu0 0
    %3180 = vmatmul.mubr.bf16.gmra.mrb[0].mxu0 %v3145
    %v3181 = vpop.f32.mrb[0].mxu0
    %v3182 = vadd.f32 %v3127, %v3181
    %v3183 = vpop.f32.mrb[0].mxu0
    %v3184 = vpop.f32.mrb[0].mxu0
    %v3185 = vpop.f32.mrb[0].mxu0
    %3186 = vdwg.mxu0
    %v3187 = vpack.c.bf16 %v3062, %v3062
    %v3192 = vunpack.c.l.b16 %v3071
    %v3193 = vunpack.c.l.b16 %v3072
    %v3194 = vunpack.c.l.b16 %v3073
    %v3195 = vunpack.c.l.b16 %v3074
    %v3196 = vpack.c.b16 %v3193, %v3192
    %v3197 = vpack.c.b16 %v3195, %v3194
    %v3201 = vsel %vm69, %v3187, 0
    %3203 = vmatprep.subr.bf16.mxu0 0
    %3204 = vmatpush1.bf16.msra.mxu0 %v3196
    %3205 = vmatprep.subr.bf16.mxu0 0
    %3206 = vmatpush1.bf16.msra.mxu0 %v3197
    %3207 = vmatprep.subr.bf16.mxu0 0
    %3208 = vmatpush1.bf16.msra.mxu0 0
    %3209 = vmatprep.subr.bf16.mxu0 0
    %3210 = vmatpush1.bf16.msra.mxu0 0
    %3211 = vmatprep.subr.bf16.mxu0 0
    %3212 = vmatpush1.bf16.msra.mxu0 0
    %3213 = vmatprep.subr.bf16.mxu0 0
    %3214 = vmatpush1.bf16.msra.mxu0 0
    %3215 = vmatprep.subr.bf16.mxu0 0
    %3216 = vmatpush1.bf16.msra.mxu0 0
    %3217 = vmatprep.subr.bf16.mxu0 0
    %3218 = vmatpush1.bf16.msra.mxu0 0
    %3219 = vmatprep.subr.bf16.mxu0 0
    %3220 = vmatpush1.bf16.msra.mxu0 0
    %3221 = vmatprep.subr.bf16.mxu0 0
    %3222 = vmatpush1.bf16.msra.mxu0 0
    %3223 = vmatprep.subr.bf16.mxu0 0
    %3224 = vmatpush1.bf16.msra.mxu0 0
    %3225 = vmatprep.subr.bf16.mxu0 0
    %3226 = vmatpush1.bf16.msra.mxu0 0
    %3227 = vmatprep.subr.bf16.mxu0 0
    %3228 = vmatpush1.bf16.msra.mxu0 0
    %3229 = vmatprep.subr.bf16.mxu0 0
    %3230 = vmatpush1.bf16.msra.mxu0 0
    %3231 = vmatprep.subr.bf16.mxu0 0
    %3232 = vmatpush1.bf16.msra.mxu0 0
    %3233 = vmatprep.subr.bf16.mxu0 0
    %3234 = vmatpush1.bf16.msra.mxu0 0
    %3235 = vmatprep.mubr.bf16.mxu0 0
    %3236 = vmatmul.mubr.bf16.gmra.mrb[0].mxu0 %v3201
    %v3237 = vpop.f32.mrb[0].mxu0
    %v3238 = vadd.f32 0.0, %v3237
    %v3239 = vpop.f32.mrb[0].mxu0
    %v3240 = vpop.f32.mrb[0].mxu0
    %v3241 = vpop.f32.mrb[0].mxu0
    %3242 = vdwg.mxu0
    %v3243 = vadd.f32 %v3182, %v3238
    %v3244 = vld [vmem:[%s2 + $0x10] ss:$0 sm:$0xff]
    %v3245 = vadd.f32 %v3243, %v3244
    %v3246 = vmax.f32 %v3245, 0.0
    %3247 = vst.msk [vmem:[#allocation2 + $0x10] sm:$0xff] %vm1086, %v3246
    %v3248 = vld [vmem:[#allocation2 + $0xf] sm:$0xff]
    %v3249 = vld [vmem:[#allocation2 + $0x11] sm:$0xff]
    %v3250 = vsel %vm3058, 0.0, %v3248
    %v3251 = vsel %vm3061, 0.0, %v3249
    %v3252 = vld [vmem:[%s1 + $0x780] sm:$0xf]
    %v3253 = vld [vmem:[%s1 + $0x788] sm:$0xf]
    %v3254 = vld [vmem:[%s1 + $0x790] sm:$0xf]
    %v3255 = vld [vmem:[%s1 + $0x798] sm:$0xf]
    %v3256 = vld [vmem:[%s1 + $0x7a0] sm:$0xf]
    %v3257 = vld [vmem:[%s1 + $0x7a8] sm:$0xf]
    %v3258 = vld [vmem:[%s1 + $0x7b0] sm:$0xf]
    %v3259 = vld [vmem:[%s1 + $0x7b8] sm:$0xf]
    %v3260 = vld [vmem:[%s1 + $0x7c0] sm:$0xf]
    %v3261 = vld [vmem:[%s1 + $0x7c8] sm:$0xf]
    %v3262 = vld [vmem:[%s1 + $0x7d0] sm:$0xf]
    %v3263 = vld [vmem:[%s1 + $0x7d8] sm:$0xf]
    %v3264 = vld [vmem:[%s1 + $0x7e0] sm:$0xf]
    %v3265 = vld [vmem:[%s1 + $0x7e8] sm:$0xf]
    %v3266 = vld [vmem:[%s1 + $0x7f0] sm:$0xf]
    %v3267 = vld [vmem:[%s1 + $0x7f8] sm:$0xf]
    %v3268 = vld [vmem:[%s1 + $0x800] sm:$0xf]
    %v3269 = vld [vmem:[%s1 + $0x808] sm:$0xf]
    %v3270 = vld [vmem:[%s1 + $0x810] sm:$0xf]
    %v3271 = vld [vmem:[%s1 + $0x818] sm:$0xf]
    %v3272 = vld [vmem:[%s1 + $0x820] sm:$0xf]
    %v3273 = vld [vmem:[%s1 + $0x828] sm:$0xf]
    %v3274 = vld [vmem:[%s1 + $0x830] sm:$0xf]
    %v3275 = vld [vmem:[%s1 + $0x838] sm:$0xf]
    %v3276 = vpack.c.bf16 %v3250, %v3250
    %v3277 = vpack.c.bf16 %v3246, %v3246
    %v3286 = vunpack.c.l.b16 %v3260
    %v3287 = vunpack.c.l.b16 %v3261
    %v3288 = vunpack.c.l.b16 %v3262
    %v3289 = vunpack.c.l.b16 %v3263
    %v3290 = vunpack.c.l.b16 %v3264
    %v3291 = vunpack.c.l.b16 %v3265
    %v3292 = vunpack.c.l.b16 %v3266
    %v3293 = vunpack.c.l.b16 %v3267
    %v3294 = vpack.c.b16 %v3287, %v3286
    %v3295 = vpack.c.b16 %v3289, %v3288
    %v3296 = vpack.c.b16 %v3291, %v3290
    %v3297 = vpack.c.b16 %v3293, %v3292
    %v3303 = vsel %vm1086, %v3277, 0
    %3305 = vmatprep.subr.bf16.mxu0 0
    %3306 = vmatpush1.bf16.msra.mxu0 %v3294
    %3307 = vmatprep.subr.bf16.mxu0 0
    %3308 = vmatpush1.bf16.msra.mxu0 %v3295
    %3309 = vmatprep.subr.bf16.mxu0 0
    %3310 = vmatpush1.bf16.msra.mxu0 %v3296
    %3311 = vmatprep.subr.bf16.mxu0 0
    %3312 = vmatpush1.bf16.msra.mxu0 %v3297
    %3313 = vmatprep.subr.bf16.mxu0 0
    %3314 = vmatpush1.bf16.msra.mxu0 0
    %3315 = vmatprep.subr.bf16.mxu0 0
    %3316 = vmatpush1.bf16.msra.mxu0 0
    %3317 = vmatprep.subr.bf16.mxu0 0
    %3318 = vmatpush1.bf16.msra.mxu0 0
    %3319 = vmatprep.subr.bf16.mxu0 0
    %3320 = vmatpush1.bf16.msra.mxu0 0
    %3321 = vmatprep.subr.bf16.mxu0 0
    %3322 = vmatpush1.bf16.msra.mxu0 0
    %3323 = vmatprep.subr.bf16.mxu0 0
    %3324 = vmatpush1.bf16.msra.mxu0 0
    %3325 = vmatprep.subr.bf16.mxu0 0
    %3326 = vmatpush1.bf16.msra.mxu0 0
    %3327 = vmatprep.subr.bf16.mxu0 0
    %3328 = vmatpush1.bf16.msra.mxu0 0
    %3329 = vmatprep.subr.bf16.mxu0 0
    %3330 = vmatpush1.bf16.msra.mxu0 0
    %3331 = vmatprep.subr.bf16.mxu0 0
    %3332 = vmatpush1.bf16.msra.mxu0 0
    %3333 = vmatprep.subr.bf16.mxu0 0
    %3334 = vmatpush1.bf16.msra.mxu0 0
    %3335 = vmatprep.subr.bf16.mxu0 0
    %3336 = vmatpush1.bf16.msra.mxu0 0
    %3337 = vmatprep.mubr.bf16.mxu0 0
    %3338 = vmatmul.mubr.bf16.gmra.mrb[0].mxu0 %v3303
    %v3339 = vpop.f32.mrb[0].mxu0
    %v3340 = vadd.f32 0.0, %v3339
    %v3341 = vpop.f32.mrb[0].mxu0
    %v3342 = vpop.f32.mrb[0].mxu0
    %v3343 = vpop.f32.mrb[0].mxu0
    %3344 = vdwg.mxu0
    %v3353 = vunpack.c.l.b16 %v3252
    %v3354 = vunpack.c.l.b16 %v3253
    %v3355 = vunpack.c.l.b16 %v3254
    %v3356 = vunpack.c.l.b16 %v3255
    %v3357 = vunpack.c.l.b16 %v3256
    %v3358 = vunpack.c.l.b16 %v3257
    %v3359 = vunpack.c.l.b16 %v3258
    %v3360 = vunpack.c.l.b16 %v3259
    %v3361 = vpack.c.b16 %v3354, %v3353
    %v3362 = vpack.c.b16 %v3356, %v3355
    %v3363 = vpack.c.b16 %v3358, %v3357
    %v3364 = vpack.c.b16 %v3360, %v3359
    %v3370 = vsel %vm1086, %v3276, 0
    %3372 = vmatprep.subr.bf16.mxu0 0
    %3373 = vmatpush1.bf16.msra.mxu0 %v3361
    %3374 = vmatprep.subr.bf16.mxu0 0
    %3375 = vmatpush1.bf16.msra.mxu0 %v3362
    %3376 = vmatprep.subr.bf16.mxu0 0
    %3377 = vmatpush1.bf16.msra.mxu0 %v3363
    %3378 = vmatprep.subr.bf16.mxu0 0
    %3379 = vmatpush1.bf16.msra.mxu0 %v3364
    %3380 = vmatprep.subr.bf16.mxu0 0
    %3381 = vmatpush1.bf16.msra.mxu0 0
    %3382 = vmatprep.subr.bf16.mxu0 0
    %3383 = vmatpush1.bf16.msra.mxu0 0
    %3384 = vmatprep.subr.bf16.mxu0 0
    %3385 = vmatpush1.bf16.msra.mxu0 0
    %3386 = vmatprep.subr.bf16.mxu0 0
    %3387 = vmatpush1.bf16.msra.mxu0 0
    %3388 = vmatprep.subr.bf16.mxu0 0
    %3389 = vmatpush1.bf16.msra.mxu0 0
    %3390 = vmatprep.subr.bf16.mxu0 0
    %3391 = vmatpush1.bf16.msra.mxu0 0
    %3392 = vmatprep.subr.bf16.mxu0 0
    %3393 = vmatpush1.bf16.msra.mxu0 0
    %3394 = vmatprep.subr.bf16.mxu0 0
    %3395 = vmatpush1.bf16.msra.mxu0 0
    %3396 = vmatprep.subr.bf16.mxu0 0
    %3397 = vmatpush1.bf16.msra.mxu0 0
    %3398 = vmatprep.subr.bf16.mxu0 0
    %3399 = vmatpush1.bf16.msra.mxu0 0
    %3400 = vmatprep.subr.bf16.mxu0 0
    %3401 = vmatpush1.bf16.msra.mxu0 0
    %3402 = vmatprep.subr.bf16.mxu0 0
    %3403 = vmatpush1.bf16.msra.mxu0 0
    %3404 = vmatprep.mubr.bf16.mxu0 0
    %3405 = vmatmul.mubr.bf16.gmra.mrb[0].mxu0 %v3370
    %v3406 = vpop.f32.mrb[0].mxu0
    %v3407 = vadd.f32 %v3340, %v3406
    %v3408 = vpop.f32.mrb[0].mxu0
    %v3409 = vpop.f32.mrb[0].mxu0
    %v3410 = vpop.f32.mrb[0].mxu0
    %3411 = vdwg.mxu0
    %v3412 = vpack.c.bf16 %v3251, %v3251
    %v3421 = vunpack.c.l.b16 %v3268
    %v3422 = vunpack.c.l.b16 %v3269
    %v3423 = vunpack.c.l.b16 %v3270
    %v3424 = vunpack.c.l.b16 %v3271
    %v3425 = vunpack.c.l.b16 %v3272
    %v3426 = vunpack.c.l.b16 %v3273
    %v3427 = vunpack.c.l.b16 %v3274
    %v3428 = vunpack.c.l.b16 %v3275
    %v3429 = vpack.c.b16 %v3422, %v3421
    %v3430 = vpack.c.b16 %v3424, %v3423
    %v3431 = vpack.c.b16 %v3426, %v3425
    %v3432 = vpack.c.b16 %v3428, %v3427
    %v3438 = vsel %vm1086, %v3412, 0
    %3440 = vmatprep.subr.bf16.mxu0 0
    %3441 = vmatpush1.bf16.msra.mxu0 %v3429
    %3442 = vmatprep.subr.bf16.mxu0 0
    %3443 = vmatpush1.bf16.msra.mxu0 %v3430
    %3444 = vmatprep.subr.bf16.mxu0 0
    %3445 = vmatpush1.bf16.msra.mxu0 %v3431
    %3446 = vmatprep.subr.bf16.mxu0 0
    %3447 = vmatpush1.bf16.msra.mxu0 %v3432
    %3448 = vmatprep.subr.bf16.mxu0 0
    %3449 = vmatpush1.bf16.msra.mxu0 0
    %3450 = vmatprep.subr.bf16.mxu0 0
    %3451 = vmatpush1.bf16.msra.mxu0 0
    %3452 = vmatprep.subr.bf16.mxu0 0
    %3453 = vmatpush1.bf16.msra.mxu0 0
    %3454 = vmatprep.subr.bf16.mxu0 0
    %3455 = vmatpush1.bf16.msra.mxu0 0
    %3456 = vmatprep.subr.bf16.mxu0 0
    %3457 = vmatpush1.bf16.msra.mxu0 0
    %3458 = vmatprep.subr.bf16.mxu0 0
    %3459 = vmatpush1.bf16.msra.mxu0 0
    %3460 = vmatprep.subr.bf16.mxu0 0
    %3461 = vmatpush1.bf16.msra.mxu0 0
    %3462 = vmatprep.subr.bf16.mxu0 0
    %3463 = vmatpush1.bf16.msra.mxu0 0
    %3464 = vmatprep.subr.bf16.mxu0 0
    %3465 = vmatpush1.bf16.msra.mxu0 0
    %3466 = vmatprep.subr.bf16.mxu0 0
    %3467 = vmatpush1.bf16.msra.mxu0 0
    %3468 = vmatprep.subr.bf16.mxu0 0
    %3469 = vmatpush1.bf16.msra.mxu0 0
    %3470 = vmatprep.subr.bf16.mxu0 0
    %3471 = vmatpush1.bf16.msra.mxu0 0
    %3472 = vmatprep.mubr.bf16.mxu0 0
    %3473 = vmatmul.mubr.bf16.gmra.mrb[0].mxu0 %v3438
    %v3474 = vpop.f32.mrb[0].mxu0
    %v3475 = vadd.f32 0.0, %v3474
    %v3476 = vpop.f32.mrb[0].mxu0
    %v3477 = vpop.f32.mrb[0].mxu0
    %v3478 = vpop.f32.mrb[0].mxu0
    %3479 = vdwg.mxu0
    %v3480 = vadd.f32 %v3407, %v3475
    %v3481 = vld [vmem:[%s2 + $0x11] ss:$0 sm:$0xff]
    %v3482 = vadd.f32 %v3480, %v3481
    %v3483 = vmax.f32 %v3482, 0.0
    %3484 = vst.msk [vmem:[#allocation2 + $0x10] sm:$0xff] %vm1086, %v3483
    %v3485 = vld [vmem:[#allocation2 + $0xf] sm:$0xff]
    %v3486 = vld [vmem:[#allocation2 + $0x11] sm:$0xff]
    %v3487 = vsel %vm3058, 0.0, %v3485
    %v3488 = vsel %vm3061, 0.0, %v3486
    %v3489 = vld [vmem:[%s1 + $0x840] sm:$0xf]
    %v3490 = vld [vmem:[%s1 + $0x848] sm:$0xf]
    %v3491 = vld [vmem:[%s1 + $0x850] sm:$0xf]
    %v3492 = vld [vmem:[%s1 + $0x858] sm:$0xf]
    %v3493 = vld [vmem:[%s1 + $0x860] sm:$0xf]
    %v3494 = vld [vmem:[%s1 + $0x868] sm:$0xf]
    %v3495 = vld [vmem:[%s1 + $0x870] sm:$0xf]
    %v3496 = vld [vmem:[%s1 + $0x878] sm:$0xf]
    %v3497 = vld [vmem:[%s1 + $0x880] sm:$0xf]
    %v3498 = vld [vmem:[%s1 + $0x888] sm:$0xf]
    %v3499 = vld [vmem:[%s1 + $0x890] sm:$0xf]
    %v3500 = vld [vmem:[%s1 + $0x898] sm:$0xf]
    %v3501 = vld [vmem:[%s1 + $0x8a0] sm:$0xf]
    %v3502 = vld [vmem:[%s1 + $0x8a8] sm:$0xf]
    %v3503 = vld [vmem:[%s1 + $0x8b0] sm:$0xf]
    %v3504 = vld [vmem:[%s1 + $0x8b8] sm:$0xf]
    %v3505 = vld [vmem:[%s1 + $0x8c0] sm:$0xf]
    %v3506 = vld [vmem:[%s1 + $0x8c8] sm:$0xf]
    %v3507 = vld [vmem:[%s1 + $0x8d0] sm:$0xf]
    %v3508 = vld [vmem:[%s1 + $0x8d8] sm:$0xf]
    %v3509 = vld [vmem:[%s1 + $0x8e0] sm:$0xf]
    %v3510 = vld [vmem:[%s1 + $0x8e8] sm:$0xf]
    %v3511 = vld [vmem:[%s1 + $0x8f0] sm:$0xf]
    %v3512 = vld [vmem:[%s1 + $0x8f8] sm:$0xf]
    %v3513 = vpack.c.bf16 %v3487, %v3487
    %v3514 = vpack.c.bf16 %v3483, %v3483
    %v3523 = vunpack.c.l.b16 %v3497
    %v3524 = vunpack.c.l.b16 %v3498
    %v3525 = vunpack.c.l.b16 %v3499
    %v3526 = vunpack.c.l.b16 %v3500
    %v3527 = vunpack.c.l.b16 %v3501
    %v3528 = vunpack.c.l.b16 %v3502
    %v3529 = vunpack.c.l.b16 %v3503
    %v3530 = vunpack.c.l.b16 %v3504
    %v3531 = vpack.c.b16 %v3524, %v3523
    %v3532 = vpack.c.b16 %v3526, %v3525
    %v3533 = vpack.c.b16 %v3528, %v3527
    %v3534 = vpack.c.b16 %v3530, %v3529
    %v3540 = vsel %vm1086, %v3514, 0
    %3542 = vmatprep.subr.bf16.mxu0 0
    %3543 = vmatpush1.bf16.msra.mxu0 %v3531
    %3544 = vmatprep.subr.bf16.mxu0 0
    %3545 = vmatpush1.bf16.msra.mxu0 %v3532
    %3546 = vmatprep.subr.bf16.mxu0 0
    %3547 = vmatpush1.bf16.msra.mxu0 %v3533
    %3548 = vmatprep.subr.bf16.mxu0 0
    %3549 = vmatpush1.bf16.msra.mxu0 %v3534
    %3550 = vmatprep.subr.bf16.mxu0 0
    %3551 = vmatpush1.bf16.msra.mxu0 0
    %3552 = vmatprep.subr.bf16.mxu0 0
    %3553 = vmatpush1.bf16.msra.mxu0 0
    %3554 = vmatprep.subr.bf16.mxu0 0
    %3555 = vmatpush1.bf16.msra.mxu0 0
    %3556 = vmatprep.subr.bf16.mxu0 0
    %3557 = vmatpush1.bf16.msra.mxu0 0
    %3558 = vmatprep.subr.bf16.mxu0 0
    %3559 = vmatpush1.bf16.msra.mxu0 0
    %3560 = vmatprep.subr.bf16.mxu0 0
    %3561 = vmatpush1.bf16.msra.mxu0 0
    %3562 = vmatprep.subr.bf16.mxu0 0
    %3563 = vmatpush1.bf16.msra.mxu0 0
    %3564 = vmatprep.subr.bf16.mxu0 0
    %3565 = vmatpush1.bf16.msra.mxu0 0
    %3566 = vmatprep.subr.bf16.mxu0 0
    %3567 = vmatpush1.bf16.msra.mxu0 0
    %3568 = vmatprep.subr.bf16.mxu0 0
    %3569 = vmatpush1.bf16.msra.mxu0 0
    %3570 = vmatprep.subr.bf16.mxu0 0
    %3571 = vmatpush1.bf16.msra.mxu0 0
    %3572 = vmatprep.subr.bf16.mxu0 0
    %3573 = vmatpush1.bf16.msra.mxu0 0
    %3574 = vmatprep.mubr.bf16.mxu0 0
    %3575 = vmatmul.mubr.bf16.gmra.mrb[0].mxu0 %v3540
    %v3576 = vpop.f32.mrb[0].mxu0
    %v3577 = vadd.f32 0.0, %v3576
    %v3578 = vpop.f32.mrb[0].mxu0
    %v3579 = vpop.f32.mrb[0].mxu0
    %v3580 = vpop.f32.mrb[0].mxu0
    %3581 = vdwg.mxu0
    %v3590 = vunpack.c.l.b16 %v3489
    %v3591 = vunpack.c.l.b16 %v3490
    %v3592 = vunpack.c.l.b16 %v3491
    %v3593 = vunpack.c.l.b16 %v3492
    %v3594 = vunpack.c.l.b16 %v3493
    %v3595 = vunpack.c.l.b16 %v3494
    %v3596 = vunpack.c.l.b16 %v3495
    %v3597 = vunpack.c.l.b16 %v3496
    %v3598 = vpack.c.b16 %v3591, %v3590
    %v3599 = vpack.c.b16 %v3593, %v3592
    %v3600 = vpack.c.b16 %v3595, %v3594
    %v3601 = vpack.c.b16 %v3597, %v3596
    %v3607 = vsel %vm1086, %v3513, 0
    %3609 = vmatprep.subr.bf16.mxu0 0
    %3610 = vmatpush1.bf16.msra.mxu0 %v3598
    %3611 = vmatprep.subr.bf16.mxu0 0
    %3612 = vmatpush1.bf16.msra.mxu0 %v3599
    %3613 = vmatprep.subr.bf16.mxu0 0
    %3614 = vmatpush1.bf16.msra.mxu0 %v3600
    %3615 = vmatprep.subr.bf16.mxu0 0
    %3616 = vmatpush1.bf16.msra.mxu0 %v3601
    %3617 = vmatprep.subr.bf16.mxu0 0
    %3618 = vmatpush1.bf16.msra.mxu0 0
    %3619 = vmatprep.subr.bf16.mxu0 0
    %3620 = vmatpush1.bf16.msra.mxu0 0
    %3621 = vmatprep.subr.bf16.mxu0 0
    %3622 = vmatpush1.bf16.msra.mxu0 0
    %3623 = vmatprep.subr.bf16.mxu0 0
    %3624 = vmatpush1.bf16.msra.mxu0 0
    %3625 = vmatprep.subr.bf16.mxu0 0
    %3626 = vmatpush1.bf16.msra.mxu0 0
    %3627 = vmatprep.subr.bf16.mxu0 0
    %3628 = vmatpush1.bf16.msra.mxu0 0
    %3629 = vmatprep.subr.bf16.mxu0 0
    %3630 = vmatpush1.bf16.msra.mxu0 0
    %3631 = vmatprep.subr.bf16.mxu0 0
    %3632 = vmatpush1.bf16.msra.mxu0 0
    %3633 = vmatprep.subr.bf16.mxu0 0
    %3634 = vmatpush1.bf16.msra.mxu0 0
    %3635 = vmatprep.subr.bf16.mxu0 0
    %3636 = vmatpush1.bf16.msra.mxu0 0
    %3637 = vmatprep.subr.bf16.mxu0 0
    %3638 = vmatpush1.bf16.msra.mxu0 0
    %3639 = vmatprep.subr.bf16.mxu0 0
    %3640 = vmatpush1.bf16.msra.mxu0 0
    %3641 = vmatprep.mubr.bf16.mxu0 0
    %3642 = vmatmul.mubr.bf16.gmra.mrb[0].mxu0 %v3607
    %v3643 = vpop.f32.mrb[0].mxu0
    %v3644 = vadd.f32 %v3577, %v3643
    %v3645 = vpop.f32.mrb[0].mxu0
    %v3646 = vpop.f32.mrb[0].mxu0
    %v3647 = vpop.f32.mrb[0].mxu0
    %3648 = vdwg.mxu0
    %v3649 = vpack.c.bf16 %v3488, %v3488
    %v3658 = vunpack.c.l.b16 %v3505
    %v3659 = vunpack.c.l.b16 %v3506
    %v3660 = vunpack.c.l.b16 %v3507
    %v3661 = vunpack.c.l.b16 %v3508
    %v3662 = vunpack.c.l.b16 %v3509
    %v3663 = vunpack.c.l.b16 %v3510
    %v3664 = vunpack.c.l.b16 %v3511
    %v3665 = vunpack.c.l.b16 %v3512
    %v3666 = vpack.c.b16 %v3659, %v3658
    %v3667 = vpack.c.b16 %v3661, %v3660
    %v3668 = vpack.c.b16 %v3663, %v3662
    %v3669 = vpack.c.b16 %v3665, %v3664
    %v3675 = vsel %vm1086, %v3649, 0
    %3677 = vmatprep.subr.bf16.mxu0 0
    %3678 = vmatpush1.bf16.msra.mxu0 %v3666
    %3679 = vmatprep.subr.bf16.mxu0 0
    %3680 = vmatpush1.bf16.msra.mxu0 %v3667
    %3681 = vmatprep.subr.bf16.mxu0 0
    %3682 = vmatpush1.bf16.msra.mxu0 %v3668
    %3683 = vmatprep.subr.bf16.mxu0 0
    %3684 = vmatpush1.bf16.msra.mxu0 %v3669
    %3685 = vmatprep.subr.bf16.mxu0 0
    %3686 = vmatpush1.bf16.msra.mxu0 0
    %3687 = vmatprep.subr.bf16.mxu0 0
    %3688 = vmatpush1.bf16.msra.mxu0 0
    %3689 = vmatprep.subr.bf16.mxu0 0
    %3690 = vmatpush1.bf16.msra.mxu0 0
    %3691 = vmatprep.subr.bf16.mxu0 0
    %3692 = vmatpush1.bf16.msra.mxu0 0
    %3693 = vmatprep.subr.bf16.mxu0 0
    %3694 = vmatpush1.bf16.msra.mxu0 0
    %3695 = vmatprep.subr.bf16.mxu0 0
    %3696 = vmatpush1.bf16.msra.mxu0 0
    %3697 = vmatprep.subr.bf16.mxu0 0
    %3698 = vmatpush1.bf16.msra.mxu0 0
    %3699 = vmatprep.subr.bf16.mxu0 0
    %3700 = vmatpush1.bf16.msra.mxu0 0
    %3701 = vmatprep.subr.bf16.mxu0 0
    %3702 = vmatpush1.bf16.msra.mxu0 0
    %3703 = vmatprep.subr.bf16.mxu0 0
    %3704 = vmatpush1.bf16.msra.mxu0 0
    %3705 = vmatprep.subr.bf16.mxu0 0
    %3706 = vmatpush1.bf16.msra.mxu0 0
    %3707 = vmatprep.subr.bf16.mxu0 0
    %3708 = vmatpush1.bf16.msra.mxu0 0
    %3709 = vmatprep.mubr.bf16.mxu0 0
    %3710 = vmatmul.mubr.bf16.gmra.mrb[0].mxu0 %v3675
    %v3711 = vpop.f32.mrb[0].mxu0
    %v3712 = vadd.f32 0.0, %v3711
    %v3713 = vpop.f32.mrb[0].mxu0
    %v3714 = vpop.f32.mrb[0].mxu0
    %v3715 = vpop.f32.mrb[0].mxu0
    %3716 = vdwg.mxu0
    %v3717 = vadd.f32 %v3644, %v3712
    %v3718 = vld [vmem:[%s2 + $0x12] ss:$0 sm:$0xff]
    %v3719 = vadd.f32 %v3717, %v3718
    %v3720 = vmax.f32 %v3719, 0.0
    %3721 = vst.msk [vmem:[#allocation2 + $0x10] sm:$0xff] %vm1086, %v3720
    %v3722 = vld [vmem:[#allocation2 + $0xf] sm:$0xff]
    %v3723 = vld [vmem:[#allocation2 + $0x11] sm:$0xff]
    %v3724 = vsel %vm3058, 0.0, %v3722
    %v3725 = vsel %vm3061, 0.0, %v3723
    %v3726 = vld [vmem:[%s1 + $0x900] sm:$0xff]
    %v3727 = vld [vmem:[%s1 + $0x908] sm:$0xff]
    %v3728 = vld [vmem:[%s1 + $0x910] sm:$0xff]
    %v3729 = vld [vmem:[%s1 + $0x918] sm:$0xff]
    %v3730 = vld [vmem:[%s1 + $0x920] sm:$0xff]
    %v3731 = vld [vmem:[%s1 + $0x928] sm:$0xff]
    %v3732 = vld [vmem:[%s1 + $0x930] sm:$0xff]
    %v3733 = vld [vmem:[%s1 + $0x938] sm:$0xff]
    %v3734 = vld [vmem:[%s1 + $0x940] sm:$0xff]
    %v3735 = vld [vmem:[%s1 + $0x948] sm:$0xff]
    %v3736 = vld [vmem:[%s1 + $0x950] sm:$0xff]
    %v3737 = vld [vmem:[%s1 + $0x958] sm:$0xff]
    %v3738 = vld [vmem:[%s1 + $0x960] sm:$0xff]
    %v3739 = vld [vmem:[%s1 + $0x968] sm:$0xff]
    %v3740 = vld [vmem:[%s1 + $0x970] sm:$0xff]
    %v3741 = vld [vmem:[%s1 + $0x978] sm:$0xff]
    %v3742 = vld [vmem:[%s1 + $0x980] sm:$0xff]
    %v3743 = vld [vmem:[%s1 + $0x988] sm:$0xff]
    %v3744 = vld [vmem:[%s1 + $0x990] sm:$0xff]
    %v3745 = vld [vmem:[%s1 + $0x998] sm:$0xff]
    %v3746 = vld [vmem:[%s1 + $0x9a0] sm:$0xff]
    %v3747 = vld [vmem:[%s1 + $0x9a8] sm:$0xff]
    %v3748 = vld [vmem:[%s1 + $0x9b0] sm:$0xff]
    %v3749 = vld [vmem:[%s1 + $0x9b8] sm:$0xff]
    %v3750 = vpack.c.bf16 %v3724, %v3724
    %v3751 = vpack.c.bf16 %v3720, %v3720
    %v3760 = vunpack.c.l.b16 %v3734
    %v3761 = vunpack.c.h.b16 %v3734
    %v3762 = vunpack.c.l.b16 %v3735
    %v3763 = vunpack.c.h.b16 %v3735
    %v3764 = vunpack.c.l.b16 %v3736
    %v3765 = vunpack.c.h.b16 %v3736
    %v3766 = vunpack.c.l.b16 %v3737
    %v3767 = vunpack.c.h.b16 %v3737
    %v3768 = vunpack.c.l.b16 %v3738
    %v3769 = vunpack.c.h.b16 %v3738
    %v3770 = vunpack.c.l.b16 %v3739
    %v3771 = vunpack.c.h.b16 %v3739
    %v3772 = vunpack.c.l.b16 %v3740
    %v3773 = vunpack.c.h.b16 %v3740
    %v3774 = vunpack.c.l.b16 %v3741
    %v3775 = vunpack.c.h.b16 %v3741
    %v3776 = vpack.c.b16 %v3762, %v3760
    %v3777 = vpack.c.b16 %v3763, %v3761
    %v3778 = vpack.c.b16 %v3766, %v3764
    %v3779 = vpack.c.b16 %v3767, %v3765
    %v3780 = vpack.c.b16 %v3770, %v3768
    %v3781 = vpack.c.b16 %v3771, %v3769
    %v3782 = vpack.c.b16 %v3774, %v3772
    %v3783 = vpack.c.b16 %v3775, %v3773
    %v3793 = vsel %vm1086, %v3751, 0
    %3795 = vmatprep.subr.bf16.mxu0 %v3777
    %3796 = vmatpush1.bf16.msra.mxu0 %v3776
    %3797 = vmatprep.subr.bf16.mxu0 %v3779
    %3798 = vmatpush1.bf16.msra.mxu0 %v3778
    %3799 = vmatprep.subr.bf16.mxu0 %v3781
    %3800 = vmatpush1.bf16.msra.mxu0 %v3780
    %3801 = vmatprep.subr.bf16.mxu0 %v3783
    %3802 = vmatpush1.bf16.msra.mxu0 %v3782
    %3803 = vmatprep.subr.bf16.mxu0 0
    %3804 = vmatpush1.bf16.msra.mxu0 0
    %3805 = vmatprep.subr.bf16.mxu0 0
    %3806 = vmatpush1.bf16.msra.mxu0 0
    %3807 = vmatprep.subr.bf16.mxu0 0
    %3808 = vmatpush1.bf16.msra.mxu0 0
    %3809 = vmatprep.subr.bf16.mxu0 0
    %3810 = vmatpush1.bf16.msra.mxu0 0
    %3811 = vmatprep.subr.bf16.mxu0 0
    %3812 = vmatpush1.bf16.msra.mxu0 0
    %3813 = vmatprep.subr.bf16.mxu0 0
    %3814 = vmatpush1.bf16.msra.mxu0 0
    %3815 = vmatprep.subr.bf16.mxu0 0
    %3816 = vmatpush1.bf16.msra.mxu0 0
    %3817 = vmatprep.subr.bf16.mxu0 0
    %3818 = vmatpush1.bf16.msra.mxu0 0
    %3819 = vmatprep.subr.bf16.mxu0 0
    %3820 = vmatpush1.bf16.msra.mxu0 0
    %3821 = vmatprep.subr.bf16.mxu0 0
    %3822 = vmatpush1.bf16.msra.mxu0 0
    %3823 = vmatprep.subr.bf16.mxu0 0
    %3824 = vmatpush1.bf16.msra.mxu0 0
    %3825 = vmatprep.subr.bf16.mxu0 0
    %3826 = vmatpush1.bf16.msra.mxu0 0
    %3827 = vmatprep.mubr.bf16.mxu0 0
    %3828 = vmatmul.mubr.bf16.gmra.mrb[0].mxu0 %v3793
    %v3829 = vpop.f32.mrb[0].mxu0
    %v3830 = vadd.f32 0.0, %v3829
    %v3831 = vpop.f32.mrb[0].mxu0
    %v3832 = vadd.f32 0.0, %v3831
    %v3833 = vpop.f32.mrb[0].mxu0
    %v3834 = vpop.f32.mrb[0].mxu0
    %3835 = vdwg.mxu0
    %v3844 = vunpack.c.l.b16 %v3726
    %v3845 = vunpack.c.h.b16 %v3726
    %v3846 = vunpack.c.l.b16 %v3727
    %v3847 = vunpack.c.h.b16 %v3727
    %v3848 = vunpack.c.l.b16 %v3728
    %v3849 = vunpack.c.h.b16 %v3728
    %v3850 = vunpack.c.l.b16 %v3729
    %v3851 = vunpack.c.h.b16 %v3729
    %v3852 = vunpack.c.l.b16 %v3730
    %v3853 = vunpack.c.h.b16 %v3730
    %v3854 = vunpack.c.l.b16 %v3731
    %v3855 = vunpack.c.h.b16 %v3731
    %v3856 = vunpack.c.l.b16 %v3732
    %v3857 = vunpack.c.h.b16 %v3732
    %v3858 = vunpack.c.l.b16 %v3733
    %v3859 = vunpack.c.h.b16 %v3733
    %v3860 = vpack.c.b16 %v3846, %v3844
    %v3861 = vpack.c.b16 %v3847, %v3845
    %v3862 = vpack.c.b16 %v3850, %v3848
    %v3863 = vpack.c.b16 %v3851, %v3849
    %v3864 = vpack.c.b16 %v3854, %v3852
    %v3865 = vpack.c.b16 %v3855, %v3853
    %v3866 = vpack.c.b16 %v3858, %v3856
    %v3867 = vpack.c.b16 %v3859, %v3857
    %v3877 = vsel %vm1086, %v3750, 0
    %3879 = vmatprep.subr.bf16.mxu0 %v3861
    %3880 = vmatpush1.bf16.msra.mxu0 %v3860
    %3881 = vmatprep.subr.bf16.mxu0 %v3863
    %3882 = vmatpush1.bf16.msra.mxu0 %v3862
    %3883 = vmatprep.subr.bf16.mxu0 %v3865
    %3884 = vmatpush1.bf16.msra.mxu0 %v3864
    %3885 = vmatprep.subr.bf16.mxu0 %v3867
    %3886 = vmatpush1.bf16.msra.mxu0 %v3866
    %3887 = vmatprep.subr.bf16.mxu0 0
    %3888 = vmatpush1.bf16.msra.mxu0 0
    %3889 = vmatprep.subr.bf16.mxu0 0
    %3890 = vmatpush1.bf16.msra.mxu0 0
    %3891 = vmatprep.subr.bf16.mxu0 0
    %3892 = vmatpush1.bf16.msra.mxu0 0
    %3893 = vmatprep.subr.bf16.mxu0 0
    %3894 = vmatpush1.bf16.msra.mxu0 0
    %3895 = vmatprep.subr.bf16.mxu0 0
    %3896 = vmatpush1.bf16.msra.mxu0 0
    %3897 = vmatprep.subr.bf16.mxu0 0
    %3898 = vmatpush1.bf16.msra.mxu0 0
    %3899 = vmatprep.subr.bf16.mxu0 0
    %3900 = vmatpush1.bf16.msra.mxu0 0
    %3901 = vmatprep.subr.bf16.mxu0 0
    %3902 = vmatpush1.bf16.msra.mxu0 0
    %3903 = vmatprep.subr.bf16.mxu0 0
    %3904 = vmatpush1.bf16.msra.mxu0 0
    %3905 = vmatprep.subr.bf16.mxu0 0
    %3906 = vmatpush1.bf16.msra.mxu0 0
    %3907 = vmatprep.subr.bf16.mxu0 0
    %3908 = vmatpush1.bf16.msra.mxu0 0
    %3909 = vmatprep.subr.bf16.mxu0 0
    %3910 = vmatpush1.bf16.msra.mxu0 0
    %3911 = vmatprep.mubr.bf16.mxu0 0
    %3912 = vmatmul.mubr.bf16.gmra.mrb[0].mxu0 %v3877
    %v3913 = vpop.f32.mrb[0].mxu0
    %v3914 = vadd.f32 %v3830, %v3913
    %v3915 = vpop.f32.mrb[0].mxu0
    %v3916 = vadd.f32 %v3832, %v3915
    %v3917 = vpop.f32.mrb[0].mxu0
    %v3918 = vpop.f32.mrb[0].mxu0
    %3919 = vdwg.mxu0
    %v3920 = vpack.c.bf16 %v3725, %v3725
    %v3929 = vunpack.c.l.b16 %v3742
    %v3930 = vunpack.c.h.b16 %v3742
    %v3931 = vunpack.c.l.b16 %v3743
    %v3932 = vunpack.c.h.b16 %v3743
    %v3933 = vunpack.c.l.b16 %v3744
    %v3934 = vunpack.c.h.b16 %v3744
    %v3935 = vunpack.c.l.b16 %v3745
    %v3936 = vunpack.c.h.b16 %v3745
    %v3937 = vunpack.c.l.b16 %v3746
    %v3938 = vunpack.c.h.b16 %v3746
    %v3939 = vunpack.c.l.b16 %v3747
    %v3940 = vunpack.c.h.b16 %v3747
    %v3941 = vunpack.c.l.b16 %v3748
    %v3942 = vunpack.c.h.b16 %v3748
    %v3943 = vunpack.c.l.b16 %v3749
    %v3944 = vunpack.c.h.b16 %v3749
    %v3945 = vpack.c.b16 %v3931, %v3929
    %v3946 = vpack.c.b16 %v3932, %v3930
    %v3947 = vpack.c.b16 %v3935, %v3933
    %v3948 = vpack.c.b16 %v3936, %v3934
    %v3949 = vpack.c.b16 %v3939, %v3937
    %v3950 = vpack.c.b16 %v3940, %v3938
    %v3951 = vpack.c.b16 %v3943, %v3941
    %v3952 = vpack.c.b16 %v3944, %v3942
    %v3962 = vsel %vm1086, %v3920, 0
    %3964 = vmatprep.subr.bf16.mxu0 %v3946
    %3965 = vmatpush1.bf16.msra.mxu0 %v3945
    %3966 = vmatprep.subr.bf16.mxu0 %v3948
    %3967 = vmatpush1.bf16.msra.mxu0 %v3947
    %3968 = vmatprep.subr.bf16.mxu0 %v3950
    %3969 = vmatpush1.bf16.msra.mxu0 %v3949
    %3970 = vmatprep.subr.bf16.mxu0 %v3952
    %3971 = vmatpush1.bf16.msra.mxu0 %v3951
    %3972 = vmatprep.subr.bf16.mxu0 0
    %3973 = vmatpush1.bf16.msra.mxu0 0
    %3974 = vmatprep.subr.bf16.mxu0 0
    %3975 = vmatpush1.bf16.msra.mxu0 0
    %3976 = vmatprep.subr.bf16.mxu0 0
    %3977 = vmatpush1.bf16.msra.mxu0 0
    %3978 = vmatprep.subr.bf16.mxu0 0
    %3979 = vmatpush1.bf16.msra.mxu0 0
    %3980 = vmatprep.subr.bf16.mxu0 0
    %3981 = vmatpush1.bf16.msra.mxu0 0
    %3982 = vmatprep.subr.bf16.mxu0 0
    %3983 = vmatpush1.bf16.msra.mxu0 0
    %3984 = vmatprep.subr.bf16.mxu0 0
    %3985 = vmatpush1.bf16.msra.mxu0 0
    %3986 = vmatprep.subr.bf16.mxu0 0
    %3987 = vmatpush1.bf16.msra.mxu0 0
    %3988 = vmatprep.subr.bf16.mxu0 0
    %3989 = vmatpush1.bf16.msra.mxu0 0
    %3990 = vmatprep.subr.bf16.mxu0 0
    %3991 = vmatpush1.bf16.msra.mxu0 0
    %3992 = vmatprep.subr.bf16.mxu0 0
    %3993 = vmatpush1.bf16.msra.mxu0 0
    %3994 = vmatprep.subr.bf16.mxu0 0
    %3995 = vmatpush1.bf16.msra.mxu0 0
    %3996 = vmatprep.mubr.bf16.mxu0 0
    %3997 = vmatmul.mubr.bf16.gmra.mrb[0].mxu0 %v3962
    %v3998 = vpop.f32.mrb[0].mxu0
    %v3999 = vadd.f32 0.0, %v3998
    %v4000 = vpop.f32.mrb[0].mxu0
    %v4001 = vadd.f32 0.0, %v4000
    %v4002 = vpop.f32.mrb[0].mxu0
    %v4003 = vpop.f32.mrb[0].mxu0
    %4004 = vdwg.mxu0
    %v4005 = vadd.f32 %v3914, %v3999
    %v4006 = vadd.f32 %v3916, %v4001
    %s4007 = scalar_lea.vmem %s2, 19
    %v4008 = vld [vmem:[%s4007] ss:$8 sm:$0x3]
    %v4010 = vlaneseq
    %v4011 = vshrl.u32 %v4010, 7
    %v4012 = vsub.s32 0, %v4011
    %v4013 = vrot.slane %v4008, %v4012
    %v4014 = vlaneseq
    %v4015 = vshrl.u32 %v4014, 7
    %v4016 = vsub.s32 1, %v4015
    %v4017 = vrot.slane %v4008, %v4016
    %v4020 = vadd.f32 %v4005, %v4013
    %v4021 = vadd.f32 %v4006, %v4017
    %v4022 = vmax.f32 %v4020, 0.0
    %v4023 = vmax.f32 %v4021, 0.0
    %v4024 = vmax.f32 %v4022, %v4023
    %4025 = vst.msk [vmem:[#allocation3] sm:$0xff] %vm69, %v4024
    %v4026 = vld [vmem:[#allocation3] ss:$2 sm:$0xf]
    %v4027 = vld [vmem:[%s1102] ss:$2 sm:$0xf]
    %v4028 = vmax.f32 %v4026, %v4027
    %v4029 = vand.u32 %v37, 1
    %vm4030 = vcmp.eq.s32.totalorder %v4029, 0
    %vm4031 = vcmp.eq.s32.totalorder %v4029, 1
    %vm4032 = vcmask 257024
    %4033 = vst.msk [vmem:[#allocation2 + $0x10] sm:$0xf] %vm4032, %v4028
    %v4034 = vld [vmem:[#allocation2 + $0xf] sm:$0xf]
    %v4035 = vld [vmem:[#allocation2 + $0x11] sm:$0xf]
    %v4036 = vsel %vm4030, 1, 0
    %vm4037 = vcmp.eq.s32.totalorder %v4036, 1
    %v4038 = vsel %vm4037, 0.0, %v4034
    %v4039 = vsel %vm4031, 1, 0
    %vm4040 = vcmp.eq.s32.totalorder %v4039, 1
    %v4041 = vsel %vm4040, 0.0, %v4035
    %v4042 = vld [vmem:[%s1 + $0x9c0] sm:$0xf]
    %v4043 = vld [vmem:[%s1 + $0x9c8] sm:$0xf]
    %v4044 = vld [vmem:[%s1 + $0x9d0] sm:$0xf]
    %v4045 = vld [vmem:[%s1 + $0x9d8] sm:$0xf]
    %v4046 = vld [vmem:[%s1 + $0x9e0] sm:$0xf]
    %v4047 = vld [vmem:[%s1 + $0x9e8] sm:$0xf]
    %v4048 = vld [vmem:[%s1 + $0x9f0] sm:$0xf]
    %v4049 = vld [vmem:[%s1 + $0x9f8] sm:$0xf]
    %v4050 = vld [vmem:[%s1 + $0xa00] sm:$0xf]
    %v4051 = vld [vmem:[%s1 + $0xa08] sm:$0xf]
    %v4052 = vld [vmem:[%s1 + $0xa10] sm:$0xf]
    %v4053 = vld [vmem:[%s1 + $0xa18] sm:$0xf]
    %v4054 = vpack.c.bf16 %v4038, %v4038
    %v4055 = vpack.c.bf16 %v4028, %v4028
    %v4060 = vunpack.c.l.b16 %v4046
    %v4061 = vunpack.c.l.b16 %v4047
    %v4062 = vunpack.c.l.b16 %v4048
    %v4063 = vunpack.c.l.b16 %v4049
    %v4064 = vpack.c.b16 %v4061, %v4060
    %v4065 = vpack.c.b16 %v4063, %v4062
    %v4069 = vsel %vm69, %v4055, 0
    %4071 = vmatprep.subr.bf16.mxu0 0
    %4072 = vmatpush1.bf16.msra.mxu0 %v4064
    %4073 = vmatprep.subr.bf16.mxu0 0
    %4074 = vmatpush1.bf16.msra.mxu0 %v4065
    %4075 = vmatprep.subr.bf16.mxu0 0
    %4076 = vmatpush1.bf16.msra.mxu0 0
    %4077 = vmatprep.subr.bf16.mxu0 0
    %4078 = vmatpush1.bf16.msra.mxu0 0
    %4079 = vmatprep.subr.bf16.mxu0 0
    %4080 = vmatpush1.bf16.msra.mxu0 0
    %4081 = vmatprep.subr.bf16.mxu0 0
    %4082 = vmatpush1.bf16.msra.mxu0 0
    %4083 = vmatprep.subr.bf16.mxu0 0
    %4084 = vmatpush1.bf16.msra.mxu0 0
    %4085 = vmatprep.subr.bf16.mxu0 0
    %4086 = vmatpush1.bf16.msra.mxu0 0
    %4087 = vmatprep.subr.bf16.mxu0 0
    %4088 = vmatpush1.bf16.msra.mxu0 0
    %4089 = vmatprep.subr.bf16.mxu0 0
    %4090 = vmatpush1.bf16.msra.mxu0 0
    %4091 = vmatprep.subr.bf16.mxu0 0
    %4092 = vmatpush1.bf16.msra.mxu0 0
    %4093 = vmatprep.subr.bf16.mxu0 0
    %4094 = vmatpush1.bf16.msra.mxu0 0
    %4095 = vmatprep.subr.bf16.mxu0 0
    %4096 = vmatpush1.bf16.msra.mxu0 0
    %4097 = vmatprep.subr.bf16.mxu0 0
    %4098 = vmatpush1.bf16.msra.mxu0 0
    %4099 = vmatprep.subr.bf16.mxu0 0
    %4100 = vmatpush1.bf16.msra.mxu0 0
    %4101 = vmatprep.subr.bf16.mxu0 0
    %4102 = vmatpush1.bf16.msra.mxu0 0
    %4103 = vmatprep.mubr.bf16.mxu0 0
    %4104 = vmatmul.mubr.bf16.gmra.mrb[0].mxu0 %v4069
    %v4105 = vpop.f32.mrb[0].mxu0
    %v4106 = vadd.f32 0.0, %v4105
    %v4107 = vpop.f32.mrb[0].mxu0
    %v4108 = vpop.f32.mrb[0].mxu0
    %v4109 = vpop.f32.mrb[0].mxu0
    %4110 = vdwg.mxu0
    %v4115 = vunpack.c.l.b16 %v4042
    %v4116 = vunpack.c.l.b16 %v4043
    %v4117 = vunpack.c.l.b16 %v4044
    %v4118 = vunpack.c.l.b16 %v4045
    %v4119 = vpack.c.b16 %v4116, %v4115
    %v4120 = vpack.c.b16 %v4118, %v4117
    %v4124 = vsel %vm69, %v4054, 0
    %4126 = vmatprep.subr.bf16.mxu0 0
    %4127 = vmatpush1.bf16.msra.mxu0 %v4119
    %4128 = vmatprep.subr.bf16.mxu0 0
    %4129 = vmatpush1.bf16.msra.mxu0 %v4120
    %4130 = vmatprep.subr.bf16.mxu0 0
    %4131 = vmatpush1.bf16.msra.mxu0 0
    %4132 = vmatprep.subr.bf16.mxu0 0
    %4133 = vmatpush1.bf16.msra.mxu0 0
    %4134 = vmatprep.subr.bf16.mxu0 0
    %4135 = vmatpush1.bf16.msra.mxu0 0
    %4136 = vmatprep.subr.bf16.mxu0 0
    %4137 = vmatpush1.bf16.msra.mxu0 0
    %4138 = vmatprep.subr.bf16.mxu0 0
    %4139 = vmatpush1.bf16.msra.mxu0 0
    %4140 = vmatprep.subr.bf16.mxu0 0
    %4141 = vmatpush1.bf16.msra.mxu0 0
    %4142 = vmatprep.subr.bf16.mxu0 0
    %4143 = vmatpush1.bf16.msra.mxu0 0
    %4144 = vmatprep.subr.bf16.mxu0 0
    %4145 = vmatpush1.bf16.msra.mxu0 0
    %4146 = vmatprep.subr.bf16.mxu0 0
    %4147 = vmatpush1.bf16.msra.mxu0 0
    %4148 = vmatprep.subr.bf16.mxu0 0
    %4149 = vmatpush1.bf16.msra.mxu0 0
    %4150 = vmatprep.subr.bf16.mxu0 0
    %4151 = vmatpush1.bf16.msra.mxu0 0
    %4152 = vmatprep.subr.bf16.mxu0 0
    %4153 = vmatpush1.bf16.msra.mxu0 0
    %4154 = vmatprep.subr.bf16.mxu0 0
    %4155 = vmatpush1.bf16.msra.mxu0 0
    %4156 = vmatprep.subr.bf16.mxu0 0
    %4157 = vmatpush1.bf16.msra.mxu0 0
    %4158 = vmatprep.mubr.bf16.mxu0 0
    %4159 = vmatmul.mubr.bf16.gmra.mrb[0].mxu0 %v4124
    %v4160 = vpop.f32.mrb[0].mxu0
    %v4161 = vadd.f32 %v4106, %v4160
    %v4162 = vpop.f32.mrb[0].mxu0
    %v4163 = vpop.f32.mrb[0].mxu0
    %v4164 = vpop.f32.mrb[0].mxu0
    %4165 = vdwg.mxu0
    %v4166 = vpack.c.bf16 %v4041, %v4041
    %v4171 = vunpack.c.l.b16 %v4050
    %v4172 = vunpack.c.l.b16 %v4051
    %v4173 = vunpack.c.l.b16 %v4052
    %v4174 = vunpack.c.l.b16 %v4053
    %v4175 = vpack.c.b16 %v4172, %v4171
    %v4176 = vpack.c.b16 %v4174, %v4173
    %v4180 = vsel %vm69, %v4166, 0
    %4182 = vmatprep.subr.bf16.mxu0 0
    %4183 = vmatpush1.bf16.msra.mxu0 %v4175
    %4184 = vmatprep.subr.bf16.mxu0 0
    %4185 = vmatpush1.bf16.msra.mxu0 %v4176
    %4186 = vmatprep.subr.bf16.mxu0 0
    %4187 = vmatpush1.bf16.msra.mxu0 0
    %4188 = vmatprep.subr.bf16.mxu0 0
    %4189 = vmatpush1.bf16.msra.mxu0 0
    %4190 = vmatprep.subr.bf16.mxu0 0
    %4191 = vmatpush1.bf16.msra.mxu0 0
    %4192 = vmatprep.subr.bf16.mxu0 0
    %4193 = vmatpush1.bf16.msra.mxu0 0
    %4194 = vmatprep.subr.bf16.mxu0 0
    %4195 = vmatpush1.bf16.msra.mxu0 0
    %4196 = vmatprep.subr.bf16.mxu0 0
    %4197 = vmatpush1.bf16.msra.mxu0 0
    %4198 = vmatprep.subr.bf16.mxu0 0
    %4199 = vmatpush1.bf16.msra.mxu0 0
    %4200 = vmatprep.subr.bf16.mxu0 0
    %4201 = vmatpush1.bf16.msra.mxu0 0
    %4202 = vmatprep.subr.bf16.mxu0 0
    %4203 = vmatpush1.bf16.msra.mxu0 0
    %4204 = vmatprep.subr.bf16.mxu0 0
    %4205 = vmatpush1.bf16.msra.mxu0 0
    %4206 = vmatprep.subr.bf16.mxu0 0
    %4207 = vmatpush1.bf16.msra.mxu0 0
    %4208 = vmatprep.subr.bf16.mxu0 0
    %4209 = vmatpush1.bf16.msra.mxu0 0
    %4210 = vmatprep.subr.bf16.mxu0 0
    %4211 = vmatpush1.bf16.msra.mxu0 0
    %4212 = vmatprep.subr.bf16.mxu0 0
    %4213 = vmatpush1.bf16.msra.mxu0 0
    %4214 = vmatprep.mubr.bf16.mxu0 0
    %4215 = vmatmul.mubr.bf16.gmra.mrb[0].mxu0 %v4180
    %v4216 = vpop.f32.mrb[0].mxu0
    %v4217 = vadd.f32 0.0, %v4216
    %v4218 = vpop.f32.mrb[0].mxu0
    %v4219 = vpop.f32.mrb[0].mxu0
    %v4220 = vpop.f32.mrb[0].mxu0
    %4221 = vdwg.mxu0
    %v4222 = vadd.f32 %v4161, %v4217
    %v4223 = vld [vmem:[%s2 + $0x14] ss:$0 sm:$0xff]
    %v4224 = vadd.f32 %v4222, %v4223
    %v4225 = vmax.f32 %v4224, 0.0
    %4226 = vst.msk [vmem:[#allocation2 + $0x10] sm:$0xf] %vm4032, %v4225
    %v4227 = vld [vmem:[#allocation2 + $0xf] sm:$0xf]
    %v4228 = vld [vmem:[#allocation2 + $0x11] sm:$0xf]
    %v4229 = vsel %vm4037, 0.0, %v4227
    %v4230 = vsel %vm4040, 0.0, %v4228
    %v4231 = vld [vmem:[%s1 + $0xa20] sm:$0xf]
    %v4232 = vld [vmem:[%s1 + $0xa28] sm:$0xf]
    %v4233 = vld [vmem:[%s1 + $0xa30] sm:$0xf]
    %v4234 = vld [vmem:[%s1 + $0xa38] sm:$0xf]
    %v4235 = vld [vmem:[%s1 + $0xa40] sm:$0xf]
    %v4236 = vld [vmem:[%s1 + $0xa48] sm:$0xf]
    %v4237 = vld [vmem:[%s1 + $0xa50] sm:$0xf]
    %v4238 = vld [vmem:[%s1 + $0xa58] sm:$0xf]
    %v4239 = vld [vmem:[%s1 + $0xa60] sm:$0xf]
    %v4240 = vld [vmem:[%s1 + $0xa68] sm:$0xf]
    %v4241 = vld [vmem:[%s1 + $0xa70] sm:$0xf]
    %v4242 = vld [vmem:[%s1 + $0xa78] sm:$0xf]
    %v4243 = vpack.c.bf16 %v4229, %v4229
    %v4244 = vpack.c.bf16 %v4225, %v4225
    %v4249 = vunpack.c.l.b16 %v4235
    %v4250 = vunpack.c.l.b16 %v4236
    %v4251 = vunpack.c.l.b16 %v4237
    %v4252 = vunpack.c.l.b16 %v4238
    %v4253 = vpack.c.b16 %v4250, %v4249
    %v4254 = vpack.c.b16 %v4252, %v4251
    %v4258 = vsel %vm69, %v4244, 0
    %4260 = vmatprep.subr.bf16.mxu0 0
    %4261 = vmatpush1.bf16.msra.mxu0 %v4253
    %4262 = vmatprep.subr.bf16.mxu0 0
    %4263 = vmatpush1.bf16.msra.mxu0 %v4254
    %4264 = vmatprep.subr.bf16.mxu0 0
    %4265 = vmatpush1.bf16.msra.mxu0 0
    %4266 = vmatprep.subr.bf16.mxu0 0
    %4267 = vmatpush1.bf16.msra.mxu0 0
    %4268 = vmatprep.subr.bf16.mxu0 0
    %4269 = vmatpush1.bf16.msra.mxu0 0
    %4270 = vmatprep.subr.bf16.mxu0 0
    %4271 = vmatpush1.bf16.msra.mxu0 0
    %4272 = vmatprep.subr.bf16.mxu0 0
    %4273 = vmatpush1.bf16.msra.mxu0 0
    %4274 = vmatprep.subr.bf16.mxu0 0
    %4275 = vmatpush1.bf16.msra.mxu0 0
    %4276 = vmatprep.subr.bf16.mxu0 0
    %4277 = vmatpush1.bf16.msra.mxu0 0
    %4278 = vmatprep.subr.bf16.mxu0 0
    %4279 = vmatpush1.bf16.msra.mxu0 0
    %4280 = vmatprep.subr.bf16.mxu0 0
    %4281 = vmatpush1.bf16.msra.mxu0 0
    %4282 = vmatprep.subr.bf16.mxu0 0
    %4283 = vmatpush1.bf16.msra.mxu0 0
    %4284 = vmatprep.subr.bf16.mxu0 0
    %4285 = vmatpush1.bf16.msra.mxu0 0
    %4286 = vmatprep.subr.bf16.mxu0 0
    %4287 = vmatpush1.bf16.msra.mxu0 0
    %4288 = vmatprep.subr.bf16.mxu0 0
    %4289 = vmatpush1.bf16.msra.mxu0 0
    %4290 = vmatprep.subr.bf16.mxu0 0
    %4291 = vmatpush1.bf16.msra.mxu0 0
    %4292 = vmatprep.mubr.bf16.mxu0 0
    %4293 = vmatmul.mubr.bf16.gmra.mrb[0].mxu0 %v4258
    %v4294 = vpop.f32.mrb[0].mxu0
    %v4295 = vadd.f32 0.0, %v4294
    %v4296 = vpop.f32.mrb[0].mxu0
    %v4297 = vpop.f32.mrb[0].mxu0
    %v4298 = vpop.f32.mrb[0].mxu0
    %4299 = vdwg.mxu0
    %v4304 = vunpack.c.l.b16 %v4231
    %v4305 = vunpack.c.l.b16 %v4232
    %v4306 = vunpack.c.l.b16 %v4233
    %v4307 = vunpack.c.l.b16 %v4234
    %v4308 = vpack.c.b16 %v4305, %v4304
    %v4309 = vpack.c.b16 %v4307, %v4306
    %v4313 = vsel %vm69, %v4243, 0
    %4315 = vmatprep.subr.bf16.mxu0 0
    %4316 = vmatpush1.bf16.msra.mxu0 %v4308
    %4317 = vmatprep.subr.bf16.mxu0 0
    %4318 = vmatpush1.bf16.msra.mxu0 %v4309
    %4319 = vmatprep.subr.bf16.mxu0 0
    %4320 = vmatpush1.bf16.msra.mxu0 0
    %4321 = vmatprep.subr.bf16.mxu0 0
    %4322 = vmatpush1.bf16.msra.mxu0 0
    %4323 = vmatprep.subr.bf16.mxu0 0
    %4324 = vmatpush1.bf16.msra.mxu0 0
    %4325 = vmatprep.subr.bf16.mxu0 0
    %4326 = vmatpush1.bf16.msra.mxu0 0
    %4327 = vmatprep.subr.bf16.mxu0 0
    %4328 = vmatpush1.bf16.msra.mxu0 0
    %4329 = vmatprep.subr.bf16.mxu0 0
    %4330 = vmatpush1.bf16.msra.mxu0 0
    %4331 = vmatprep.subr.bf16.mxu0 0
    %4332 = vmatpush1.bf16.msra.mxu0 0
    %4333 = vmatprep.subr.bf16.mxu0 0
    %4334 = vmatpush1.bf16.msra.mxu0 0
    %4335 = vmatprep.subr.bf16.mxu0 0
    %4336 = vmatpush1.bf16.msra.mxu0 0
    %4337 = vmatprep.subr.bf16.mxu0 0
    %4338 = vmatpush1.bf16.msra.mxu0 0
    %4339 = vmatprep.subr.bf16.mxu0 0
    %4340 = vmatpush1.bf16.msra.mxu0 0
    %4341 = vmatprep.subr.bf16.mxu0 0
    %4342 = vmatpush1.bf16.msra.mxu0 0
    %4343 = vmatprep.subr.bf16.mxu0 0
    %4344 = vmatpush1.bf16.msra.mxu0 0
    %4345 = vmatprep.subr.bf16.mxu0 0
    %4346 = vmatpush1.bf16.msra.mxu0 0
    %4347 = vmatprep.mubr.bf16.mxu0 0
    %4348 = vmatmul.mubr.bf16.gmra.mrb[0].mxu0 %v4313
    %v4349 = vpop.f32.mrb[0].mxu0
    %v4350 = vadd.f32 %v4295, %v4349
    %v4351 = vpop.f32.mrb[0].mxu0
    %v4352 = vpop.f32.mrb[0].mxu0
    %v4353 = vpop.f32.mrb[0].mxu0
    %4354 = vdwg.mxu0
    %v4355 = vpack.c.bf16 %v4230, %v4230
    %v4360 = vunpack.c.l.b16 %v4239
    %v4361 = vunpack.c.l.b16 %v4240
    %v4362 = vunpack.c.l.b16 %v4241
    %v4363 = vunpack.c.l.b16 %v4242
    %v4364 = vpack.c.b16 %v4361, %v4360
    %v4365 = vpack.c.b16 %v4363, %v4362
    %v4369 = vsel %vm69, %v4355, 0
    %4371 = vmatprep.subr.bf16.mxu0 0
    %4372 = vmatpush1.bf16.msra.mxu0 %v4364
    %4373 = vmatprep.subr.bf16.mxu0 0
    %4374 = vmatpush1.bf16.msra.mxu0 %v4365
    %4375 = vmatprep.subr.bf16.mxu0 0
    %4376 = vmatpush1.bf16.msra.mxu0 0
    %4377 = vmatprep.subr.bf16.mxu0 0
    %4378 = vmatpush1.bf16.msra.mxu0 0
    %4379 = vmatprep.subr.bf16.mxu0 0
    %4380 = vmatpush1.bf16.msra.mxu0 0
    %4381 = vmatprep.subr.bf16.mxu0 0
    %4382 = vmatpush1.bf16.msra.mxu0 0
    %4383 = vmatprep.subr.bf16.mxu0 0
    %4384 = vmatpush1.bf16.msra.mxu0 0
    %4385 = vmatprep.subr.bf16.mxu0 0
    %4386 = vmatpush1.bf16.msra.mxu0 0
    %4387 = vmatprep.subr.bf16.mxu0 0
    %4388 = vmatpush1.bf16.msra.mxu0 0
    %4389 = vmatprep.subr.bf16.mxu0 0
    %4390 = vmatpush1.bf16.msra.mxu0 0
    %4391 = vmatprep.subr.bf16.mxu0 0
    %4392 = vmatpush1.bf16.msra.mxu0 0
    %4393 = vmatprep.subr.bf16.mxu0 0
    %4394 = vmatpush1.bf16.msra.mxu0 0
    %4395 = vmatprep.subr.bf16.mxu0 0
    %4396 = vmatpush1.bf16.msra.mxu0 0
    %4397 = vmatprep.subr.bf16.mxu0 0
    %4398 = vmatpush1.bf16.msra.mxu0 0
    %4399 = vmatprep.subr.bf16.mxu0 0
    %4400 = vmatpush1.bf16.msra.mxu0 0
    %4401 = vmatprep.subr.bf16.mxu0 0
    %4402 = vmatpush1.bf16.msra.mxu0 0
    %4403 = vmatprep.mubr.bf16.mxu0 0
    %4404 = vmatmul.mubr.bf16.gmra.mrb[0].mxu0 %v4369
    %v4405 = vpop.f32.mrb[0].mxu0
    %v4406 = vadd.f32 0.0, %v4405
    %v4407 = vpop.f32.mrb[0].mxu0
    %v4408 = vpop.f32.mrb[0].mxu0
    %v4409 = vpop.f32.mrb[0].mxu0
    %4410 = vdwg.mxu0
    %v4411 = vadd.f32 %v4350, %v4406
    %v4412 = vld [vmem:[%s2 + $0x15] ss:$0 sm:$0xff]
    %v4413 = vadd.f32 %v4411, %v4412
    %v4414 = vmax.f32 %v4413, 0.0
    %4415 = vst.msk [vmem:[#allocation2 + $0x10] sm:$0xf] %vm4032, %v4414
    %v4416 = vld [vmem:[#allocation2 + $0xf] sm:$0xf]
    %v4417 = vld [vmem:[#allocation2 + $0x11] sm:$0xf]
    %v4418 = vsel %vm4037, 0.0, %v4416
    %v4419 = vsel %vm4040, 0.0, %v4417
    %v4420 = vld [vmem:[%s1 + $0xa80] sm:$0xf]
    %v4421 = vld [vmem:[%s1 + $0xa88] sm:$0xf]
    %v4422 = vld [vmem:[%s1 + $0xa90] sm:$0xf]
    %v4423 = vld [vmem:[%s1 + $0xa98] sm:$0xf]
    %v4424 = vld [vmem:[%s1 + $0xaa0] sm:$0xf]
    %v4425 = vld [vmem:[%s1 + $0xaa8] sm:$0xf]
    %v4426 = vld [vmem:[%s1 + $0xab0] sm:$0xf]
    %v4427 = vld [vmem:[%s1 + $0xab8] sm:$0xf]
    %v4428 = vld [vmem:[%s1 + $0xac0] sm:$0xf]
    %v4429 = vld [vmem:[%s1 + $0xac8] sm:$0xf]
    %v4430 = vld [vmem:[%s1 + $0xad0] sm:$0xf]
    %v4431 = vld [vmem:[%s1 + $0xad8] sm:$0xf]
    %v4432 = vpack.c.bf16 %v4418, %v4418
    %v4433 = vpack.c.bf16 %v4414, %v4414
    %v4438 = vunpack.c.l.b16 %v4424
    %v4439 = vunpack.c.l.b16 %v4425
    %v4440 = vunpack.c.l.b16 %v4426
    %v4441 = vunpack.c.l.b16 %v4427
    %v4442 = vpack.c.b16 %v4439, %v4438
    %v4443 = vpack.c.b16 %v4441, %v4440
    %v4447 = vsel %vm69, %v4433, 0
    %4449 = vmatprep.subr.bf16.mxu0 0
    %4450 = vmatpush1.bf16.msra.mxu0 %v4442
    %4451 = vmatprep.subr.bf16.mxu0 0
    %4452 = vmatpush1.bf16.msra.mxu0 %v4443
    %4453 = vmatprep.subr.bf16.mxu0 0
    %4454 = vmatpush1.bf16.msra.mxu0 0
    %4455 = vmatprep.subr.bf16.mxu0 0
    %4456 = vmatpush1.bf16.msra.mxu0 0
    %4457 = vmatprep.subr.bf16.mxu0 0
    %4458 = vmatpush1.bf16.msra.mxu0 0
    %4459 = vmatprep.subr.bf16.mxu0 0
    %4460 = vmatpush1.bf16.msra.mxu0 0
    %4461 = vmatprep.subr.bf16.mxu0 0
    %4462 = vmatpush1.bf16.msra.mxu0 0
    %4463 = vmatprep.subr.bf16.mxu0 0
    %4464 = vmatpush1.bf16.msra.mxu0 0
    %4465 = vmatprep.subr.bf16.mxu0 0
    %4466 = vmatpush1.bf16.msra.mxu0 0
    %4467 = vmatprep.subr.bf16.mxu0 0
    %4468 = vmatpush1.bf16.msra.mxu0 0
    %4469 = vmatprep.subr.bf16.mxu0 0
    %4470 = vmatpush1.bf16.msra.mxu0 0
    %4471 = vmatprep.subr.bf16.mxu0 0
    %4472 = vmatpush1.bf16.msra.mxu0 0
    %4473 = vmatprep.subr.bf16.mxu0 0
    %4474 = vmatpush1.bf16.msra.mxu0 0
    %4475 = vmatprep.subr.bf16.mxu0 0
    %4476 = vmatpush1.bf16.msra.mxu0 0
    %4477 = vmatprep.subr.bf16.mxu0 0
    %4478 = vmatpush1.bf16.msra.mxu0 0
    %4479 = vmatprep.subr.bf16.mxu0 0
    %4480 = vmatpush1.bf16.msra.mxu0 0
    %4481 = vmatprep.mubr.bf16.mxu0 0
    %4482 = vmatmul.mubr.bf16.gmra.mrb[0].mxu0 %v4447
    %v4483 = vpop.f32.mrb[0].mxu0
    %v4484 = vadd.f32 0.0, %v4483
    %v4485 = vpop.f32.mrb[0].mxu0
    %v4486 = vpop.f32.mrb[0].mxu0
    %v4487 = vpop.f32.mrb[0].mxu0
    %4488 = vdwg.mxu0
    %v4493 = vunpack.c.l.b16 %v4420
    %v4494 = vunpack.c.l.b16 %v4421
    %v4495 = vunpack.c.l.b16 %v4422
    %v4496 = vunpack.c.l.b16 %v4423
    %v4497 = vpack.c.b16 %v4494, %v4493
    %v4498 = vpack.c.b16 %v4496, %v4495
    %v4502 = vsel %vm69, %v4432, 0
    %4504 = vmatprep.subr.bf16.mxu0 0
    %4505 = vmatpush1.bf16.msra.mxu0 %v4497
    %4506 = vmatprep.subr.bf16.mxu0 0
    %4507 = vmatpush1.bf16.msra.mxu0 %v4498
    %4508 = vmatprep.subr.bf16.mxu0 0
    %4509 = vmatpush1.bf16.msra.mxu0 0
    %4510 = vmatprep.subr.bf16.mxu0 0
    %4511 = vmatpush1.bf16.msra.mxu0 0
    %4512 = vmatprep.subr.bf16.mxu0 0
    %4513 = vmatpush1.bf16.msra.mxu0 0
    %4514 = vmatprep.subr.bf16.mxu0 0
    %4515 = vmatpush1.bf16.msra.mxu0 0
    %4516 = vmatprep.subr.bf16.mxu0 0
    %4517 = vmatpush1.bf16.msra.mxu0 0
    %4518 = vmatprep.subr.bf16.mxu0 0
    %4519 = vmatpush1.bf16.msra.mxu0 0
    %4520 = vmatprep.subr.bf16.mxu0 0
    %4521 = vmatpush1.bf16.msra.mxu0 0
    %4522 = vmatprep.subr.bf16.mxu0 0
    %4523 = vmatpush1.bf16.msra.mxu0 0
    %4524 = vmatprep.subr.bf16.mxu0 0
    %4525 = vmatpush1.bf16.msra.mxu0 0
    %4526 = vmatprep.subr.bf16.mxu0 0
    %4527 = vmatpush1.bf16.msra.mxu0 0
    %4528 = vmatprep.subr.bf16.mxu0 0
    %4529 = vmatpush1.bf16.msra.mxu0 0
    %4530 = vmatprep.subr.bf16.mxu0 0
    %4531 = vmatpush1.bf16.msra.mxu0 0
    %4532 = vmatprep.subr.bf16.mxu0 0
    %4533 = vmatpush1.bf16.msra.mxu0 0
    %4534 = vmatprep.subr.bf16.mxu0 0
    %4535 = vmatpush1.bf16.msra.mxu0 0
    %4536 = vmatprep.mubr.bf16.mxu0 0
    %4537 = vmatmul.mubr.bf16.gmra.mrb[0].mxu0 %v4502
    %v4538 = vpop.f32.mrb[0].mxu0
    %v4539 = vadd.f32 %v4484, %v4538
    %v4540 = vpop.f32.mrb[0].mxu0
    %v4541 = vpop.f32.mrb[0].mxu0
    %v4542 = vpop.f32.mrb[0].mxu0
    %4543 = vdwg.mxu0
    %v4544 = vpack.c.bf16 %v4419, %v4419
    %v4549 = vunpack.c.l.b16 %v4428
    %v4550 = vunpack.c.l.b16 %v4429
    %v4551 = vunpack.c.l.b16 %v4430
    %v4552 = vunpack.c.l.b16 %v4431
    %v4553 = vpack.c.b16 %v4550, %v4549
    %v4554 = vpack.c.b16 %v4552, %v4551
    %v4558 = vsel %vm69, %v4544, 0
    %4560 = vmatprep.subr.bf16.mxu0 0
    %4561 = vmatpush1.bf16.msra.mxu0 %v4553
    %4562 = vmatprep.subr.bf16.mxu0 0
    %4563 = vmatpush1.bf16.msra.mxu0 %v4554
    %4564 = vmatprep.subr.bf16.mxu0 0
    %4565 = vmatpush1.bf16.msra.mxu0 0
    %4566 = vmatprep.subr.bf16.mxu0 0
    %4567 = vmatpush1.bf16.msra.mxu0 0
    %4568 = vmatprep.subr.bf16.mxu0 0
    %4569 = vmatpush1.bf16.msra.mxu0 0
    %4570 = vmatprep.subr.bf16.mxu0 0
    %4571 = vmatpush1.bf16.msra.mxu0 0
    %4572 = vmatprep.subr.bf16.mxu0 0
    %4573 = vmatpush1.bf16.msra.mxu0 0
    %4574 = vmatprep.subr.bf16.mxu0 0
    %4575 = vmatpush1.bf16.msra.mxu0 0
    %4576 = vmatprep.subr.bf16.mxu0 0
    %4577 = vmatpush1.bf16.msra.mxu0 0
    %4578 = vmatprep.subr.bf16.mxu0 0
    %4579 = vmatpush1.bf16.msra.mxu0 0
    %4580 = vmatprep.subr.bf16.mxu0 0
    %4581 = vmatpush1.bf16.msra.mxu0 0
    %4582 = vmatprep.subr.bf16.mxu0 0
    %4583 = vmatpush1.bf16.msra.mxu0 0
    %4584 = vmatprep.subr.bf16.mxu0 0
    %4585 = vmatpush1.bf16.msra.mxu0 0
    %4586 = vmatprep.subr.bf16.mxu0 0
    %4587 = vmatpush1.bf16.msra.mxu0 0
    %4588 = vmatprep.subr.bf16.mxu0 0
    %4589 = vmatpush1.bf16.msra.mxu0 0
    %4590 = vmatprep.subr.bf16.mxu0 0
    %4591 = vmatpush1.bf16.msra.mxu0 0
    %4592 = vmatprep.mubr.bf16.mxu0 0
    %4593 = vmatmul.mubr.bf16.gmra.mrb[0].mxu0 %v4558
    %v4594 = vpop.f32.mrb[0].mxu0
    %v4595 = vadd.f32 0.0, %v4594
    %v4596 = vpop.f32.mrb[0].mxu0
    %v4597 = vpop.f32.mrb[0].mxu0
    %v4598 = vpop.f32.mrb[0].mxu0
    %4599 = vdwg.mxu0
    %v4600 = vadd.f32 %v4539, %v4595
    %v4601 = vld [vmem:[%s2 + $0x16] ss:$0 sm:$0xff]
    %v4602 = vadd.f32 %v4600, %v4601
    %v4603 = vmax.f32 %v4602, 0.0
    %4604 = vst.msk [vmem:[#allocation2 + $0x10] sm:$0xf] %vm4032, %v4603
    %v4605 = vld [vmem:[#allocation2 + $0xf] sm:$0xf]
    %v4606 = vld [vmem:[#allocation2 + $0x11] sm:$0xf]
    %v4607 = vsel %vm4037, 0.0, %v4605
    %v4608 = vsel %vm4040, 0.0, %v4606
    %v4609 = vld [vmem:[%s1 + $0xae0] sm:$0xff]
    %v4610 = vld [vmem:[%s1 + $0xae8] sm:$0xff]
    %v4611 = vld [vmem:[%s1 + $0xaf0] sm:$0xff]
    %v4612 = vld [vmem:[%s1 + $0xaf8] sm:$0xff]
    %v4613 = vld [vmem:[%s1 + $0xb00] sm:$0xff]
    %v4614 = vld [vmem:[%s1 + $0xb08] sm:$0xff]
    %v4615 = vld [vmem:[%s1 + $0xb10] sm:$0xff]
    %v4616 = vld [vmem:[%s1 + $0xb18] sm:$0xff]
    %v4617 = vld [vmem:[%s1 + $0xb20] sm:$0xff]
    %v4618 = vld [vmem:[%s1 + $0xb28] sm:$0xff]
    %v4619 = vld [vmem:[%s1 + $0xb30] sm:$0xff]
    %v4620 = vld [vmem:[%s1 + $0xb38] sm:$0xff]
    %v4621 = vpack.c.bf16 %v4607, %v4607
    %v4622 = vpack.c.bf16 %v4603, %v4603
    %v4627 = vunpack.c.l.b16 %v4613
    %v4628 = vunpack.c.h.b16 %v4613
    %v4629 = vunpack.c.l.b16 %v4614
    %v4630 = vunpack.c.h.b16 %v4614
    %v4631 = vunpack.c.l.b16 %v4615
    %v4632 = vunpack.c.h.b16 %v4615
    %v4633 = vunpack.c.l.b16 %v4616
    %v4634 = vunpack.c.h.b16 %v4616
    %v4635 = vpack.c.b16 %v4629, %v4627
    %v4636 = vpack.c.b16 %v4630, %v4628
    %v4637 = vpack.c.b16 %v4633, %v4631
    %v4638 = vpack.c.b16 %v4634, %v4632
    %v4644 = vsel %vm69, %v4622, 0
    %4646 = vmatprep.subr.bf16.mxu0 %v4636
    %4647 = vmatpush1.bf16.msra.mxu0 %v4635
    %4648 = vmatprep.subr.bf16.mxu0 %v4638
    %4649 = vmatpush1.bf16.msra.mxu0 %v4637
    %4650 = vmatprep.subr.bf16.mxu0 0
    %4651 = vmatpush1.bf16.msra.mxu0 0
    %4652 = vmatprep.subr.bf16.mxu0 0
    %4653 = vmatpush1.bf16.msra.mxu0 0
    %4654 = vmatprep.subr.bf16.mxu0 0
    %4655 = vmatpush1.bf16.msra.mxu0 0
    %4656 = vmatprep.subr.bf16.mxu0 0
    %4657 = vmatpush1.bf16.msra.mxu0 0
    %4658 = vmatprep.subr.bf16.mxu0 0
    %4659 = vmatpush1.bf16.msra.mxu0 0
    %4660 = vmatprep.subr.bf16.mxu0 0
    %4661 = vmatpush1.bf16.msra.mxu0 0
    %4662 = vmatprep.subr.bf16.mxu0 0
    %4663 = vmatpush1.bf16.msra.mxu0 0
    %4664 = vmatprep.subr.bf16.mxu0 0
    %4665 = vmatpush1.bf16.msra.mxu0 0
    %4666 = vmatprep.subr.bf16.mxu0 0
    %4667 = vmatpush1.bf16.msra.mxu0 0
    %4668 = vmatprep.subr.bf16.mxu0 0
    %4669 = vmatpush1.bf16.msra.mxu0 0
    %4670 = vmatprep.subr.bf16.mxu0 0
    %4671 = vmatpush1.bf16.msra.mxu0 0
    %4672 = vmatprep.subr.bf16.mxu0 0
    %4673 = vmatpush1.bf16.msra.mxu0 0
    %4674 = vmatprep.subr.bf16.mxu0 0
    %4675 = vmatpush1.bf16.msra.mxu0 0
    %4676 = vmatprep.subr.bf16.mxu0 0
    %4677 = vmatpush1.bf16.msra.mxu0 0
    %4678 = vmatprep.mubr.bf16.mxu0 0
    %4679 = vmatmul.mubr.bf16.gmra.mrb[0].mxu0 %v4644
    %v4680 = vpop.f32.mrb[0].mxu0
    %v4681 = vadd.f32 0.0, %v4680
    %v4682 = vpop.f32.mrb[0].mxu0
    %v4683 = vadd.f32 0.0, %v4682
    %v4684 = vpop.f32.mrb[0].mxu0
    %v4685 = vpop.f32.mrb[0].mxu0
    %4686 = vdwg.mxu0
    %v4691 = vunpack.c.l.b16 %v4609
    %v4692 = vunpack.c.h.b16 %v4609
    %v4693 = vunpack.c.l.b16 %v4610
    %v4694 = vunpack.c.h.b16 %v4610
    %v4695 = vunpack.c.l.b16 %v4611
    %v4696 = vunpack.c.h.b16 %v4611
    %v4697 = vunpack.c.l.b16 %v4612
    %v4698 = vunpack.c.h.b16 %v4612
    %v4699 = vpack.c.b16 %v4693, %v4691
    %v4700 = vpack.c.b16 %v4694, %v4692
    %v4701 = vpack.c.b16 %v4697, %v4695
    %v4702 = vpack.c.b16 %v4698, %v4696
    %v4708 = vsel %vm69, %v4621, 0
    %4710 = vmatprep.subr.bf16.mxu0 %v4700
    %4711 = vmatpush1.bf16.msra.mxu0 %v4699
    %4712 = vmatprep.subr.bf16.mxu0 %v4702
    %4713 = vmatpush1.bf16.msra.mxu0 %v4701
    %4714 = vmatprep.subr.bf16.mxu0 0
    %4715 = vmatpush1.bf16.msra.mxu0 0
    %4716 = vmatprep.subr.bf16.mxu0 0
    %4717 = vmatpush1.bf16.msra.mxu0 0
    %4718 = vmatprep.subr.bf16.mxu0 0
    %4719 = vmatpush1.bf16.msra.mxu0 0
    %4720 = vmatprep.subr.bf16.mxu0 0
    %4721 = vmatpush1.bf16.msra.mxu0 0
    %4722 = vmatprep.subr.bf16.mxu0 0
    %4723 = vmatpush1.bf16.msra.mxu0 0
    %4724 = vmatprep.subr.bf16.mxu0 0
    %4725 = vmatpush1.bf16.msra.mxu0 0
    %4726 = vmatprep.subr.bf16.mxu0 0
    %4727 = vmatpush1.bf16.msra.mxu0 0
    %4728 = vmatprep.subr.bf16.mxu0 0
    %4729 = vmatpush1.bf16.msra.mxu0 0
    %4730 = vmatprep.subr.bf16.mxu0 0
    %4731 = vmatpush1.bf16.msra.mxu0 0
    %4732 = vmatprep.subr.bf16.mxu0 0
    %4733 = vmatpush1.bf16.msra.mxu0 0
    %4734 = vmatprep.subr.bf16.mxu0 0
    %4735 = vmatpush1.bf16.msra.mxu0 0
    %4736 = vmatprep.subr.bf16.mxu0 0
    %4737 = vmatpush1.bf16.msra.mxu0 0
    %4738 = vmatprep.subr.bf16.mxu0 0
    %4739 = vmatpush1.bf16.msra.mxu0 0
    %4740 = vmatprep.subr.bf16.mxu0 0
    %4741 = vmatpush1.bf16.msra.mxu0 0
    %4742 = vmatprep.mubr.bf16.mxu0 0
    %4743 = vmatmul.mubr.bf16.gmra.mrb[0].mxu0 %v4708
    %v4744 = vpop.f32.mrb[0].mxu0
    %v4745 = vadd.f32 %v4681, %v4744
    %v4746 = vpop.f32.mrb[0].mxu0
    %v4747 = vadd.f32 %v4683, %v4746
    %v4748 = vpop.f32.mrb[0].mxu0
    %v4749 = vpop.f32.mrb[0].mxu0
    %4750 = vdwg.mxu0
    %v4751 = vpack.c.bf16 %v4608, %v4608
    %v4756 = vunpack.c.l.b16 %v4617
    %v4757 = vunpack.c.h.b16 %v4617
    %v4758 = vunpack.c.l.b16 %v4618
    %v4759 = vunpack.c.h.b16 %v4618
    %v4760 = vunpack.c.l.b16 %v4619
    %v4761 = vunpack.c.h.b16 %v4619
    %v4762 = vunpack.c.l.b16 %v4620
    %v4763 = vunpack.c.h.b16 %v4620
    %v4764 = vpack.c.b16 %v4758, %v4756
    %v4765 = vpack.c.b16 %v4759, %v4757
    %v4766 = vpack.c.b16 %v4762, %v4760
    %v4767 = vpack.c.b16 %v4763, %v4761
    %v4773 = vsel %vm69, %v4751, 0
    %4775 = vmatprep.subr.bf16.mxu0 %v4765
    %4776 = vmatpush1.bf16.msra.mxu0 %v4764
    %4777 = vmatprep.subr.bf16.mxu0 %v4767
    %4778 = vmatpush1.bf16.msra.mxu0 %v4766
    %4779 = vmatprep.subr.bf16.mxu0 0
    %4780 = vmatpush1.bf16.msra.mxu0 0
    %4781 = vmatprep.subr.bf16.mxu0 0
    %4782 = vmatpush1.bf16.msra.mxu0 0
    %4783 = vmatprep.subr.bf16.mxu0 0
    %4784 = vmatpush1.bf16.msra.mxu0 0
    %4785 = vmatprep.subr.bf16.mxu0 0
    %4786 = vmatpush1.bf16.msra.mxu0 0
    %4787 = vmatprep.subr.bf16.mxu0 0
    %4788 = vmatpush1.bf16.msra.mxu0 0
    %4789 = vmatprep.subr.bf16.mxu0 0
    %4790 = vmatpush1.bf16.msra.mxu0 0
    %4791 = vmatprep.subr.bf16.mxu0 0
    %4792 = vmatpush1.bf16.msra.mxu0 0
    %4793 = vmatprep.subr.bf16.mxu0 0
    %4794 = vmatpush1.bf16.msra.mxu0 0
    %4795 = vmatprep.subr.bf16.mxu0 0
    %4796 = vmatpush1.bf16.msra.mxu0 0
    %4797 = vmatprep.subr.bf16.mxu0 0
    %4798 = vmatpush1.bf16.msra.mxu0 0
    %4799 = vmatprep.subr.bf16.mxu0 0
    %4800 = vmatpush1.bf16.msra.mxu0 0
    %4801 = vmatprep.subr.bf16.mxu0 0
    %4802 = vmatpush1.bf16.msra.mxu0 0
    %4803 = vmatprep.subr.bf16.mxu0 0
    %4804 = vmatpush1.bf16.msra.mxu0 0
    %4805 = vmatprep.subr.bf16.mxu0 0
    %4806 = vmatpush1.bf16.msra.mxu0 0
    %4807 = vmatprep.mubr.bf16.mxu0 0
    %4808 = vmatmul.mubr.bf16.gmra.mrb[0].mxu0 %v4773
    %v4809 = vpop.f32.mrb[0].mxu0
    %v4810 = vadd.f32 0.0, %v4809
    %v4811 = vpop.f32.mrb[0].mxu0
    %v4812 = vadd.f32 0.0, %v4811
    %v4813 = vpop.f32.mrb[0].mxu0
    %v4814 = vpop.f32.mrb[0].mxu0
    %4815 = vdwg.mxu0
    %v4816 = vadd.f32 %v4745, %v4810
    %v4817 = vadd.f32 %v4747, %v4812
    %s4818 = scalar_lea.vmem %s2, 23
    %v4819 = vld [vmem:[%s4818] ss:$8 sm:$0x3]
    %v4821 = vlaneseq
    %v4822 = vshrl.u32 %v4821, 7
    %v4823 = vsub.s32 0, %v4822
    %v4824 = vrot.slane %v4819, %v4823
    %v4825 = vlaneseq
    %v4826 = vshrl.u32 %v4825, 7
    %v4827 = vsub.s32 1, %v4826
    %v4828 = vrot.slane %v4819, %v4827
    %v4831 = vadd.f32 %v4816, %v4824
    %v4832 = vadd.f32 %v4817, %v4828
    %v4833 = vmax.f32 %v4831, 0.0
    %v4834 = vmax.f32 %v4832, 0.0
    %v4835 = vmax.f32 %v4833, %v4834
    %vm4836 = vcmask 125952
    %4837 = vst.msk [vmem:[#allocation3] sm:$0xf] %vm4836, %v4835
    %v4838 = vld [vmem:[#allocation3] ss:$2 sm:$0x3]
    %v4839 = vld [vmem:[%s1102] ss:$2 sm:$0x3]
    %v4840 = vmax.f32 %v4838, %v4839
    %v4841 = vld [vmem:[%s1 + $0xb40] sm:$0xf]
    %v4842 = vld [vmem:[%s1 + $0xb48] sm:$0xf]
    %v4843 = vld [vmem:[%s2 + $0x20] ss:$0 sm:$0xff]
    %v4844 = vpack.c.bf16 %v4840, %v4840
    %v4847 = vunpack.c.l.b16 %v4841
    %v4848 = vunpack.c.l.b16 %v4842
    %v4849 = vpack.c.b16 %v4848, %v4847
    %vm4851 = vcmask 130048
    %v4853 = vsel %vm4851, %v4844, 0
    %4855 = vmatprep.subr.bf16.mxu0 0
    %4856 = vmatpush1.bf16.msra.mxu0 %v4849
    %4857 = vmatprep.subr.bf16.mxu0 0
    %4858 = vmatpush1.bf16.msra.mxu0 0
    %4859 = vmatprep.subr.bf16.mxu0 0
    %4860 = vmatpush1.bf16.msra.mxu0 0
    %4861 = vmatprep.subr.bf16.mxu0 0
    %4862 = vmatpush1.bf16.msra.mxu0 0
    %4863 = vmatprep.subr.bf16.mxu0 0
    %4864 = vmatpush1.bf16.msra.mxu0 0
    %4865 = vmatprep.subr.bf16.mxu0 0
    %4866 = vmatpush1.bf16.msra.mxu0 0
    %4867 = vmatprep.subr.bf16.mxu0 0
    %4868 = vmatpush1.bf16.msra.mxu0 0
    %4869 = vmatprep.subr.bf16.mxu0 0
    %4870 = vmatpush1.bf16.msra.mxu0 0
    %4871 = vmatprep.subr.bf16.mxu0 0
    %4872 = vmatpush1.bf16.msra.mxu0 0
    %4873 = vmatprep.subr.bf16.mxu0 0
    %4874 = vmatpush1.bf16.msra.mxu0 0
    %4875 = vmatprep.subr.bf16.mxu0 0
    %4876 = vmatpush1.bf16.msra.mxu0 0
    %4877 = vmatprep.subr.bf16.mxu0 0
    %4878 = vmatpush1.bf16.msra.mxu0 0
    %4879 = vmatprep.subr.bf16.mxu0 0
    %4880 = vmatpush1.bf16.msra.mxu0 0
    %4881 = vmatprep.subr.bf16.mxu0 0
    %4882 = vmatpush1.bf16.msra.mxu0 0
    %4883 = vmatprep.subr.bf16.mxu0 0
    %4884 = vmatpush1.bf16.msra.mxu0 0
    %4885 = vmatprep.subr.bf16.mxu0 0
    %4886 = vmatpush1.bf16.msra.mxu0 0
    %4887 = vmatprep.mubr.bf16.mxu0 0
    %4888 = vmatmul.mubr.bf16.gmra.mrb[0].mxu0 %v4853
    %v4889 = vpop.f32.mrb[0].mxu0
    %v4890 = vadd.f32 %v4843, %v4889
    %v4891 = vpop.f32.mrb[0].mxu0
    %v4892 = vpop.f32.mrb[0].mxu0
    %v4893 = vpop.f32.mrb[0].mxu0
    %4894 = vdwg.mxu0
    %v4895 = vmax.f32 %v4890, 0.0
    %v4896 = vld [vmem:[%s1 + $0xb50] sm:$0xf]
    %v4897 = vld [vmem:[%s1 + $0xb58] sm:$0xf]
    %v4898 = vld [vmem:[%s1 + $0xb60] sm:$0xf]
    %v4899 = vld [vmem:[%s1 + $0xb68] sm:$0xf]
    %v4900 = vld [vmem:[%s1 + $0xb70] sm:$0xf]
    %v4901 = vld [vmem:[%s1 + $0xb78] sm:$0xf]
    %v4902 = vld [vmem:[%s1 + $0xb80] sm:$0xf]
    %v4903 = vld [vmem:[%s1 + $0xb88] sm:$0xf]
    %v4904 = vld [vmem:[%s2 + $0x21] ss:$0 sm:$0xff]
    %v4905 = vpack.c.bf16 %v4895, %v4895
    %v4914 = vunpack.c.l.b16 %v4896
    %v4915 = vunpack.c.l.b16 %v4897
    %v4916 = vunpack.c.l.b16 %v4898
    %v4917 = vunpack.c.l.b16 %v4899
    %v4918 = vunpack.c.l.b16 %v4900
    %v4919 = vunpack.c.l.b16 %v4901
    %v4920 = vunpack.c.l.b16 %v4902
    %v4921 = vunpack.c.l.b16 %v4903
    %v4922 = vpack.c.b16 %v4915, %v4914
    %v4923 = vpack.c.b16 %v4917, %v4916
    %v4924 = vpack.c.b16 %v4919, %v4918
    %v4925 = vpack.c.b16 %v4921, %v4920
    %v4931 = vsel %vm1086, %v4905, 0
    %4933 = vmatprep.subr.bf16.mxu0 0
    %4934 = vmatpush1.bf16.msra.mxu0 %v4922
    %4935 = vmatprep.subr.bf16.mxu0 0
    %4936 = vmatpush1.bf16.msra.mxu0 %v4923
    %4937 = vmatprep.subr.bf16.mxu0 0
    %4938 = vmatpush1.bf16.msra.mxu0 %v4924
    %4939 = vmatprep.subr.bf16.mxu0 0
    %4940 = vmatpush1.bf16.msra.mxu0 %v4925
    %4941 = vmatprep.subr.bf16.mxu0 0
    %4942 = vmatpush1.bf16.msra.mxu0 0
    %4943 = vmatprep.subr.bf16.mxu0 0
    %4944 = vmatpush1.bf16.msra.mxu0 0
    %4945 = vmatprep.subr.bf16.mxu0 0
    %4946 = vmatpush1.bf16.msra.mxu0 0
    %4947 = vmatprep.subr.bf16.mxu0 0
    %4948 = vmatpush1.bf16.msra.mxu0 0
    %4949 = vmatprep.subr.bf16.mxu0 0
    %4950 = vmatpush1.bf16.msra.mxu0 0
    %4951 = vmatprep.subr.bf16.mxu0 0
    %4952 = vmatpush1.bf16.msra.mxu0 0
    %4953 = vmatprep.subr.bf16.mxu0 0
    %4954 = vmatpush1.bf16.msra.mxu0 0
    %4955 = vmatprep.subr.bf16.mxu0 0
    %4956 = vmatpush1.bf16.msra.mxu0 0
    %4957 = vmatprep.subr.bf16.mxu0 0
    %4958 = vmatpush1.bf16.msra.mxu0 0
    %4959 = vmatprep.subr.bf16.mxu0 0
    %4960 = vmatpush1.bf16.msra.mxu0 0
    %4961 = vmatprep.subr.bf16.mxu0 0
    %4962 = vmatpush1.bf16.msra.mxu0 0
    %4963 = vmatprep.subr.bf16.mxu0 0
    %4964 = vmatpush1.bf16.msra.mxu0 0
    %4965 = vmatprep.mubr.bf16.mxu0 0
    %4966 = vmatmul.mubr.bf16.gmra.mrb[0].mxu0 %v4931
    %v4967 = vpop.f32.mrb[0].mxu0
    %v4968 = vadd.f32 %v4904, %v4967
    %v4969 = vpop.f32.mrb[0].mxu0
    %v4970 = vpop.f32.mrb[0].mxu0
    %v4971 = vpop.f32.mrb[0].mxu0
    %4972 = vdwg.mxu0
    %vm4973 = vcmask 254976
    %4974 = vst.msk [vmem:[#allocation4] sm:$0x3] %vm4973, %v4968
    // Predicated region
    $region14: #{_lambda_.1} parent=1 // pred_check
      _
    $region15: #{_lambda_.1} parent=1 // pred_check_branch
      %4976 = sbr.rel (0) target = $region17
    $region16: #{_lambda_.1} parent=1 // pred_region
      %s4978 = ssub.s32 32, 32
      %4979 = vsyncadd [#allocation5], %s4978
      %s4981 = sshll.u32 [#allocation4], 4
      %s4982 = int_to_ptr.vmem [resolvable:$true] %s4981
      %4984 = dma.vmem_to_hbm [thread:$0]  %s4982, 32, %s3, [#allocation5]
    $region17: #{_lambda_.1} parent=1 // pred_fallthru
      _
    // Predicated region
    $region18: #{_lambda_.1} parent=1 // pred_check
      _
    $region19: #{_lambda_.1} parent=1 // pred_check_branch
      %4986 = sbr.rel (0) target = $region21
    $region20: #{_lambda_.1} parent=1 // pred_region
      %4987 = dma.done [#allocation5], 32
    $region21: #{_lambda_.1} parent=1 // pred_fallthru
      _
    %4988 = vsyncpa [#allocation5], 1

</llo_original>
